<compile_context>
chip_gen: v6e
topology: v6e:2x2x1
jax: 0.10.0
libtpu: 0.0.40
codegen_flags: <defaults>
</compile_context>

<pallas_src>
import math
import functools

import jax
import jax.numpy as jnp
from jax.experimental import pallas as pl
from jax.experimental.pallas import tpu as pltpu

_LN_EPS = 1e-5                   # torch.nn.LayerNorm default
_SQRT2 = math.sqrt(2.0)
_MXU_DTYPE = jnp.bfloat16        # bf16 MXU inputs on v5e/v6e/v7x, f32 accumulate
_VMEM_LIMIT = 64 * 1024 * 1024   # <= physical VMEM on every generation (v7x: 64 MiB)


def _cparams(*sems):
    return pltpu.CompilerParams(dimension_semantics=tuple(sems),
                                vmem_limit_bytes=_VMEM_LIMIT)


def _row_tile(n, preferred=256):
    """Largest vreg/MXU-friendly row tile that evenly divides n (else full dim)."""
    for t in (preferred, 128, 64, 32, 16, 8):
        if t <= n and n % t == 0:
            return t
    return n


# ----------------------------- kernel helpers ------------------------------

def _gelu(x):
    # exact (erf-based) GELU, matching torch.nn.GELU default
    return 0.5 * x * (1.0 + jax.lax.erf(x / _SQRT2))


def _layernorm(x, gamma, beta):
    mu = jnp.mean(x, axis=-1, keepdims=True)
    var = jnp.mean((x - mu) ** 2, axis=-1, keepdims=True)
    return (x - mu) * jax.lax.rsqrt(var + _LN_EPS) * gamma + beta


def _mm(a, b):
    """MXU matmul: bf16 inputs, f32 accumulation."""
    return jnp.dot(a.astype(_MXU_DTYPE), b.astype(_MXU_DTYPE),
                   preferred_element_type=jnp.float32)


def _mm_t(a, b):
    """a[m, d] . b[n, d]^T -> [m, n] (contraction over last dim of both)."""
    return jax.lax.dot_general(a.astype(_MXU_DTYPE), b.astype(_MXU_DTYPE),
                               (((1,), (1,)), ((), ())),
                               preferred_element_type=jnp.float32)


# ------------------- fused input encoder (+ pos. encoding) ------------------

def _make_input_encoder_kernel(scale):
    def kernel(x_ref, pe_ref, w_ref, b_ref, g_ref, bt_ref, o_ref):
        x = x_ref[0]                                          # [ts, token_dim] f32
        y = _mm(x, w_ref[...]) + b_ref[...]                   # Linear
        y = _layernorm(_gelu(y), g_ref[...], bt_ref[...])     # GELU -> LayerNorm
        o_ref[0] = y * scale + pe_ref[...]                    # * sqrt(d_model) + PE
    return kernel


def input_encoder(x_bst, pe_s, w, b, gamma, beta, *, scale):
    B, S, token_dim = x_bst.shape
    d_model = w.shape[1]
    ts = _row_tile(S)
    return pl.pallas_call(
        _make_input_encoder_kernel(scale),
        out_shape=jax.ShapeDtypeStruct((B, S, d_model), jnp.float32),
        grid=(B, S // ts),
        in_specs=[
            pl.BlockSpec((1, ts, token_dim), lambda b_, s_: (b_, s_, 0)),
            pl.BlockSpec((ts, d_model), lambda b_, s_: (s_, 0)),
            pl.BlockSpec((token_dim, d_model), lambda b_, s_: (0, 0)),
            pl.BlockSpec((1, d_model), lambda b_, s_: (0, 0)),
            pl.BlockSpec((1, d_model), lambda b_, s_: (0, 0)),
            pl.BlockSpec((1, d_model), lambda b_, s_: (0, 0)),
        ],
        out_specs=pl.BlockSpec((1, ts, d_model), lambda b_, s_: (b_, s_, 0)),
        compiler_params=_cparams("parallel", "parallel"),
    )(x_bst, pe_s, w.astype(_MXU_DTYPE), b.reshape(1, -1),
      gamma.reshape(1, -1), beta.reshape(1, -1))


# ------- fused encoder layer (QKV + SDPA + proj + LN1 + FFN + LN2) ----------

def _make_encoder_layer_kernel(nheads, scale):
    def kernel(x_ref, mask_ref,
               wq_ref, wk_ref, wv_ref, bq_ref, bk_ref, bv_ref,
               wo_ref, bo_ref, g1_ref, bt1_ref,
               w1_ref, b1_ref, w2_ref, b2_ref, g2_ref, bt2_ref,
               o_ref):
        x = x_ref[0]                       # [S, D] f32
        bias = mask_ref[0]                 # [1, S] additive float key_padding_mask
        acc = None
        # TODO(synk): per-head matmuls leave MXU lanes idle when dh < 128; the
        # SDPA contraction over dh is inherently narrow regardless.
        for h in range(nheads):
            q = _mm(x, wq_ref[h]) + bq_ref[h]                 # [S, dh]
            k = _mm(x, wk_ref[h]) + bk_ref[h]
            v = _mm(x, wv_ref[h]) + bv_ref[h]
            logits = _mm_t(q, k) * scale + bias               # [S, S]
            mx = jnp.max(logits, axis=-1, keepdims=True)
            p = jnp.exp(logits - mx)
            w = p * pl.reciprocal(jnp.sum(p, axis=-1, keepdims=True), approx=True)
            ctx = _mm(w, v)                                   # [S, dh]
            contrib = _mm(ctx, wo_ref[h])                     # [S, D]
            acc = contrib if acc is None else acc + contrib
        attn = acc + bo_ref[...]
        y = _layernorm(x + attn, g1_ref[...], bt1_ref[...])    # norm1(x + attn)
        h_ff = jnp.maximum(_mm(y, w1_ref[...]) + b1_ref[...], 0.0)   # Linear -> ReLU
        z = _mm(h_ff, w2_ref[...]) + b2_ref[...]                     # Linear
        o_ref[0] = _layernorm(y + z, g2_ref[...], bt2_ref[...])      # norm2(y + ffn)
    return kernel


def encoder_layer(x, mask_bias, wq, wk, wv, bq, bk, bv, wo, bo, g1, bt1,
                  w1, b1, w2, b2, g2, bt2, *, nheads, scale):
    B, S, D = x.shape
    dh = D // nheads
    d_hid = w1.shape[1]

    def const(shape):
        return pl.BlockSpec(shape, lambda b: tuple(0 for _ in shape))

    return pl.pallas_call(
        _make_encoder_layer_kernel(nheads, scale),
        out_shape=jax.ShapeDtypeStruct((B, S, D), jnp.float32),
        grid=(B,),
        in_specs=[
            pl.BlockSpec((1, S, D), lambda b: (b, 0, 0)),          # x (one batch)
            pl.BlockSpec((1, 1, S), lambda b: (b, 0, 0)),          # additive mask
            const((nheads, D, dh)),                                # w_q per head
            const((nheads, D, dh)),                                # w_k per head
            const((nheads, D, dh)),                                # w_v per head
            const((nheads, 1, dh)),                                # b_q per head
            const((nheads, 1, dh)),                                # b_k per head
            const((nheads, 1, dh)),                                # b_v per head
            const((nheads, dh, D)),                                # w_o per head
            const((1, D)),                                         # b_o
            const((1, D)),                                         # gamma1
            const((1, D)),                                         # beta1
            const((D, d_hid)),                                     # w_ff1
            const((1, d_hid)),                                     # b_ff1
            const((d_hid, D)),                                     # w_ff2
            const((1, D)),                                         # b_ff2
            const((1, D)),                                         # gamma2
            const((1, D)),                                         # beta2
        ],
        out_specs=pl.BlockSpec((1, S, D), lambda b: (b, 0, 0)),
        compiler_params=_cparams("parallel"),
    )(x, mask_bias, wq, wk, wv, bq, bk, bv, wo, bo, g1, bt1,
      w1, b1, w2, b2, g2, bt2)


# ----------------------- fused 4-stage decoder MLP --------------------------

def _decoder_kernel(x_ref,
                    w1_ref, b1_ref, g1_ref, n1_ref,
                    w2_ref, b2_ref, g2_ref, n2_ref,
                    w3_ref, b3_ref, g3_ref, n3_ref,
                    w4_ref, b4_ref, o_ref):
    h = x_ref[...]
    for w_r, b_r, g_r, n_r in ((w1_ref, b1_ref, g1_ref, n1_ref),
                               (w2_ref, b2_ref, g2_ref, n2_ref),
                               (w3_ref, b3_ref, g3_ref, n3_ref)):
        # full_block: Linear -> LayerNorm -> GELU (dropout is identity)
        h = _gelu(_layernorm(_mm(h, w_r[...]) + b_r[...], g_r[...], n_r[...]))
    o_ref[...] = _mm(h, w4_ref[...]) + b4_ref[...]


def decoder_head(x2d, dec):
    M, D = x2d.shape
    hid1 = dec["w1"].shape[1]
    hid2 = dec["w2"].shape[1]
    out_dim = dec["w4"].shape[1]
    tm = _row_tile(M)

    def const2(shape):
        return pl.BlockSpec(shape, lambda i: (0, 0))

    in_specs = [
        pl.BlockSpec((tm, D), lambda i: (i, 0)),
        const2((D, hid1)), const2((1, hid1)), const2((1, hid1)), const2((1, hid1)),
        const2((hid1, hid2)), const2((1, hid2)), const2((1, hid2)), const2((1, hid2)),
        const2((hid2, out_dim)), const2((1, out_dim)), const2((1, out_dim)), const2((1, out_dim)),
        const2((out_dim, out_dim)), const2((1, out_dim)),
    ]
    args = [x2d,
            dec["w1"].astype(_MXU_DTYPE), dec["b1"].reshape(1, -1),
            dec["g1"].reshape(1, -1), dec["bt1"].reshape(1, -1),
            dec["w2"].astype(_MXU_DTYPE), dec["b2"].reshape(1, -1),
            dec["g2"].reshape(1, -1), dec["bt2"].reshape(1, -1),
            dec["w3"].astype(_MXU_DTYPE), dec["b3"].reshape(1, -1),
            dec["g3"].reshape(1, -1), dec["bt3"].reshape(1, -1),
            dec["w4"].astype(_MXU_DTYPE), dec["b4"].reshape(1, -1)]
    return pl.pallas_call(
        _decoder_kernel,
        out_shape=jax.ShapeDtypeStruct((M, out_dim), jnp.float32),
        grid=(M // tm,),
        in_specs=in_specs,
        out_specs=pl.BlockSpec((tm, out_dim), lambda i: (i, 0)),
        compiler_params=_cparams("parallel"),
    )(*args)


# --------------------------------- L2 norm ----------------------------------

def _l2norm_kernel(x_ref, o_ref):
    x = x_ref[...]
    nrm = jnp.sqrt(jnp.sum(x * x, axis=-1, keepdims=True))
    o_ref[...] = x / jnp.maximum(nrm, 1e-12)      # F.normalize(dim=1, eps=1e-12)


def l2_normalize(x):
    vmem = pl.BlockSpec(memory_space=pltpu.MemorySpace.VMEM)
    return pl.pallas_call(
        _l2norm_kernel,
        out_shape=jax.ShapeDtypeStruct(x.shape, jnp.float32),
        in_specs=[vmem],
        out_specs=vmem,
    )(x)


# --------------------------- model (JAX glue) -------------------------------

@functools.partial(jax.jit, static_argnames=("nhead",))
def transformer_forward(params, src, mask, *, nhead):
    """src: [seq_len, batch, token_dim]; mask: [batch, seq_len] (1 = valid)."""
    S, B, _ = src.shape
    d_model = params["encoder"]["w"].shape[1]
    H = nhead
    dh = d_model // H

    # single layout transpose at the boundary: [S, B, tok] -> [B, S, tok]
    x_bst = jnp.transpose(src, (1, 0, 2))
    pe_s = params["pe"][:S, 0, :]                               # [S, d_model]

    enc = params["encoder"]
    x = input_encoder(x_bst, pe_s, enc["w"], enc["b"], enc["g"], enc["beta"],
                      scale=math.sqrt(d_model))                 # [B, S, d_model]

    # float key_padding_mask semantics: (1 - mask) is ADDED to the logits, as torch does
    mask_bias = (1.0 - mask).astype(jnp.float32).reshape(B, 1, S)

    scale = 1.0 / math.sqrt(dh)
    for lyr in params["layers"]:
        # per-head weight views (weights only — no activation relayouts)
        w_qkv, b_qkv = lyr["w_qkv"], lyr["b_qkv"]
        wq = w_qkv[:, 0 * d_model:1 * d_model].reshape(d_model, H, dh).transpose(1, 0, 2)
        wk = w_qkv[:, 1 * d_model:2 * d_model].reshape(d_model, H, dh).transpose(1, 0, 2)
        wv = w_qkv[:, 2 * d_model:3 * d_model].reshape(d_model, H, dh).transpose(1, 0, 2)
        bq = b_qkv[0 * d_model:1 * d_model].reshape(H, 1, dh)
        bk = b_qkv[1 * d_model:2 * d_model].reshape(H, 1, dh)
        bv = b_qkv[2 * d_model:3 * d_model].reshape(H, 1, dh)
        wo = lyr["w_o"].reshape(H, dh, d_model)

        x = encoder_layer(
            x, mask_bias,
            wq.astype(_MXU_DTYPE), wk.astype(_MXU_DTYPE), wv.astype(_MXU_DTYPE),
            bq, bk, bv, wo.astype(_MXU_DTYPE),
            lyr["b_o"].reshape(1, -1),
            lyr["g1"].reshape(1, -1), lyr["bt1"].reshape(1, -1),
            lyr["w_ff1"].astype(_MXU_DTYPE), lyr["b_ff1"].reshape(1, -1),
            lyr["w_ff2"].astype(_MXU_DTYPE), lyr["b_ff2"].reshape(1, -1),
            lyr["g2"].reshape(1, -1), lyr["bt2"].reshape(1, -1),
            nheads=H, scale=scale)

    gene2d = decoder_head(x.reshape(B * S, d_model), params["decoder"])
    out_dim = gene2d.shape[1]
    gene = gene2d.reshape(B, S, out_dim)
    gene_output = jnp.transpose(gene, (1, 0, 2))                # back to [S, B, out]
    embedding = l2_normalize(gene[:, 0, :])                     # F.normalize(gene_output[0], dim=1)
    return gene_output, embedding


# ----------------------------- parameter init -------------------------------

def init_params(key, token_dim, d_model, nhead, d_hid, nlayers, output_dim, max_len=64):
    keys = list(jax.random.split(key, 64))
    it = iter(keys)

    def lin(fan_in, fan_out):
        bound = 1.0 / math.sqrt(fan_in)
        w = jax.random.uniform(next(it), (fan_in, fan_out), jnp.float32, -bound, bound)
        b = jax.random.uniform(next(it), (fan_out,), jnp.float32, -bound, bound)
        return w, b

    def ln(dim):
        return jnp.ones((dim,), jnp.float32), jnp.zeros((dim,), jnp.float32)

    # sinusoidal positional encoding buffer [max_len, 1, d_model]
    position = jnp.arange(max_len, dtype=jnp.float32)[:, None]
    div_term = jnp.exp(jnp.arange(0, d_model, 2, dtype=jnp.float32)
                       * (-math.log(10000.0) / d_model))
    pe = jnp.zeros((max_len, d_model), jnp.float32)
    pe = pe.at[:, 0::2].set(jnp.sin(position * div_term))
    pe = pe.at[:, 1::2].set(jnp.cos(position * div_term))
    pe = pe[:, None, :]

    w_e, b_e = lin(token_dim, d_model)
    g_e, bt_e = ln(d_model)
    encoder = dict(w=w_e, b=b_e, g=g_e, beta=bt_e)

    layers = []
    for _ in range(nlayers):
        w_qkv, b_qkv = lin(d_model, 3 * d_model)
        w_o, b_o = lin(d_model, d_model)
        g1, bt1 = ln(d_model)
        w_ff1, b_ff1 = lin(d_model, d_hid)
        w_ff2, b_ff2 = lin(d_hid, d_model)
        g2, bt2 = ln(d_model)
        layers.append(dict(w_qkv=w_qkv, b_qkv=b_qkv, w_o=w_o, b_o=b_o,
                           g1=g1, bt1=bt1, w_ff1=w_ff1, b_ff1=b_ff1,
                           w_ff2=w_ff2, b_ff2=b_ff2, g2=g2, bt2=bt2))

    w1, b1 = lin(d_model, 1024); g1d, bt1d = ln(1024)
    w2, b2 = lin(1024, output_dim); g2d, bt2d = ln(output_dim)
    w3, b3 = lin(output_dim, output_dim); g3d, bt3d = ln(output_dim)
    w4, b4 = lin(output_dim, output_dim)
    decoder = dict(w1=w1, b1=b1, g1=g1d, bt1=bt1d,
                   w2=w2, b2=b2, g2=g2d, bt2=bt2d,
                   w3=w3, b3=b3, g3=g3d, bt3=bt3d,
                   w4=w4, b4=b4)

    # TODO(synk): binary_decoder / gene_embedding_layer are only used in
    # TransformerModel.predict(), not in forward(); they are not instantiated here.
    return dict(pe=pe, encoder=encoder, layers=layers, decoder=decoder)


# --------------------------------- main --------------------------------------

if __name__ == "__main__":
    token_dim, d_model, nhead, d_hid, nlayers, output_dim = 16, 32, 4, 64, 2, 32
    S, B = 8, 2

    root = jax.random.PRNGKey(0)
    kp, kx, km = jax.random.split(root, 3)

    params = init_params(kp, token_dim, d_model, nhead, d_hid, nlayers, output_dim)
    src = jax.random.normal(kx, (S, B, token_dim), dtype=jnp.float32)
    mask = (jax.random.uniform(km, (B, S)) > 0.25).astype(jnp.float32)  # 1 = valid token

    gene_output, embedding = transformer_forward(params, src, mask, nhead=nhead)
    jax.block_until_ready((gene_output, embedding))

    assert gene_output.shape == (S, B, output_dim)
    assert embedding.shape == (B, output_dim)
    print("KERNEL_OK")
</pallas_src>

<mosaic_0001>
module attributes {stable_mosaic.version = 11 : i64} {
  func.func @_decoder_kernel(%arg0: i32, %arg1: memref<16x32xf32, #tpu.memory_space<vmem>>, %arg2: memref<32x1024xbf16, #tpu.memory_space<vmem>>, %arg3: memref<1x1024xf32, #tpu.memory_space<vmem>>, %arg4: memref<1x1024xf32, #tpu.memory_space<vmem>>, %arg5: memref<1x1024xf32, #tpu.memory_space<vmem>>, %arg6: memref<1024x32xbf16, #tpu.memory_space<vmem>>, %arg7: memref<1x32xf32, #tpu.memory_space<vmem>>, %arg8: memref<1x32xf32, #tpu.memory_space<vmem>>, %arg9: memref<1x32xf32, #tpu.memory_space<vmem>>, %arg10: memref<32x32xbf16, #tpu.memory_space<vmem>>, %arg11: memref<1x32xf32, #tpu.memory_space<vmem>>, %arg12: memref<1x32xf32, #tpu.memory_space<vmem>>, %arg13: memref<1x32xf32, #tpu.memory_space<vmem>>, %arg14: memref<32x32xbf16, #tpu.memory_space<vmem>>, %arg15: memref<1x32xf32, #tpu.memory_space<vmem>>, %arg16: memref<16x32xf32, #tpu.memory_space<vmem>>) attributes {dimension_semantics = [#tpu.dimension_semantics<parallel>], iteration_bounds = array<i64: 1>, scalar_prefetch = 0 : i64, scratch_operands = 0 : i64, tpu.core_type = #tpu.core_type<tc>, window_params = [{transform_indices = @transform_0, window_bounds = array<i64: 16, 32>}, {pipeline_mode = #tpu.pipeline_mode<synchronous>, transform_indices = @transform_1, window_bounds = array<i64: 32, 1024>}, {pipeline_mode = #tpu.pipeline_mode<synchronous>, transform_indices = @transform_2, window_bounds = array<i64: 1, 1024>}, {pipeline_mode = #tpu.pipeline_mode<synchronous>, transform_indices = @transform_3, window_bounds = array<i64: 1, 1024>}, {pipeline_mode = #tpu.pipeline_mode<synchronous>, transform_indices = @transform_4, window_bounds = array<i64: 1, 1024>}, {pipeline_mode = #tpu.pipeline_mode<synchronous>, transform_indices = @transform_5, window_bounds = array<i64: 1024, 32>}, {pipeline_mode = #tpu.pipeline_mode<synchronous>, transform_indices = @transform_6, window_bounds = array<i64: 1, 32>}, {pipeline_mode = #tpu.pipeline_mode<synchronous>, transform_indices = @transform_7, window_bounds = array<i64: 1, 32>}, {pipeline_mode = #tpu.pipeline_mode<synchronous>, transform_indices = @transform_8, window_bounds = array<i64: 1, 32>}, {pipeline_mode = #tpu.pipeline_mode<synchronous>, transform_indices = @transform_9, window_bounds = array<i64: 32, 32>}, {pipeline_mode = #tpu.pipeline_mode<synchronous>, transform_indices = @transform_10, window_bounds = array<i64: 1, 32>}, {pipeline_mode = #tpu.pipeline_mode<synchronous>, transform_indices = @transform_11, window_bounds = array<i64: 1, 32>}, {pipeline_mode = #tpu.pipeline_mode<synchronous>, transform_indices = @transform_12, window_bounds = array<i64: 1, 32>}, {pipeline_mode = #tpu.pipeline_mode<synchronous>, transform_indices = @transform_13, window_bounds = array<i64: 32, 32>}, {pipeline_mode = #tpu.pipeline_mode<synchronous>, transform_indices = @transform_14, window_bounds = array<i64: 1, 32>}, {transform_indices = @transform_15, window_bounds = array<i64: 16, 32>}]} {
    %c0 = arith.constant 0 : index
    %c0_0 = arith.constant 0 : index
    %0 = vector.load %arg1[%c0, %c0_0] : memref<16x32xf32, #tpu.memory_space<vmem>>, vector<16x32xf32>
    %c0_1 = arith.constant 0 : index
    %c0_2 = arith.constant 0 : index
    %1 = vector.load %arg2[%c0_1, %c0_2] : memref<32x1024xbf16, #tpu.memory_space<vmem>>, vector<32x1024xbf16>
    %2 = arith.truncf %0 : vector<16x32xf32> to vector<16x32xbf16>
    %cst = arith.constant dense<0.000000e+00> : vector<16x1024xf32>
    %3 = tpu.matmul %2, %1, %cst {dimension_numbers = #tpu.dot_dimension_numbers<[1], [0], [0], [1], [0, 0, 1, 1], [], []>} : vector<16x32xbf16>, vector<32x1024xbf16>, vector<16x1024xf32> -> vector<16x1024xf32>
    %c0_3 = arith.constant 0 : index
    %c0_4 = arith.constant 0 : index
    %4 = vector.load %arg3[%c0_3, %c0_4] : memref<1x1024xf32, #tpu.memory_space<vmem>>, vector<1x1024xf32>
    %5 = vector.broadcast %4 : vector<1x1024xf32> to vector<16x1024xf32>
    %6 = arith.addf %3, %5 : vector<16x1024xf32>
    %c0_5 = arith.constant 0 : index
    %c0_6 = arith.constant 0 : index
    %7 = vector.load %arg4[%c0_5, %c0_6] : memref<1x1024xf32, #tpu.memory_space<vmem>>, vector<1x1024xf32>
    %c0_7 = arith.constant 0 : index
    %c0_8 = arith.constant 0 : index
    %8 = vector.load %arg5[%c0_7, %c0_8] : memref<1x1024xf32, #tpu.memory_space<vmem>>, vector<1x1024xf32>
    %cst_9 = arith.constant dense<0.000000e+00> : vector<16xf32>
    %9 = vector.multi_reduction <add>, %6, %cst_9 [1] : vector<16x1024xf32> to vector<16xf32>
    %10 = vector.shape_cast %9 : vector<16xf32> to vector<16x1xf32>
    %cst_10 = arith.constant 1.024000e+03 : f32
    %11 = vector.broadcast %cst_10 : f32 to vector<16x1xf32>
    %12 = arith.divf %10, %11 : vector<16x1xf32>
    %13 = vector.broadcast %12 : vector<16x1xf32> to vector<16x1024xf32>
    %14 = arith.subf %6, %13 : vector<16x1024xf32>
    %15 = arith.mulf %14, %14 : vector<16x1024xf32>
    %cst_11 = arith.constant dense<0.000000e+00> : vector<16xf32>
    %16 = vector.multi_reduction <add>, %15, %cst_11 [1] : vector<16x1024xf32> to vector<16xf32>
    %17 = vector.shape_cast %16 : vector<16xf32> to vector<16x1xf32>
    %cst_12 = arith.constant 1.024000e+03 : f32
    %18 = vector.broadcast %cst_12 : f32 to vector<16x1xf32>
    %19 = arith.divf %17, %18 : vector<16x1xf32>
    %20 = vector.broadcast %12 : vector<16x1xf32> to vector<16x1024xf32>
    %21 = arith.subf %6, %20 : vector<16x1024xf32>
    %cst_13 = arith.constant 9.99999974E-6 : f32
    %22 = vector.broadcast %cst_13 : f32 to vector<16x1xf32>
    %23 = arith.addf %19, %22 : vector<16x1xf32>
    %24 = math.rsqrt %23 : vector<16x1xf32>
    %25 = vector.broadcast %24 : vector<16x1xf32> to vector<16x1024xf32>
    %26 = arith.mulf %21, %25 : vector<16x1024xf32>
    %27 = vector.broadcast %7 : vector<1x1024xf32> to vector<16x1024xf32>
    %28 = arith.mulf %26, %27 : vector<16x1024xf32>
    %29 = vector.broadcast %8 : vector<1x1024xf32> to vector<16x1024xf32>
    %30 = arith.addf %28, %29 : vector<16x1024xf32>
    %cst_14 = arith.constant 5.000000e-01 : f32
    %31 = vector.broadcast %cst_14 : f32 to vector<16x1024xf32>
    %32 = arith.mulf %31, %30 : vector<16x1024xf32>
    %cst_15 = arith.constant 1.41421354 : f32
    %33 = vector.broadcast %cst_15 : f32 to vector<16x1024xf32>
    %34 = arith.divf %30, %33 : vector<16x1024xf32>
    %35 = math.erf %34 : vector<16x1024xf32>
    %cst_16 = arith.constant 1.000000e+00 : f32
    %36 = vector.broadcast %cst_16 : f32 to vector<16x1024xf32>
    %37 = arith.addf %36, %35 : vector<16x1024xf32>
    %38 = arith.mulf %32, %37 : vector<16x1024xf32>
    %c0_17 = arith.constant 0 : index
    %c0_18 = arith.constant 0 : index
    %39 = vector.load %arg6[%c0_17, %c0_18] : memref<1024x32xbf16, #tpu.memory_space<vmem>>, vector<1024x32xbf16>
    %40 = arith.truncf %38 : vector<16x1024xf32> to vector<16x1024xbf16>
    %cst_19 = arith.constant dense<0.000000e+00> : vector<16x32xf32>
    %41 = tpu.matmul %40, %39, %cst_19 {dimension_numbers = #tpu.dot_dimension_numbers<[1], [0], [0], [1], [0, 0, 1, 1], [], []>} : vector<16x1024xbf16>, vector<1024x32xbf16>, vector<16x32xf32> -> vector<16x32xf32>
    %c0_20 = arith.constant 0 : index
    %c0_21 = arith.constant 0 : index
    %42 = vector.load %arg7[%c0_20, %c0_21] : memref<1x32xf32, #tpu.memory_space<vmem>>, vector<1x32xf32>
    %43 = vector.broadcast %42 : vector<1x32xf32> to vector<16x32xf32>
    %44 = arith.addf %41, %43 : vector<16x32xf32>
    %c0_22 = arith.constant 0 : index
    %c0_23 = arith.constant 0 : index
    %45 = vector.load %arg8[%c0_22, %c0_23] : memref<1x32xf32, #tpu.memory_space<vmem>>, vector<1x32xf32>
    %c0_24 = arith.constant 0 : index
    %c0_25 = arith.constant 0 : index
    %46 = vector.load %arg9[%c0_24, %c0_25] : memref<1x32xf32, #tpu.memory_space<vmem>>, vector<1x32xf32>
    %cst_26 = arith.constant dense<0.000000e+00> : vector<16xf32>
    %47 = vector.multi_reduction <add>, %44, %cst_26 [1] : vector<16x32xf32> to vector<16xf32>
    %48 = vector.shape_cast %47 : vector<16xf32> to vector<16x1xf32>
    %cst_27 = arith.constant 3.200000e+01 : f32
    %49 = vector.broadcast %cst_27 : f32 to vector<16x1xf32>
    %50 = arith.divf %48, %49 : vector<16x1xf32>
    %51 = vector.broadcast %50 : vector<16x1xf32> to vector<16x32xf32>
    %52 = arith.subf %44, %51 : vector<16x32xf32>
    %53 = arith.mulf %52, %52 : vector<16x32xf32>
    %cst_28 = arith.constant dense<0.000000e+00> : vector<16xf32>
    %54 = vector.multi_reduction <add>, %53, %cst_28 [1] : vector<16x32xf32> to vector<16xf32>
    %55 = vector.shape_cast %54 : vector<16xf32> to vector<16x1xf32>
    %cst_29 = arith.constant 3.200000e+01 : f32
    %56 = vector.broadcast %cst_29 : f32 to vector<16x1xf32>
    %57 = arith.divf %55, %56 : vector<16x1xf32>
    %58 = vector.broadcast %50 : vector<16x1xf32> to vector<16x32xf32>
    %59 = arith.subf %44, %58 : vector<16x32xf32>
    %cst_30 = arith.constant 9.99999974E-6 : f32
    %60 = vector.broadcast %cst_30 : f32 to vector<16x1xf32>
    %61 = arith.addf %57, %60 : vector<16x1xf32>
    %62 = math.rsqrt %61 : vector<16x1xf32>
    %63 = vector.broadcast %62 : vector<16x1xf32> to vector<16x32xf32>
    %64 = arith.mulf %59, %63 : vector<16x32xf32>
    %65 = vector.broadcast %45 : vector<1x32xf32> to vector<16x32xf32>
    %66 = arith.mulf %64, %65 : vector<16x32xf32>
    %67 = vector.broadcast %46 : vector<1x32xf32> to vector<16x32xf32>
    %68 = arith.addf %66, %67 : vector<16x32xf32>
    %cst_31 = arith.constant 5.000000e-01 : f32
    %69 = vector.broadcast %cst_31 : f32 to vector<16x32xf32>
    %70 = arith.mulf %69, %68 : vector<16x32xf32>
    %cst_32 = arith.constant 1.41421354 : f32
    %71 = vector.broadcast %cst_32 : f32 to vector<16x32xf32>
    %72 = arith.divf %68, %71 : vector<16x32xf32>
    %73 = math.erf %72 : vector<16x32xf32>
    %cst_33 = arith.constant 1.000000e+00 : f32
    %74 = vector.broadcast %cst_33 : f32 to vector<16x32xf32>
    %75 = arith.addf %74, %73 : vector<16x32xf32>
    %76 = arith.mulf %70, %75 : vector<16x32xf32>
    %c0_34 = arith.constant 0 : index
    %c0_35 = arith.constant 0 : index
    %77 = vector.load %arg10[%c0_34, %c0_35] : memref<32x32xbf16, #tpu.memory_space<vmem>>, vector<32x32xbf16>
    %78 = arith.truncf %76 : vector<16x32xf32> to vector<16x32xbf16>
    %cst_36 = arith.constant dense<0.000000e+00> : vector<16x32xf32>
    %79 = tpu.matmul %78, %77, %cst_36 {dimension_numbers = #tpu.dot_dimension_numbers<[1], [0], [0], [1], [0, 0, 1, 1], [], []>} : vector<16x32xbf16>, vector<32x32xbf16>, vector<16x32xf32> -> vector<16x32xf32>
    %c0_37 = arith.constant 0 : index
    %c0_38 = arith.constant 0 : index
    %80 = vector.load %arg11[%c0_37, %c0_38] : memref<1x32xf32, #tpu.memory_space<vmem>>, vector<1x32xf32>
    %81 = vector.broadcast %80 : vector<1x32xf32> to vector<16x32xf32>
    %82 = arith.addf %79, %81 : vector<16x32xf32>
    %c0_39 = arith.constant 0 : index
    %c0_40 = arith.constant 0 : index
    %83 = vector.load %arg12[%c0_39, %c0_40] : memref<1x32xf32, #tpu.memory_space<vmem>>, vector<1x32xf32>
    %c0_41 = arith.constant 0 : index
    %c0_42 = arith.constant 0 : index
    %84 = vector.load %arg13[%c0_41, %c0_42] : memref<1x32xf32, #tpu.memory_space<vmem>>, vector<1x32xf32>
    %cst_43 = arith.constant dense<0.000000e+00> : vector<16xf32>
    %85 = vector.multi_reduction <add>, %82, %cst_43 [1] : vector<16x32xf32> to vector<16xf32>
    %86 = vector.shape_cast %85 : vector<16xf32> to vector<16x1xf32>
    %cst_44 = arith.constant 3.200000e+01 : f32
    %87 = vector.broadcast %cst_44 : f32 to vector<16x1xf32>
    %88 = arith.divf %86, %87 : vector<16x1xf32>
    %89 = vector.broadcast %88 : vector<16x1xf32> to vector<16x32xf32>
    %90 = arith.subf %82, %89 : vector<16x32xf32>
    %91 = arith.mulf %90, %90 : vector<16x32xf32>
    %cst_45 = arith.constant dense<0.000000e+00> : vector<16xf32>
    %92 = vector.multi_reduction <add>, %91, %cst_45 [1] : vector<16x32xf32> to vector<16xf32>
    %93 = vector.shape_cast %92 : vector<16xf32> to vector<16x1xf32>
    %cst_46 = arith.constant 3.200000e+01 : f32
    %94 = vector.broadcast %cst_46 : f32 to vector<16x1xf32>
    %95 = arith.divf %93, %94 : vector<16x1xf32>
    %96 = vector.broadcast %88 : vector<16x1xf32> to vector<16x32xf32>
    %97 = arith.subf %82, %96 : vector<16x32xf32>
    %cst_47 = arith.constant 9.99999974E-6 : f32
    %98 = vector.broadcast %cst_47 : f32 to vector<16x1xf32>
    %99 = arith.addf %95, %98 : vector<16x1xf32>
    %100 = math.rsqrt %99 : vector<16x1xf32>
    %101 = vector.broadcast %100 : vector<16x1xf32> to vector<16x32xf32>
    %102 = arith.mulf %97, %101 : vector<16x32xf32>
    %103 = vector.broadcast %83 : vector<1x32xf32> to vector<16x32xf32>
    %104 = arith.mulf %102, %103 : vector<16x32xf32>
    %105 = vector.broadcast %84 : vector<1x32xf32> to vector<16x32xf32>
    %106 = arith.addf %104, %105 : vector<16x32xf32>
    %cst_48 = arith.constant 5.000000e-01 : f32
    %107 = vector.broadcast %cst_48 : f32 to vector<16x32xf32>
    %108 = arith.mulf %107, %106 : vector<16x32xf32>
    %cst_49 = arith.constant 1.41421354 : f32
    %109 = vector.broadcast %cst_49 : f32 to vector<16x32xf32>
    %110 = arith.divf %106, %109 : vector<16x32xf32>
    %111 = math.erf %110 : vector<16x32xf32>
    %cst_50 = arith.constant 1.000000e+00 : f32
    %112 = vector.broadcast %cst_50 : f32 to vector<16x32xf32>
    %113 = arith.addf %112, %111 : vector<16x32xf32>
    %114 = arith.mulf %108, %113 : vector<16x32xf32>
    %c0_51 = arith.constant 0 : index
    %c0_52 = arith.constant 0 : index
    %115 = vector.load %arg14[%c0_51, %c0_52] : memref<32x32xbf16, #tpu.memory_space<vmem>>, vector<32x32xbf16>
    %116 = arith.truncf %114 : vector<16x32xf32> to vector<16x32xbf16>
    %cst_53 = arith.constant dense<0.000000e+00> : vector<16x32xf32>
    %117 = tpu.matmul %116, %115, %cst_53 {dimension_numbers = #tpu.dot_dimension_numbers<[1], [0], [0], [1], [0, 0, 1, 1], [], []>} : vector<16x32xbf16>, vector<32x32xbf16>, vector<16x32xf32> -> vector<16x32xf32>
    %c0_54 = arith.constant 0 : index
    %c0_55 = arith.constant 0 : index
    %118 = vector.load %arg15[%c0_54, %c0_55] : memref<1x32xf32, #tpu.memory_space<vmem>>, vector<1x32xf32>
    %119 = vector.broadcast %118 : vector<1x32xf32> to vector<16x32xf32>
    %120 = arith.addf %117, %119 : vector<16x32xf32>
    %c0_56 = arith.constant 0 : index
    %c0_57 = arith.constant 0 : index
    %121 = vector.load %arg16[%c0_56, %c0_57] : memref<16x32xf32, #tpu.memory_space<vmem>>, vector<16x32xf32>
    tpu.vector_store %arg16[%c0_56, %c0_57], %120 {strides = array<i32>} : memref<16x32xf32, #tpu.memory_space<vmem>>, vector<16x32xf32>,
    return
  }
  func.func @transform_0(%arg0: i32) -> (i32, i32) {
    %c0_i32 = arith.constant 0 : i32
    %c0_i32_0 = arith.constant 0 : i32
    return %arg0, %c0_i32 : i32, i32
  }
  func.func @transform_1(%arg0: i32) -> (i32, i32) {
    %c0_i32 = arith.constant 0 : i32
    %c0_i32_0 = arith.constant 0 : i32
    %c0_i32_1 = arith.constant 0 : i32
    return %c0_i32, %c0_i32_0 : i32, i32
  }
  func.func @transform_2(%arg0: i32) -> (i32, i32) {
    %c0_i32 = arith.constant 0 : i32
    %c0_i32_0 = arith.constant 0 : i32
    %c0_i32_1 = arith.constant 0 : i32
    return %c0_i32, %c0_i32_0 : i32, i32
  }
  func.func @transform_3(%arg0: i32) -> (i32, i32) {
    %c0_i32 = arith.constant 0 : i32
    %c0_i32_0 = arith.constant 0 : i32
    %c0_i32_1 = arith.constant 0 : i32
    return %c0_i32, %c0_i32_0 : i32, i32
  }
  func.func @transform_4(%arg0: i32) -> (i32, i32) {
    %c0_i32 = arith.constant 0 : i32
    %c0_i32_0 = arith.constant 0 : i32
    %c0_i32_1 = arith.constant 0 : i32
    return %c0_i32, %c0_i32_0 : i32, i32
  }
  func.func @transform_5(%arg0: i32) -> (i32, i32) {
    %c0_i32 = arith.constant 0 : i32
    %c0_i32_0 = arith.constant 0 : i32
    %c0_i32_1 = arith.constant 0 : i32
    return %c0_i32, %c0_i32_0 : i32, i32
  }
  func.func @transform_6(%arg0: i32) -> (i32, i32) {
    %c0_i32 = arith.constant 0 : i32
    %c0_i32_0 = arith.constant 0 : i32
    %c0_i32_1 = arith.constant 0 : i32
    return %c0_i32, %c0_i32_0 : i32, i32
  }
  func.func @transform_7(%arg0: i32) -> (i32, i32) {
    %c0_i32 = arith.constant 0 : i32
    %c0_i32_0 = arith.constant 0 : i32
    %c0_i32_1 = arith.constant 0 : i32
    return %c0_i32, %c0_i32_0 : i32, i32
  }
  func.func @transform_8(%arg0: i32) -> (i32, i32) {
    %c0_i32 = arith.constant 0 : i32
    %c0_i32_0 = arith.constant 0 : i32
    %c0_i32_1 = arith.constant 0 : i32
    return %c0_i32, %c0_i32_0 : i32, i32
  }
  func.func @transform_9(%arg0: i32) -> (i32, i32) {
    %c0_i32 = arith.constant 0 : i32
    %c0_i32_0 = arith.constant 0 : i32
    %c0_i32_1 = arith.constant 0 : i32
    return %c0_i32, %c0_i32_0 : i32, i32
  }
  func.func @transform_10(%arg0: i32) -> (i32, i32) {
    %c0_i32 = arith.constant 0 : i32
    %c0_i32_0 = arith.constant 0 : i32
    %c0_i32_1 = arith.constant 0 : i32
    return %c0_i32, %c0_i32_0 : i32, i32
  }
  func.func @transform_11(%arg0: i32) -> (i32, i32) {
    %c0_i32 = arith.constant 0 : i32
    %c0_i32_0 = arith.constant 0 : i32
    %c0_i32_1 = arith.constant 0 : i32
    return %c0_i32, %c0_i32_0 : i32, i32
  }
  func.func @transform_12(%arg0: i32) -> (i32, i32) {
    %c0_i32 = arith.constant 0 : i32
    %c0_i32_0 = arith.constant 0 : i32
    %c0_i32_1 = arith.constant 0 : i32
    return %c0_i32, %c0_i32_0 : i32, i32
  }
  func.func @transform_13(%arg0: i32) -> (i32, i32) {
    %c0_i32 = arith.constant 0 : i32
    %c0_i32_0 = arith.constant 0 : i32
    %c0_i32_1 = arith.constant 0 : i32
    return %c0_i32, %c0_i32_0 : i32, i32
  }
  func.func @transform_14(%arg0: i32) -> (i32, i32) {
    %c0_i32 = arith.constant 0 : i32
    %c0_i32_0 = arith.constant 0 : i32
    %c0_i32_1 = arith.constant 0 : i32
    return %c0_i32, %c0_i32_0 : i32, i32
  }
  func.func @transform_15(%arg0: i32) -> (i32, i32) {
    %c0_i32 = arith.constant 0 : i32
    %c0_i32_0 = arith.constant 0 : i32
    return %arg0, %c0_i32 : i32, i32
  }
}

module attributes {stable_mosaic.version = 11 : i64} {
  func.func @kernel(%arg0: i32, %arg1: i32, %arg2: memref<1x8x16xf32, #tpu.memory_space<vmem>>, %arg3: memref<8x32xf32, #tpu.memory_space<vmem>>, %arg4: memref<16x32xbf16, #tpu.memory_space<vmem>>, %arg5: memref<1x32xf32, #tpu.memory_space<vmem>>, %arg6: memref<1x32xf32, #tpu.memory_space<vmem>>, %arg7: memref<1x32xf32, #tpu.memory_space<vmem>>, %arg8: memref<1x8x32xf32, #tpu.memory_space<vmem>>) attributes {dimension_semantics = [#tpu.dimension_semantics<parallel>, #tpu.dimension_semantics<parallel>], iteration_bounds = array<i64: 2, 1>, scalar_prefetch = 0 : i64, scratch_operands = 0 : i64, tpu.core_type = #tpu.core_type<tc>, window_params = [{transform_indices = @transform_0, window_bounds = array<i64: 1, 8, 16>}, {transform_indices = @transform_1, window_bounds = array<i64: 8, 32>}, {pipeline_mode = #tpu.pipeline_mode<synchronous>, transform_indices = @transform_2, window_bounds = array<i64: 16, 32>}, {pipeline_mode = #tpu.pipeline_mode<synchronous>, transform_indices = @transform_3, window_bounds = array<i64: 1, 32>}, {pipeline_mode = #tpu.pipeline_mode<synchronous>, transform_indices = @transform_4, window_bounds = array<i64: 1, 32>}, {pipeline_mode = #tpu.pipeline_mode<synchronous>, transform_indices = @transform_5, window_bounds = array<i64: 1, 32>}, {transform_indices = @transform_6, window_bounds = array<i64: 1, 8, 32>}]} {
    %c0 = arith.constant 0 : index
    %c0_0 = arith.constant 0 : index
    %c0_1 = arith.constant 0 : index
    %0 = vector.load %arg2[%c0, %c0_0, %c0_1] : memref<1x8x16xf32, #tpu.memory_space<vmem>>, vector<1x8x16xf32>
    %1 = vector.shape_cast %0 : vector<1x8x16xf32> to vector<8x16xf32>
    %c0_2 = arith.constant 0 : index
    %c0_3 = arith.constant 0 : index
    %2 = vector.load %arg4[%c0_2, %c0_3] : memref<16x32xbf16, #tpu.memory_space<vmem>>, vector<16x32xbf16>
    %3 = arith.truncf %1 : vector<8x16xf32> to vector<8x16xbf16>
    %cst = arith.constant dense<0.000000e+00> : vector<8x32xf32>
    %4 = tpu.matmul %3, %2, %cst {dimension_numbers = #tpu.dot_dimension_numbers<[1], [0], [0], [1], [0, 0, 1, 1], [], []>} : vector<8x16xbf16>, vector<16x32xbf16>, vector<8x32xf32> -> vector<8x32xf32>
    %c0_4 = arith.constant 0 : index
    %c0_5 = arith.constant 0 : index
    %5 = vector.load %arg5[%c0_4, %c0_5] : memref<1x32xf32, #tpu.memory_space<vmem>>, vector<1x32xf32>
    %6 = vector.broadcast %5 : vector<1x32xf32> to vector<8x32xf32>
    %7 = arith.addf %4, %6 : vector<8x32xf32>
    %cst_6 = arith.constant 5.000000e-01 : f32
    %8 = vector.broadcast %cst_6 : f32 to vector<8x32xf32>
    %9 = arith.mulf %8, %7 : vector<8x32xf32>
    %cst_7 = arith.constant 1.41421354 : f32
    %10 = vector.broadcast %cst_7 : f32 to vector<8x32xf32>
    %11 = arith.divf %7, %10 : vector<8x32xf32>
    %12 = math.erf %11 : vector<8x32xf32>
    %cst_8 = arith.constant 1.000000e+00 : f32
    %13 = vector.broadcast %cst_8 : f32 to vector<8x32xf32>
    %14 = arith.addf %13, %12 : vector<8x32xf32>
    %15 = arith.mulf %9, %14 : vector<8x32xf32>
    %c0_9 = arith.constant 0 : index
    %c0_10 = arith.constant 0 : index
    %16 = vector.load %arg6[%c0_9, %c0_10] : memref<1x32xf32, #tpu.memory_space<vmem>>, vector<1x32xf32>
    %c0_11 = arith.constant 0 : index
    %c0_12 = arith.constant 0 : index
    %17 = vector.load %arg7[%c0_11, %c0_12] : memref<1x32xf32, #tpu.memory_space<vmem>>, vector<1x32xf32>
    %cst_13 = arith.constant dense<0.000000e+00> : vector<8xf32>
    %18 = vector.multi_reduction <add>, %15, %cst_13 [1] : vector<8x32xf32> to vector<8xf32>
    %19 = vector.shape_cast %18 : vector<8xf32> to vector<8x1xf32>
    %cst_14 = arith.constant 3.200000e+01 : f32
    %20 = vector.broadcast %cst_14 : f32 to vector<8x1xf32>
    %21 = arith.divf %19, %20 : vector<8x1xf32>
    %22 = vector.broadcast %21 : vector<8x1xf32> to vector<8x32xf32>
    %23 = arith.subf %15, %22 : vector<8x32xf32>
    %24 = arith.mulf %23, %23 : vector<8x32xf32>
    %cst_15 = arith.constant dense<0.000000e+00> : vector<8xf32>
    %25 = vector.multi_reduction <add>, %24, %cst_15 [1] : vector<8x32xf32> to vector<8xf32>
    %26 = vector.shape_cast %25 : vector<8xf32> to vector<8x1xf32>
    %cst_16 = arith.constant 3.200000e+01 : f32
    %27 = vector.broadcast %cst_16 : f32 to vector<8x1xf32>
    %28 = arith.divf %26, %27 : vector<8x1xf32>
    %29 = vector.broadcast %21 : vector<8x1xf32> to vector<8x32xf32>
    %30 = arith.subf %15, %29 : vector<8x32xf32>
    %cst_17 = arith.constant 9.99999974E-6 : f32
    %31 = vector.broadcast %cst_17 : f32 to vector<8x1xf32>
    %32 = arith.addf %28, %31 : vector<8x1xf32>
    %33 = math.rsqrt %32 : vector<8x1xf32>
    %34 = vector.broadcast %33 : vector<8x1xf32> to vector<8x32xf32>
    %35 = arith.mulf %30, %34 : vector<8x32xf32>
    %36 = vector.broadcast %16 : vector<1x32xf32> to vector<8x32xf32>
    %37 = arith.mulf %35, %36 : vector<8x32xf32>
    %38 = vector.broadcast %17 : vector<1x32xf32> to vector<8x32xf32>
    %39 = arith.addf %37, %38 : vector<8x32xf32>
    %cst_18 = arith.constant 5.65685415 : f32
    %40 = vector.broadcast %cst_18 : f32 to vector<8x32xf32>
    %41 = arith.mulf %39, %40 : vector<8x32xf32>
    %c0_19 = arith.constant 0 : index
    %c0_20 = arith.constant 0 : index
    %42 = vector.load %arg3[%c0_19, %c0_20] : memref<8x32xf32, #tpu.memory_space<vmem>>, vector<8x32xf32>
    %43 = arith.addf %41, %42 : vector<8x32xf32>
    %c0_21 = arith.constant 0 : index
    %c0_22 = arith.constant 0 : index
    %c0_23 = arith.constant 0 : index
    %44 = vector.load %arg8[%c0_21, %c0_22, %c0_23] : memref<1x8x32xf32, #tpu.memory_space<vmem>>, vector<1x8x32xf32>
    %45 = vector.shape_cast %44 : vector<1x8x32xf32> to vector<8x32xf32>
    %46 = vector.shape_cast %43 : vector<8x32xf32> to vector<1x8x32xf32>
    tpu.vector_store %arg8[%c0_21, %c0_22, %c0_23], %46 {strides = array<i32>} : memref<1x8x32xf32, #tpu.memory_space<vmem>>, vector<1x8x32xf32>,
    return
  }
  func.func @transform_0(%arg0: i32, %arg1: i32) -> (i32, i32, i32) {
    %c0_i32 = arith.constant 0 : i32
    %c0_i32_0 = arith.constant 0 : i32
    return %arg0, %arg1, %c0_i32 : i32, i32, i32
  }
  func.func @transform_1(%arg0: i32, %arg1: i32) -> (i32, i32) {
    %c0_i32 = arith.constant 0 : i32
    %c0_i32_0 = arith.constant 0 : i32
    return %arg1, %c0_i32 : i32, i32
  }
  func.func @transform_2(%arg0: i32, %arg1: i32) -> (i32, i32) {
    %c0_i32 = arith.constant 0 : i32
    %c0_i32_0 = arith.constant 0 : i32
    %c0_i32_1 = arith.constant 0 : i32
    return %c0_i32, %c0_i32_0 : i32, i32
  }
  func.func @transform_3(%arg0: i32, %arg1: i32) -> (i32, i32) {
    %c0_i32 = arith.constant 0 : i32
    %c0_i32_0 = arith.constant 0 : i32
    %c0_i32_1 = arith.constant 0 : i32
    return %c0_i32, %c0_i32_0 : i32, i32
  }
  func.func @transform_4(%arg0: i32, %arg1: i32) -> (i32, i32) {
    %c0_i32 = arith.constant 0 : i32
    %c0_i32_0 = arith.constant 0 : i32
    %c0_i32_1 = arith.constant 0 : i32
    return %c0_i32, %c0_i32_0 : i32, i32
  }
  func.func @transform_5(%arg0: i32, %arg1: i32) -> (i32, i32) {
    %c0_i32 = arith.constant 0 : i32
    %c0_i32_0 = arith.constant 0 : i32
    %c0_i32_1 = arith.constant 0 : i32
    return %c0_i32, %c0_i32_0 : i32, i32
  }
  func.func @transform_6(%arg0: i32, %arg1: i32) -> (i32, i32, i32) {
    %c0_i32 = arith.constant 0 : i32
    %c0_i32_0 = arith.constant 0 : i32
    return %arg0, %arg1, %c0_i32 : i32, i32, i32
  }
}

module attributes {stable_mosaic.version = 11 : i64} {
  func.func @kernel(%arg0: i32, %arg1: memref<1x8x32xf32, #tpu.memory_space<vmem>>, %arg2: memref<1x1x8xf32, #tpu.memory_space<vmem>>, %arg3: memref<4x32x8xbf16, #tpu.memory_space<vmem>>, %arg4: memref<4x32x8xbf16, #tpu.memory_space<vmem>>, %arg5: memref<4x32x8xbf16, #tpu.memory_space<vmem>>, %arg6: memref<4x1x8xf32, #tpu.memory_space<vmem>>, %arg7: memref<4x1x8xf32, #tpu.memory_space<vmem>>, %arg8: memref<4x1x8xf32, #tpu.memory_space<vmem>>, %arg9: memref<4x8x32xbf16, #tpu.memory_space<vmem>>, %arg10: memref<1x32xf32, #tpu.memory_space<vmem>>, %arg11: memref<1x32xf32, #tpu.memory_space<vmem>>, %arg12: memref<1x32xf32, #tpu.memory_space<vmem>>, %arg13: memref<32x64xbf16, #tpu.memory_space<vmem>>, %arg14: memref<1x64xf32, #tpu.memory_space<vmem>>, %arg15: memref<64x32xbf16, #tpu.memory_space<vmem>>, %arg16: memref<1x32xf32, #tpu.memory_space<vmem>>, %arg17: memref<1x32xf32, #tpu.memory_space<vmem>>, %arg18: memref<1x32xf32, #tpu.memory_space<vmem>>, %arg19: memref<1x8x32xf32, #tpu.memory_space<vmem>>) attributes {dimension_semantics = [#tpu.dimension_semantics<parallel>], iteration_bounds = array<i64: 2>, scalar_prefetch = 0 : i64, scratch_operands = 0 : i64, tpu.core_type = #tpu.core_type<tc>, window_params = [{transform_indices = @transform_0, window_bounds = array<i64: 1, 8, 32>}, {transform_indices = @transform_1, window_bounds = array<i64: 1, 1, 8>}, {pipeline_mode = #tpu.pipeline_mode<synchronous>, transform_indices = @transform_2, window_bounds = array<i64: 4, 32, 8>}, {pipeline_mode = #tpu.pipeline_mode<synchronous>, transform_indices = @transform_3, window_bounds = array<i64: 4, 32, 8>}, {pipeline_mode = #tpu.pipeline_mode<synchronous>, transform_indices = @transform_4, window_bounds = array<i64: 4, 32, 8>}, {pipeline_mode = #tpu.pipeline_mode<synchronous>, transform_indices = @transform_5, window_bounds = array<i64: 4, 1, 8>}, {pipeline_mode = #tpu.pipeline_mode<synchronous>, transform_indices = @transform_6, window_bounds = array<i64: 4, 1, 8>}, {pipeline_mode = #tpu.pipeline_mode<synchronous>, transform_indices = @transform_7, window_bounds = array<i64: 4, 1, 8>}, {pipeline_mode = #tpu.pipeline_mode<synchronous>, transform_indices = @transform_8, window_bounds = array<i64: 4, 8, 32>}, {pipeline_mode = #tpu.pipeline_mode<synchronous>, transform_indices = @transform_9, window_bounds = array<i64: 1, 32>}, {pipeline_mode = #tpu.pipeline_mode<synchronous>, transform_indices = @transform_10, window_bounds = array<i64: 1, 32>}, {pipeline_mode = #tpu.pipeline_mode<synchronous>, transform_indices = @transform_11, window_bounds = array<i64: 1, 32>}, {pipeline_mode = #tpu.pipeline_mode<synchronous>, transform_indices = @transform_12, window_bounds = array<i64: 32, 64>}, {pipeline_mode = #tpu.pipeline_mode<synchronous>, transform_indices = @transform_13, window_bounds = array<i64: 1, 64>}, {pipeline_mode = #tpu.pipeline_mode<synchronous>, transform_indices = @transform_14, window_bounds = array<i64: 64, 32>}, {pipeline_mode = #tpu.pipeline_mode<synchronous>, transform_indices = @transform_15, window_bounds = array<i64: 1, 32>}, {pipeline_mode = #tpu.pipeline_mode<synchronous>, transform_indices = @transform_16, window_bounds = array<i64: 1, 32>}, {pipeline_mode = #tpu.pipeline_mode<synchronous>, transform_indices = @transform_17, window_bounds = array<i64: 1, 32>}, {transform_indices = @transform_18, window_bounds = array<i64: 1, 8, 32>}]} {
    %c0 = arith.constant 0 : index
    %c0_0 = arith.constant 0 : index
    %c0_1 = arith.constant 0 : index
    %0 = vector.load %arg1[%c0, %c0_0, %c0_1] : memref<1x8x32xf32, #tpu.memory_space<vmem>>, vector<1x8x32xf32>
    %1 = vector.shape_cast %0 : vector<1x8x32xf32> to vector<8x32xf32>
    %c0_2 = arith.constant 0 : index
    %c0_3 = arith.constant 0 : index
    %c0_4 = arith.constant 0 : index
    %2 = vector.load %arg2[%c0_2, %c0_3, %c0_4] : memref<1x1x8xf32, #tpu.memory_space<vmem>>, vector<1x1x8xf32>
    %3 = vector.shape_cast %2 : vector<1x1x8xf32> to vector<1x8xf32>
    %c0_5 = arith.constant 0 : index
    %c0_6 = arith.constant 0 : index
    %c0_7 = arith.constant 0 : index
    %4 = vector.load %arg3[%c0_5, %c0_6, %c0_7] : memref<4x32x8xbf16, #tpu.memory_space<vmem>>, vector<1x32x8xbf16>
    %5 = vector.shape_cast %4 : vector<1x32x8xbf16> to vector<32x8xbf16>
    %6 = arith.truncf %1 : vector<8x32xf32> to vector<8x32xbf16>
    %cst = arith.constant dense<0.000000e+00> : vector<8x8xf32>
    %7 = tpu.matmul %6, %5, %cst {dimension_numbers = #tpu.dot_dimension_numbers<[1], [0], [0], [1], [0, 0, 1, 1], [], []>} : vector<8x32xbf16>, vector<32x8xbf16>, vector<8x8xf32> -> vector<8x8xf32>
    %c0_8 = arith.constant 0 : index
    %c0_9 = arith.constant 0 : index
    %c0_10 = arith.constant 0 : index
    %8 = vector.load %arg6[%c0_8, %c0_9, %c0_10] : memref<4x1x8xf32, #tpu.memory_space<vmem>>, vector<1x1x8xf32>
    %9 = vector.shape_cast %8 : vector<1x1x8xf32> to vector<1x8xf32>
    %10 = vector.broadcast %9 : vector<1x8xf32> to vector<8x8xf32>
    %11 = arith.addf %7, %10 : vector<8x8xf32>
    %c0_11 = arith.constant 0 : index
    %c0_12 = arith.constant 0 : index
    %c0_13 = arith.constant 0 : index
    %12 = vector.load %arg4[%c0_11, %c0_12, %c0_13] : memref<4x32x8xbf16, #tpu.memory_space<vmem>>, vector<1x32x8xbf16>
    %13 = vector.shape_cast %12 : vector<1x32x8xbf16> to vector<32x8xbf16>
    %14 = arith.truncf %1 : vector<8x32xf32> to vector<8x32xbf16>
    %cst_14 = arith.constant dense<0.000000e+00> : vector<8x8xf32>
    %15 = tpu.matmul %14, %13, %cst_14 {dimension_numbers = #tpu.dot_dimension_numbers<[1], [0], [0], [1], [0, 0, 1, 1], [], []>} : vector<8x32xbf16>, vector<32x8xbf16>, vector<8x8xf32> -> vector<8x8xf32>
    %c0_15 = arith.constant 0 : index
    %c0_16 = arith.constant 0 : index
    %c0_17 = arith.constant 0 : index
    %16 = vector.load %arg7[%c0_15, %c0_16, %c0_17] : memref<4x1x8xf32, #tpu.memory_space<vmem>>, vector<1x1x8xf32>
    %17 = vector.shape_cast %16 : vector<1x1x8xf32> to vector<1x8xf32>
    %18 = vector.broadcast %17 : vector<1x8xf32> to vector<8x8xf32>
    %19 = arith.addf %15, %18 : vector<8x8xf32>
    %c0_18 = arith.constant 0 : index
    %c0_19 = arith.constant 0 : index
    %c0_20 = arith.constant 0 : index
    %20 = vector.load %arg5[%c0_18, %c0_19, %c0_20] : memref<4x32x8xbf16, #tpu.memory_space<vmem>>, vector<1x32x8xbf16>
    %21 = vector.shape_cast %20 : vector<1x32x8xbf16> to vector<32x8xbf16>
    %22 = arith.truncf %1 : vector<8x32xf32> to vector<8x32xbf16>
    %cst_21 = arith.constant dense<0.000000e+00> : vector<8x8xf32>
    %23 = tpu.matmul %22, %21, %cst_21 {dimension_numbers = #tpu.dot_dimension_numbers<[1], [0], [0], [1], [0, 0, 1, 1], [], []>} : vector<8x32xbf16>, vector<32x8xbf16>, vector<8x8xf32> -> vector<8x8xf32>
    %c0_22 = arith.constant 0 : index
    %c0_23 = arith.constant 0 : index
    %c0_24 = arith.constant 0 : index
    %24 = vector.load %arg8[%c0_22, %c0_23, %c0_24] : memref<4x1x8xf32, #tpu.memory_space<vmem>>, vector<1x1x8xf32>
    %25 = vector.shape_cast %24 : vector<1x1x8xf32> to vector<1x8xf32>
    %26 = vector.broadcast %25 : vector<1x8xf32> to vector<8x8xf32>
    %27 = arith.addf %23, %26 : vector<8x8xf32>
    %28 = arith.truncf %11 : vector<8x8xf32> to vector<8x8xbf16>
    %29 = arith.truncf %19 : vector<8x8xf32> to vector<8x8xbf16>
    %cst_25 = arith.constant dense<0.000000e+00> : vector<8x8xf32>
    %30 = tpu.matmul %28, %29, %cst_25 {dimension_numbers = #tpu.dot_dimension_numbers<[1], [1], [0], [0], [0, 0, 1, 0], [], []>} : vector<8x8xbf16>, vector<8x8xbf16>, vector<8x8xf32> -> vector<8x8xf32>
    %cst_26 = arith.constant 0.353553385 : f32
    %31 = vector.broadcast %cst_26 : f32 to vector<8x8xf32>
    %32 = arith.mulf %30, %31 : vector<8x8xf32>
    %33 = vector.broadcast %3 : vector<1x8xf32> to vector<8x8xf32>
    %34 = arith.addf %32, %33 : vector<8x8xf32>
    %cst_27 = arith.constant dense<0xFF800000> : vector<8xf32>
    %35 = vector.multi_reduction <maximumf>, %34, %cst_27 [1] : vector<8x8xf32> to vector<8xf32>
    %36 = vector.shape_cast %35 : vector<8xf32> to vector<8x1xf32>
    %37 = vector.broadcast %36 : vector<8x1xf32> to vector<8x8xf32>
    %38 = arith.subf %34, %37 : vector<8x8xf32>
    %39 = math.exp %38 : vector<8x8xf32>
    %cst_28 = arith.constant dense<0.000000e+00> : vector<8xf32>
    %40 = vector.multi_reduction <add>, %39, %cst_28 [1] : vector<8x8xf32> to vector<8xf32>
    %41 = vector.shape_cast %40 : vector<8xf32> to vector<8x1xf32>
    %42 = tpu.reciprocal %41 {approx = true} : vector<8x1xf32> -> vector<8x1xf32>
    %43 = vector.broadcast %42 : vector<8x1xf32> to vector<8x8xf32>
    %44 = arith.mulf %39, %43 : vector<8x8xf32>
    %45 = arith.truncf %44 : vector<8x8xf32> to vector<8x8xbf16>
    %46 = arith.truncf %27 : vector<8x8xf32> to vector<8x8xbf16>
    %cst_29 = arith.constant dense<0.000000e+00> : vector<8x8xf32>
    %47 = tpu.matmul %45, %46, %cst_29 {dimension_numbers = #tpu.dot_dimension_numbers<[1], [0], [0], [1], [0, 0, 1, 1], [], []>} : vector<8x8xbf16>, vector<8x8xbf16>, vector<8x8xf32> -> vector<8x8xf32>
    %c0_30 = arith.constant 0 : index
    %c0_31 = arith.constant 0 : index
    %c0_32 = arith.constant 0 : index
    %48 = vector.load %arg9[%c0_30, %c0_31, %c0_32] : memref<4x8x32xbf16, #tpu.memory_space<vmem>>, vector<1x8x32xbf16>
    %49 = vector.shape_cast %48 : vector<1x8x32xbf16> to vector<8x32xbf16>
    %50 = arith.truncf %47 : vector<8x8xf32> to vector<8x8xbf16>
    %cst_33 = arith.constant dense<0.000000e+00> : vector<8x32xf32>
    %51 = tpu.matmul %50, %49, %cst_33 {dimension_numbers = #tpu.dot_dimension_numbers<[1], [0], [0], [1], [0, 0, 1, 1], [], []>} : vector<8x8xbf16>, vector<8x32xbf16>, vector<8x32xf32> -> vector<8x32xf32>
    %c1 = arith.constant 1 : index
    %c0_34 = arith.constant 0 : index
    %c0_35 = arith.constant 0 : index
    %52 = vector.load %arg3[%c1, %c0_34, %c0_35] : memref<4x32x8xbf16, #tpu.memory_space<vmem>>, vector<1x32x8xbf16>
    %53 = vector.shape_cast %52 : vector<1x32x8xbf16> to vector<32x8xbf16>
    %54 = arith.truncf %1 : vector<8x32xf32> to vector<8x32xbf16>
    %cst_36 = arith.constant dense<0.000000e+00> : vector<8x8xf32>
    %55 = tpu.matmul %54, %53, %cst_36 {dimension_numbers = #tpu.dot_dimension_numbers<[1], [0], [0], [1], [0, 0, 1, 1], [], []>} : vector<8x32xbf16>, vector<32x8xbf16>, vector<8x8xf32> -> vector<8x8xf32>
    %c1_37 = arith.constant 1 : index
    %c0_38 = arith.constant 0 : index
    %c0_39 = arith.constant 0 : index
    %56 = vector.load %arg6[%c1_37, %c0_38, %c0_39] : memref<4x1x8xf32, #tpu.memory_space<vmem>>, vector<1x1x8xf32>
    %57 = vector.shape_cast %56 : vector<1x1x8xf32> to vector<1x8xf32>
    %58 = vector.broadcast %57 : vector<1x8xf32> to vector<8x8xf32>
    %59 = arith.addf %55, %58 : vector<8x8xf32>
    %c1_40 = arith.constant 1 : index
    %c0_41 = arith.constant 0 : index
    %c0_42 = arith.constant 0 : index
    %60 = vector.load %arg4[%c1_40, %c0_41, %c0_42] : memref<4x32x8xbf16, #tpu.memory_space<vmem>>, vector<1x32x8xbf16>
    %61 = vector.shape_cast %60 : vector<1x32x8xbf16> to vector<32x8xbf16>
    %62 = arith.truncf %1 : vector<8x32xf32> to vector<8x32xbf16>
    %cst_43 = arith.constant dense<0.000000e+00> : vector<8x8xf32>
    %63 = tpu.matmul %62, %61, %cst_43 {dimension_numbers = #tpu.dot_dimension_numbers<[1], [0], [0], [1], [0, 0, 1, 1], [], []>} : vector<8x32xbf16>, vector<32x8xbf16>, vector<8x8xf32> -> vector<8x8xf32>
    %c1_44 = arith.constant 1 : index
    %c0_45 = arith.constant 0 : index
    %c0_46 = arith.constant 0 : index
    %64 = vector.load %arg7[%c1_44, %c0_45, %c0_46] : memref<4x1x8xf32, #tpu.memory_space<vmem>>, vector<1x1x8xf32>
    %65 = vector.shape_cast %64 : vector<1x1x8xf32> to vector<1x8xf32>
    %66 = vector.broadcast %65 : vector<1x8xf32> to vector<8x8xf32>
    %67 = arith.addf %63, %66 : vector<8x8xf32>
    %c1_47 = arith.constant 1 : index
    %c0_48 = arith.constant 0 : index
    %c0_49 = arith.constant 0 : index
    %68 = vector.load %arg5[%c1_47, %c0_48, %c0_49] : memref<4x32x8xbf16, #tpu.memory_space<vmem>>, vector<1x32x8xbf16>
    %69 = vector.shape_cast %68 : vector<1x32x8xbf16> to vector<32x8xbf16>
    %70 = arith.truncf %1 : vector<8x32xf32> to vector<8x32xbf16>
    %cst_50 = arith.constant dense<0.000000e+00> : vector<8x8xf32>
    %71 = tpu.matmul %70, %69, %cst_50 {dimension_numbers = #tpu.dot_dimension_numbers<[1], [0], [0], [1], [0, 0, 1, 1], [], []>} : vector<8x32xbf16>, vector<32x8xbf16>, vector<8x8xf32> -> vector<8x8xf32>
    %c1_51 = arith.constant 1 : index
    %c0_52 = arith.constant 0 : index
    %c0_53 = arith.constant 0 : index
    %72 = vector.load %arg8[%c1_51, %c0_52, %c0_53] : memref<4x1x8xf32, #tpu.memory_space<vmem>>, vector<1x1x8xf32>
    %73 = vector.shape_cast %72 : vector<1x1x8xf32> to vector<1x8xf32>
    %74 = vector.broadcast %73 : vector<1x8xf32> to vector<8x8xf32>
    %75 = arith.addf %71, %74 : vector<8x8xf32>
    %76 = arith.truncf %59 : vector<8x8xf32> to vector<8x8xbf16>
    %77 = arith.truncf %67 : vector<8x8xf32> to vector<8x8xbf16>
    %cst_54 = arith.constant dense<0.000000e+00> : vector<8x8xf32>
    %78 = tpu.matmul %76, %77, %cst_54 {dimension_numbers = #tpu.dot_dimension_numbers<[1], [1], [0], [0], [0, 0, 1, 0], [], []>} : vector<8x8xbf16>, vector<8x8xbf16>, vector<8x8xf32> -> vector<8x8xf32>
    %cst_55 = arith.constant 0.353553385 : f32
    %79 = vector.broadcast %cst_55 : f32 to vector<8x8xf32>
    %80 = arith.mulf %78, %79 : vector<8x8xf32>
    %81 = vector.broadcast %3 : vector<1x8xf32> to vector<8x8xf32>
    %82 = arith.addf %80, %81 : vector<8x8xf32>
    %cst_56 = arith.constant dense<0xFF800000> : vector<8xf32>
    %83 = vector.multi_reduction <maximumf>, %82, %cst_56 [1] : vector<8x8xf32> to vector<8xf32>
    %84 = vector.shape_cast %83 : vector<8xf32> to vector<8x1xf32>
    %85 = vector.broadcast %84 : vector<8x1xf32> to vector<8x8xf32>
    %86 = arith.subf %82, %85 : vector<8x8xf32>
    %87 = math.exp %86 : vector<8x8xf32>
    %cst_57 = arith.constant dense<0.000000e+00> : vector<8xf32>
    %88 = vector.multi_reduction <add>, %87, %cst_57 [1] : vector<8x8xf32> to vector<8xf32>
    %89 = vector.shape_cast %88 : vector<8xf32> to vector<8x1xf32>
    %90 = tpu.reciprocal %89 {approx = true} : vector<8x1xf32> -> vector<8x1xf32>
    %91 = vector.broadcast %90 : vector<8x1xf32> to vector<8x8xf32>
    %92 = arith.mulf %87, %91 : vector<8x8xf32>
    %93 = arith.truncf %92 : vector<8x8xf32> to vector<8x8xbf16>
    %94 = arith.truncf %75 : vector<8x8xf32> to vector<8x8xbf16>
    %cst_58 = arith.constant dense<0.000000e+00> : vector<8x8xf32>
    %95 = tpu.matmul %93, %94, %cst_58 {dimension_numbers = #tpu.dot_dimension_numbers<[1], [0], [0], [1], [0, 0, 1, 1], [], []>} : vector<8x8xbf16>, vector<8x8xbf16>, vector<8x8xf32> -> vector<8x8xf32>
    %c1_59 = arith.constant 1 : index
    %c0_60 = arith.constant 0 : index
    %c0_61 = arith.constant 0 : index
    %96 = vector.load %arg9[%c1_59, %c0_60, %c0_61] : memref<4x8x32xbf16, #tpu.memory_space<vmem>>, vector<1x8x32xbf16>
    %97 = vector.shape_cast %96 : vector<1x8x32xbf16> to vector<8x32xbf16>
    %98 = arith.truncf %95 : vector<8x8xf32> to vector<8x8xbf16>
    %cst_62 = arith.constant dense<0.000000e+00> : vector<8x32xf32>
    %99 = tpu.matmul %98, %97, %cst_62 {dimension_numbers = #tpu.dot_dimension_numbers<[1], [0], [0], [1], [0, 0, 1, 1], [], []>} : vector<8x8xbf16>, vector<8x32xbf16>, vector<8x32xf32> -> vector<8x32xf32>
    %100 = arith.addf %51, %99 : vector<8x32xf32>
    %c2 = arith.constant 2 : index
    %c0_63 = arith.constant 0 : index
    %c0_64 = arith.constant 0 : index
    %101 = vector.load %arg3[%c2, %c0_63, %c0_64] : memref<4x32x8xbf16, #tpu.memory_space<vmem>>, vector<1x32x8xbf16>
    %102 = vector.shape_cast %101 : vector<1x32x8xbf16> to vector<32x8xbf16>
    %103 = arith.truncf %1 : vector<8x32xf32> to vector<8x32xbf16>
    %cst_65 = arith.constant dense<0.000000e+00> : vector<8x8xf32>
    %104 = tpu.matmul %103, %102, %cst_65 {dimension_numbers = #tpu.dot_dimension_numbers<[1], [0], [0], [1], [0, 0, 1, 1], [], []>} : vector<8x32xbf16>, vector<32x8xbf16>, vector<8x8xf32> -> vector<8x8xf32>
    %c2_66 = arith.constant 2 : index
    %c0_67 = arith.constant 0 : index
    %c0_68 = arith.constant 0 : index
    %105 = vector.load %arg6[%c2_66, %c0_67, %c0_68] : memref<4x1x8xf32, #tpu.memory_space<vmem>>, vector<1x1x8xf32>
    %106 = vector.shape_cast %105 : vector<1x1x8xf32> to vector<1x8xf32>
    %107 = vector.broadcast %106 : vector<1x8xf32> to vector<8x8xf32>
    %108 = arith.addf %104, %107 : vector<8x8xf32>
    %c2_69 = arith.constant 2 : index
    %c0_70 = arith.constant 0 : index
    %c0_71 = arith.constant 0 : index
    %109 = vector.load %arg4[%c2_69, %c0_70, %c0_71] : memref<4x32x8xbf16, #tpu.memory_space<vmem>>, vector<1x32x8xbf16>
    %110 = vector.shape_cast %109 : vector<1x32x8xbf16> to vector<32x8xbf16>
    %111 = arith.truncf %1 : vector<8x32xf32> to vector<8x32xbf16>
    %cst_72 = arith.constant dense<0.000000e+00> : vector<8x8xf32>
    %112 = tpu.matmul %111, %110, %cst_72 {dimension_numbers = #tpu.dot_dimension_numbers<[1], [0], [0], [1], [0, 0, 1, 1], [], []>} : vector<8x32xbf16>, vector<32x8xbf16>, vector<8x8xf32> -> vector<8x8xf32>
    %c2_73 = arith.constant 2 : index
    %c0_74 = arith.constant 0 : index
    %c0_75 = arith.constant 0 : index
    %113 = vector.load %arg7[%c2_73, %c0_74, %c0_75] : memref<4x1x8xf32, #tpu.memory_space<vmem>>, vector<1x1x8xf32>
    %114 = vector.shape_cast %113 : vector<1x1x8xf32> to vector<1x8xf32>
    %115 = vector.broadcast %114 : vector<1x8xf32> to vector<8x8xf32>
    %116 = arith.addf %112, %115 : vector<8x8xf32>
    %c2_76 = arith.constant 2 : index
    %c0_77 = arith.constant 0 : index
    %c0_78 = arith.constant 0 : index
    %117 = vector.load %arg5[%c2_76, %c0_77, %c0_78] : memref<4x32x8xbf16, #tpu.memory_space<vmem>>, vector<1x32x8xbf16>
    %118 = vector.shape_cast %117 : vector<1x32x8xbf16> to vector<32x8xbf16>
    %119 = arith.truncf %1 : vector<8x32xf32> to vector<8x32xbf16>
    %cst_79 = arith.constant dense<0.000000e+00> : vector<8x8xf32>
    %120 = tpu.matmul %119, %118, %cst_79 {dimension_numbers = #tpu.dot_dimension_numbers<[1], [0], [0], [1], [0, 0, 1, 1], [], []>} : vector<8x32xbf16>, vector<32x8xbf16>, vector<8x8xf32> -> vector<8x8xf32>
    %c2_80 = arith.constant 2 : index
    %c0_81 = arith.constant 0 : index
    %c0_82 = arith.constant 0 : index
    %121 = vector.load %arg8[%c2_80, %c0_81, %c0_82] : memref<4x1x8xf32, #tpu.memory_space<vmem>>, vector<1x1x8xf32>
    %122 = vector.shape_cast %121 : vector<1x1x8xf32> to vector<1x8xf32>
    %123 = vector.broadcast %122 : vector<1x8xf32> to vector<8x8xf32>
    %124 = arith.addf %120, %123 : vector<8x8xf32>
    %125 = arith.truncf %108 : vector<8x8xf32> to vector<8x8xbf16>
    %126 = arith.truncf %116 : vector<8x8xf32> to vector<8x8xbf16>
    %cst_83 = arith.constant dense<0.000000e+00> : vector<8x8xf32>
    %127 = tpu.matmul %125, %126, %cst_83 {dimension_numbers = #tpu.dot_dimension_numbers<[1], [1], [0], [0], [0, 0, 1, 0], [], []>} : vector<8x8xbf16>, vector<8x8xbf16>, vector<8x8xf32> -> vector<8x8xf32>
    %cst_84 = arith.constant 0.353553385 : f32
    %128 = vector.broadcast %cst_84 : f32 to vector<8x8xf32>
    %129 = arith.mulf %127, %128 : vector<8x8xf32>
    %130 = vector.broadcast %3 : vector<1x8xf32> to vector<8x8xf32>
    %131 = arith.addf %129, %130 : vector<8x8xf32>
    %cst_85 = arith.constant dense<0xFF800000> : vector<8xf32>
    %132 = vector.multi_reduction <maximumf>, %131, %cst_85 [1] : vector<8x8xf32> to vector<8xf32>
    %133 = vector.shape_cast %132 : vector<8xf32> to vector<8x1xf32>
    %134 = vector.broadcast %133 : vector<8x1xf32> to vector<8x8xf32>
    %135 = arith.subf %131, %134 : vector<8x8xf32>
    %136 = math.exp %135 : vector<8x8xf32>
    %cst_86 = arith.constant dense<0.000000e+00> : vector<8xf32>
    %137 = vector.multi_reduction <add>, %136, %cst_86 [1] : vector<8x8xf32> to vector<8xf32>
    %138 = vector.shape_cast %137 : vector<8xf32> to vector<8x1xf32>
    %139 = tpu.reciprocal %138 {approx = true} : vector<8x1xf32> -> vector<8x1xf32>
    %140 = vector.broadcast %139 : vector<8x1xf32> to vector<8x8xf32>
    %141 = arith.mulf %136, %140 : vector<8x8xf32>
    %142 = arith.truncf %141 : vector<8x8xf32> to vector<8x8xbf16>
    %143 = arith.truncf %124 : vector<8x8xf32> to vector<8x8xbf16>
    %cst_87 = arith.constant dense<0.000000e+00> : vector<8x8xf32>
    %144 = tpu.matmul %142, %143, %cst_87 {dimension_numbers = #tpu.dot_dimension_numbers<[1], [0], [0], [1], [0, 0, 1, 1], [], []>} : vector<8x8xbf16>, vector<8x8xbf16>, vector<8x8xf32> -> vector<8x8xf32>
    %c2_88 = arith.constant 2 : index
    %c0_89 = arith.constant 0 : index
    %c0_90 = arith.constant 0 : index
    %145 = vector.load %arg9[%c2_88, %c0_89, %c0_90] : memref<4x8x32xbf16, #tpu.memory_space<vmem>>, vector<1x8x32xbf16>
    %146 = vector.shape_cast %145 : vector<1x8x32xbf16> to vector<8x32xbf16>
    %147 = arith.truncf %144 : vector<8x8xf32> to vector<8x8xbf16>
    %cst_91 = arith.constant dense<0.000000e+00> : vector<8x32xf32>
    %148 = tpu.matmul %147, %146, %cst_91 {dimension_numbers = #tpu.dot_dimension_numbers<[1], [0], [0], [1], [0, 0, 1, 1], [], []>} : vector<8x8xbf16>, vector<8x32xbf16>, vector<8x32xf32> -> vector<8x32xf32>
    %149 = arith.addf %100, %148 : vector<8x32xf32>
    %c3 = arith.constant 3 : index
    %c0_92 = arith.constant 0 : index
    %c0_93 = arith.constant 0 : index
    %150 = vector.load %arg3[%c3, %c0_92, %c0_93] : memref<4x32x8xbf16, #tpu.memory_space<vmem>>, vector<1x32x8xbf16>
    %151 = vector.shape_cast %150 : vector<1x32x8xbf16> to vector<32x8xbf16>
    %152 = arith.truncf %1 : vector<8x32xf32> to vector<8x32xbf16>
    %cst_94 = arith.constant dense<0.000000e+00> : vector<8x8xf32>
    %153 = tpu.matmul %152, %151, %cst_94 {dimension_numbers = #tpu.dot_dimension_numbers<[1], [0], [0], [1], [0, 0, 1, 1], [], []>} : vector<8x32xbf16>, vector<32x8xbf16>, vector<8x8xf32> -> vector<8x8xf32>
    %c3_95 = arith.constant 3 : index
    %c0_96 = arith.constant 0 : index
    %c0_97 = arith.constant 0 : index
    %154 = vector.load %arg6[%c3_95, %c0_96, %c0_97] : memref<4x1x8xf32, #tpu.memory_space<vmem>>, vector<1x1x8xf32>
    %155 = vector.shape_cast %154 : vector<1x1x8xf32> to vector<1x8xf32>
    %156 = vector.broadcast %155 : vector<1x8xf32> to vector<8x8xf32>
    %157 = arith.addf %153, %156 : vector<8x8xf32>
    %c3_98 = arith.constant 3 : index
    %c0_99 = arith.constant 0 : index
    %c0_100 = arith.constant 0 : index
    %158 = vector.load %arg4[%c3_98, %c0_99, %c0_100] : memref<4x32x8xbf16, #tpu.memory_space<vmem>>, vector<1x32x8xbf16>
    %159 = vector.shape_cast %158 : vector<1x32x8xbf16> to vector<32x8xbf16>
    %160 = arith.truncf %1 : vector<8x32xf32> to vector<8x32xbf16>
    %cst_101 = arith.constant dense<0.000000e+00> : vector<8x8xf32>
    %161 = tpu.matmul %160, %159, %cst_101 {dimension_numbers = #tpu.dot_dimension_numbers<[1], [0], [0], [1], [0, 0, 1, 1], [], []>} : vector<8x32xbf16>, vector<32x8xbf16>, vector<8x8xf32> -> vector<8x8xf32>
    %c3_102 = arith.constant 3 : index
    %c0_103 = arith.constant 0 : index
    %c0_104 = arith.constant 0 : index
    %162 = vector.load %arg7[%c3_102, %c0_103, %c0_104] : memref<4x1x8xf32, #tpu.memory_space<vmem>>, vector<1x1x8xf32>
    %163 = vector.shape_cast %162 : vector<1x1x8xf32> to vector<1x8xf32>
    %164 = vector.broadcast %163 : vector<1x8xf32> to vector<8x8xf32>
    %165 = arith.addf %161, %164 : vector<8x8xf32>
    %c3_105 = arith.constant 3 : index
    %c0_106 = arith.constant 0 : index
    %c0_107 = arith.constant 0 : index
    %166 = vector.load %arg5[%c3_105, %c0_106, %c0_107] : memref<4x32x8xbf16, #tpu.memory_space<vmem>>, vector<1x32x8xbf16>
    %167 = vector.shape_cast %166 : vector<1x32x8xbf16> to vector<32x8xbf16>
    %168 = arith.truncf %1 : vector<8x32xf32> to vector<8x32xbf16>
    %cst_108 = arith.constant dense<0.000000e+00> : vector<8x8xf32>
    %169 = tpu.matmul %168, %167, %cst_108 {dimension_numbers = #tpu.dot_dimension_numbers<[1], [0], [0], [1], [0, 0, 1, 1], [], []>} : vector<8x32xbf16>, vector<32x8xbf16>, vector<8x8xf32> -> vector<8x8xf32>
    %c3_109 = arith.constant 3 : index
    %c0_110 = arith.constant 0 : index
    %c0_111 = arith.constant 0 : index
    %170 = vector.load %arg8[%c3_109, %c0_110, %c0_111] : memref<4x1x8xf32, #tpu.memory_space<vmem>>, vector<1x1x8xf32>
    %171 = vector.shape_cast %170 : vector<1x1x8xf32> to vector<1x8xf32>
    %172 = vector.broadcast %171 : vector<1x8xf32> to vector<8x8xf32>
    %173 = arith.addf %169, %172 : vector<8x8xf32>
    %174 = arith.truncf %157 : vector<8x8xf32> to vector<8x8xbf16>
    %175 = arith.truncf %165 : vector<8x8xf32> to vector<8x8xbf16>
    %cst_112 = arith.constant dense<0.000000e+00> : vector<8x8xf32>
    %176 = tpu.matmul %174, %175, %cst_112 {dimension_numbers = #tpu.dot_dimension_numbers<[1], [1], [0], [0], [0, 0, 1, 0], [], []>} : vector<8x8xbf16>, vector<8x8xbf16>, vector<8x8xf32> -> vector<8x8xf32>
    %cst_113 = arith.constant 0.353553385 : f32
    %177 = vector.broadcast %cst_113 : f32 to vector<8x8xf32>
    %178 = arith.mulf %176, %177 : vector<8x8xf32>
    %179 = vector.broadcast %3 : vector<1x8xf32> to vector<8x8xf32>
    %180 = arith.addf %178, %179 : vector<8x8xf32>
    %cst_114 = arith.constant dense<0xFF800000> : vector<8xf32>
    %181 = vector.multi_reduction <maximumf>, %180, %cst_114 [1] : vector<8x8xf32> to vector<8xf32>
    %182 = vector.shape_cast %181 : vector<8xf32> to vector<8x1xf32>
    %183 = vector.broadcast %182 : vector<8x1xf32> to vector<8x8xf32>
    %184 = arith.subf %180, %183 : vector<8x8xf32>
    %185 = math.exp %184 : vector<8x8xf32>
    %cst_115 = arith.constant dense<0.000000e+00> : vector<8xf32>
    %186 = vector.multi_reduction <add>, %185, %cst_115 [1] : vector<8x8xf32> to vector<8xf32>
    %187 = vector.shape_cast %186 : vector<8xf32> to vector<8x1xf32>
    %188 = tpu.reciprocal %187 {approx = true} : vector<8x1xf32> -> vector<8x1xf32>
    %189 = vector.broadcast %188 : vector<8x1xf32> to vector<8x8xf32>
    %190 = arith.mulf %185, %189 : vector<8x8xf32>
    %191 = arith.truncf %190 : vector<8x8xf32> to vector<8x8xbf16>
    %192 = arith.truncf %173 : vector<8x8xf32> to vector<8x8xbf16>
    %cst_116 = arith.constant dense<0.000000e+00> : vector<8x8xf32>
    %193 = tpu.matmul %191, %192, %cst_116 {dimension_numbers = #tpu.dot_dimension_numbers<[1], [0], [0], [1], [0, 0, 1, 1], [], []>} : vector<8x8xbf16>, vector<8x8xbf16>, vector<8x8xf32> -> vector<8x8xf32>
    %c3_117 = arith.constant 3 : index
    %c0_118 = arith.constant 0 : index
    %c0_119 = arith.constant 0 : index
    %194 = vector.load %arg9[%c3_117, %c0_118, %c0_119] : memref<4x8x32xbf16, #tpu.memory_space<vmem>>, vector<1x8x32xbf16>
    %195 = vector.shape_cast %194 : vector<1x8x32xbf16> to vector<8x32xbf16>
    %196 = arith.truncf %193 : vector<8x8xf32> to vector<8x8xbf16>
    %cst_120 = arith.constant dense<0.000000e+00> : vector<8x32xf32>
    %197 = tpu.matmul %196, %195, %cst_120 {dimension_numbers = #tpu.dot_dimension_numbers<[1], [0], [0], [1], [0, 0, 1, 1], [], []>} : vector<8x8xbf16>, vector<8x32xbf16>, vector<8x32xf32> -> vector<8x32xf32>
    %198 = arith.addf %149, %197 : vector<8x32xf32>
    %c0_121 = arith.constant 0 : index
    %c0_122 = arith.constant 0 : index
    %199 = vector.load %arg10[%c0_121, %c0_122] : memref<1x32xf32, #tpu.memory_space<vmem>>, vector<1x32xf32>
    %200 = vector.broadcast %199 : vector<1x32xf32> to vector<8x32xf32>
    %201 = arith.addf %198, %200 : vector<8x32xf32>
    %202 = arith.addf %1, %201 : vector<8x32xf32>
    %c0_123 = arith.constant 0 : index
    %c0_124 = arith.constant 0 : index
    %203 = vector.load %arg11[%c0_123, %c0_124] : memref<1x32xf32, #tpu.memory_space<vmem>>, vector<1x32xf32>
    %c0_125 = arith.constant 0 : index
    %c0_126 = arith.constant 0 : index
    %204 = vector.load %arg12[%c0_125, %c0_126] : memref<1x32xf32, #tpu.memory_space<vmem>>, vector<1x32xf32>
    %cst_127 = arith.constant dense<0.000000e+00> : vector<8xf32>
    %205 = vector.multi_reduction <add>, %202, %cst_127 [1] : vector<8x32xf32> to vector<8xf32>
    %206 = vector.shape_cast %205 : vector<8xf32> to vector<8x1xf32>
    %cst_128 = arith.constant 3.200000e+01 : f32
    %207 = vector.broadcast %cst_128 : f32 to vector<8x1xf32>
    %208 = arith.divf %206, %207 : vector<8x1xf32>
    %209 = vector.broadcast %208 : vector<8x1xf32> to vector<8x32xf32>
    %210 = arith.subf %202, %209 : vector<8x32xf32>
    %211 = arith.mulf %210, %210 : vector<8x32xf32>
    %cst_129 = arith.constant dense<0.000000e+00> : vector<8xf32>
    %212 = vector.multi_reduction <add>, %211, %cst_129 [1] : vector<8x32xf32> to vector<8xf32>
    %213 = vector.shape_cast %212 : vector<8xf32> to vector<8x1xf32>
    %cst_130 = arith.constant 3.200000e+01 : f32
    %214 = vector.broadcast %cst_130 : f32 to vector<8x1xf32>
    %215 = arith.divf %213, %214 : vector<8x1xf32>
    %216 = vector.broadcast %208 : vector<8x1xf32> to vector<8x32xf32>
    %217 = arith.subf %202, %216 : vector<8x32xf32>
    %cst_131 = arith.constant 9.99999974E-6 : f32
    %218 = vector.broadcast %cst_131 : f32 to vector<8x1xf32>
    %219 = arith.addf %215, %218 : vector<8x1xf32>
    %220 = math.rsqrt %219 : vector<8x1xf32>
    %221 = vector.broadcast %220 : vector<8x1xf32> to vector<8x32xf32>
    %222 = arith.mulf %217, %221 : vector<8x32xf32>
    %223 = vector.broadcast %203 : vector<1x32xf32> to vector<8x32xf32>
    %224 = arith.mulf %222, %223 : vector<8x32xf32>
    %225 = vector.broadcast %204 : vector<1x32xf32> to vector<8x32xf32>
    %226 = arith.addf %224, %225 : vector<8x32xf32>
    %c0_132 = arith.constant 0 : index
    %c0_133 = arith.constant 0 : index
    %227 = vector.load %arg13[%c0_132, %c0_133] : memref<32x64xbf16, #tpu.memory_space<vmem>>, vector<32x64xbf16>
    %228 = arith.truncf %226 : vector<8x32xf32> to vector<8x32xbf16>
    %cst_134 = arith.constant dense<0.000000e+00> : vector<8x64xf32>
    %229 = tpu.matmul %228, %227, %cst_134 {dimension_numbers = #tpu.dot_dimension_numbers<[1], [0], [0], [1], [0, 0, 1, 1], [], []>} : vector<8x32xbf16>, vector<32x64xbf16>, vector<8x64xf32> -> vector<8x64xf32>
    %c0_135 = arith.constant 0 : index
    %c0_136 = arith.constant 0 : index
    %230 = vector.load %arg14[%c0_135, %c0_136] : memref<1x64xf32, #tpu.memory_space<vmem>>, vector<1x64xf32>
    %231 = vector.broadcast %230 : vector<1x64xf32> to vector<8x64xf32>
    %232 = arith.addf %229, %231 : vector<8x64xf32>
    %cst_137 = arith.constant 0.000000e+00 : f32
    %233 = vector.broadcast %cst_137 : f32 to vector<8x64xf32>
    %234 = arith.maximumf %232, %233 : vector<8x64xf32>
    %c0_138 = arith.constant 0 : index
    %c0_139 = arith.constant 0 : index
    %235 = vector.load %arg15[%c0_138, %c0_139] : memref<64x32xbf16, #tpu.memory_space<vmem>>, vector<64x32xbf16>
    %236 = arith.truncf %234 : vector<8x64xf32> to vector<8x64xbf16>
    %cst_140 = arith.constant dense<0.000000e+00> : vector<8x32xf32>
    %237 = tpu.matmul %236, %235, %cst_140 {dimension_numbers = #tpu.dot_dimension_numbers<[1], [0], [0], [1], [0, 0, 1, 1], [], []>} : vector<8x64xbf16>, vector<64x32xbf16>, vector<8x32xf32> -> vector<8x32xf32>
    %c0_141 = arith.constant 0 : index
    %c0_142 = arith.constant 0 : index
    %238 = vector.load %arg16[%c0_141, %c0_142] : memref<1x32xf32, #tpu.memory_space<vmem>>, vector<1x32xf32>
    %239 = vector.broadcast %238 : vector<1x32xf32> to vector<8x32xf32>
    %240 = arith.addf %237, %239 : vector<8x32xf32>
    %241 = arith.addf %226, %240 : vector<8x32xf32>
    %c0_143 = arith.constant 0 : index
    %c0_144 = arith.constant 0 : index
    %242 = vector.load %arg17[%c0_143, %c0_144] : memref<1x32xf32, #tpu.memory_space<vmem>>, vector<1x32xf32>
    %c0_145 = arith.constant 0 : index
    %c0_146 = arith.constant 0 : index
    %243 = vector.load %arg18[%c0_145, %c0_146] : memref<1x32xf32, #tpu.memory_space<vmem>>, vector<1x32xf32>
    %cst_147 = arith.constant dense<0.000000e+00> : vector<8xf32>
    %244 = vector.multi_reduction <add>, %241, %cst_147 [1] : vector<8x32xf32> to vector<8xf32>
    %245 = vector.shape_cast %244 : vector<8xf32> to vector<8x1xf32>
    %cst_148 = arith.constant 3.200000e+01 : f32
    %246 = vector.broadcast %cst_148 : f32 to vector<8x1xf32>
    %247 = arith.divf %245, %246 : vector<8x1xf32>
    %248 = vector.broadcast %247 : vector<8x1xf32> to vector<8x32xf32>
    %249 = arith.subf %241, %248 : vector<8x32xf32>
    %250 = arith.mulf %249, %249 : vector<8x32xf32>
    %cst_149 = arith.constant dense<0.000000e+00> : vector<8xf32>
    %251 = vector.multi_reduction <add>, %250, %cst_149 [1] : vector<8x32xf32> to vector<8xf32>
    %252 = vector.shape_cast %251 : vector<8xf32> to vector<8x1xf32>
    %cst_150 = arith.constant 3.200000e+01 : f32
    %253 = vector.broadcast %cst_150 : f32 to vector<8x1xf32>
    %254 = arith.divf %252, %253 : vector<8x1xf32>
    %255 = vector.broadcast %247 : vector<8x1xf32> to vector<8x32xf32>
    %256 = arith.subf %241, %255 : vector<8x32xf32>
    %cst_151 = arith.constant 9.99999974E-6 : f32
    %257 = vector.broadcast %cst_151 : f32 to vector<8x1xf32>
    %258 = arith.addf %254, %257 : vector<8x1xf32>
    %259 = math.rsqrt %258 : vector<8x1xf32>
    %260 = vector.broadcast %259 : vector<8x1xf32> to vector<8x32xf32>
    %261 = arith.mulf %256, %260 : vector<8x32xf32>
    %262 = vector.broadcast %242 : vector<1x32xf32> to vector<8x32xf32>
    %263 = arith.mulf %261, %262 : vector<8x32xf32>
    %264 = vector.broadcast %243 : vector<1x32xf32> to vector<8x32xf32>
    %265 = arith.addf %263, %264 : vector<8x32xf32>
    %c0_152 = arith.constant 0 : index
    %c0_153 = arith.constant 0 : index
    %c0_154 = arith.constant 0 : index
    %266 = vector.load %arg19[%c0_152, %c0_153, %c0_154] : memref<1x8x32xf32, #tpu.memory_space<vmem>>, vector<1x8x32xf32>
    %267 = vector.shape_cast %266 : vector<1x8x32xf32> to vector<8x32xf32>
    %268 = vector.shape_cast %265 : vector<8x32xf32> to vector<1x8x32xf32>
    tpu.vector_store %arg19[%c0_152, %c0_153, %c0_154], %268 {strides = array<i32>} : memref<1x8x32xf32, #tpu.memory_space<vmem>>, vector<1x8x32xf32>,
    return
  }
  func.func @transform_0(%arg0: i32) -> (i32, i32, i32) {
    %c0_i32 = arith.constant 0 : i32
    %c0_i32_0 = arith.constant 0 : i32
    %c0_i32_1 = arith.constant 0 : i32
    return %arg0, %c0_i32, %c0_i32_0 : i32, i32, i32
  }
  func.func @transform_1(%arg0: i32) -> (i32, i32, i32) {
    %c0_i32 = arith.constant 0 : i32
    %c0_i32_0 = arith.constant 0 : i32
    %c0_i32_1 = arith.constant 0 : i32
    return %arg0, %c0_i32, %c0_i32_0 : i32, i32, i32
  }
  func.func @transform_2(%arg0: i32) -> (i32, i32, i32) {
    %c0_i32 = arith.constant 0 : i32
    %c0_i32_0 = arith.constant 0 : i32
    %c0_i32_1 = arith.constant 0 : i32
    %c0_i32_2 = arith.constant 0 : i32
    return %c0_i32, %c0_i32_0, %c0_i32_1 : i32, i32, i32
  }
  func.func @transform_3(%arg0: i32) -> (i32, i32, i32) {
    %c0_i32 = arith.constant 0 : i32
    %c0_i32_0 = arith.constant 0 : i32
    %c0_i32_1 = arith.constant 0 : i32
    %c0_i32_2 = arith.constant 0 : i32
    return %c0_i32, %c0_i32_0, %c0_i32_1 : i32, i32, i32
  }
  func.func @transform_4(%arg0: i32) -> (i32, i32, i32) {
    %c0_i32 = arith.constant 0 : i32
    %c0_i32_0 = arith.constant 0 : i32
    %c0_i32_1 = arith.constant 0 : i32
    %c0_i32_2 = arith.constant 0 : i32
    return %c0_i32, %c0_i32_0, %c0_i32_1 : i32, i32, i32
  }
  func.func @transform_5(%arg0: i32) -> (i32, i32, i32) {
    %c0_i32 = arith.constant 0 : i32
    %c0_i32_0 = arith.constant 0 : i32
    %c0_i32_1 = arith.constant 0 : i32
    %c0_i32_2 = arith.constant 0 : i32
    return %c0_i32, %c0_i32_0, %c0_i32_1 : i32, i32, i32
  }
  func.func @transform_6(%arg0: i32) -> (i32, i32, i32) {
    %c0_i32 = arith.constant 0 : i32
    %c0_i32_0 = arith.constant 0 : i32
    %c0_i32_1 = arith.constant 0 : i32
    %c0_i32_2 = arith.constant 0 : i32
    return %c0_i32, %c0_i32_0, %c0_i32_1 : i32, i32, i32
  }
  func.func @transform_7(%arg0: i32) -> (i32, i32, i32) {
    %c0_i32 = arith.constant 0 : i32
    %c0_i32_0 = arith.constant 0 : i32
    %c0_i32_1 = arith.constant 0 : i32
    %c0_i32_2 = arith.constant 0 : i32
    return %c0_i32, %c0_i32_0, %c0_i32_1 : i32, i32, i32
  }
  func.func @transform_8(%arg0: i32) -> (i32, i32, i32) {
    %c0_i32 = arith.constant 0 : i32
    %c0_i32_0 = arith.constant 0 : i32
    %c0_i32_1 = arith.constant 0 : i32
    %c0_i32_2 = arith.constant 0 : i32
    return %c0_i32, %c0_i32_0, %c0_i32_1 : i32, i32, i32
  }
  func.func @transform_9(%arg0: i32) -> (i32, i32) {
    %c0_i32 = arith.constant 0 : i32
    %c0_i32_0 = arith.constant 0 : i32
    %c0_i32_1 = arith.constant 0 : i32
    return %c0_i32, %c0_i32_0 : i32, i32
  }
  func.func @transform_10(%arg0: i32) -> (i32, i32) {
    %c0_i32 = arith.constant 0 : i32
    %c0_i32_0 = arith.constant 0 : i32
    %c0_i32_1 = arith.constant 0 : i32
    return %c0_i32, %c0_i32_0 : i32, i32
  }
  func.func @transform_11(%arg0: i32) -> (i32, i32) {
    %c0_i32 = arith.constant 0 : i32
    %c0_i32_0 = arith.constant 0 : i32
    %c0_i32_1 = arith.constant 0 : i32
    return %c0_i32, %c0_i32_0 : i32, i32
  }
  func.func @transform_12(%arg0: i32) -> (i32, i32) {
    %c0_i32 = arith.constant 0 : i32
    %c0_i32_0 = arith.constant 0 : i32
    %c0_i32_1 = arith.constant 0 : i32
    return %c0_i32, %c0_i32_0 : i32, i32
  }
  func.func @transform_13(%arg0: i32) -> (i32, i32) {
    %c0_i32 = arith.constant 0 : i32
    %c0_i32_0 = arith.constant 0 : i32
    %c0_i32_1 = arith.constant 0 : i32
    return %c0_i32, %c0_i32_0 : i32, i32
  }
  func.func @transform_14(%arg0: i32) -> (i32, i32) {
    %c0_i32 = arith.constant 0 : i32
    %c0_i32_0 = arith.constant 0 : i32
    %c0_i32_1 = arith.constant 0 : i32
    return %c0_i32, %c0_i32_0 : i32, i32
  }
  func.func @transform_15(%arg0: i32) -> (i32, i32) {
    %c0_i32 = arith.constant 0 : i32
    %c0_i32_0 = arith.constant 0 : i32
    %c0_i32_1 = arith.constant 0 : i32
    return %c0_i32, %c0_i32_0 : i32, i32
  }
  func.func @transform_16(%arg0: i32) -> (i32, i32) {
    %c0_i32 = arith.constant 0 : i32
    %c0_i32_0 = arith.constant 0 : i32
    %c0_i32_1 = arith.constant 0 : i32
    return %c0_i32, %c0_i32_0 : i32, i32
  }
  func.func @transform_17(%arg0: i32) -> (i32, i32) {
    %c0_i32 = arith.constant 0 : i32
    %c0_i32_0 = arith.constant 0 : i32
    %c0_i32_1 = arith.constant 0 : i32
    return %c0_i32, %c0_i32_0 : i32, i32
  }
  func.func @transform_18(%arg0: i32) -> (i32, i32, i32) {
    %c0_i32 = arith.constant 0 : i32
    %c0_i32_0 = arith.constant 0 : i32
    %c0_i32_1 = arith.constant 0 : i32
    return %arg0, %c0_i32, %c0_i32_0 : i32, i32, i32
  }
}

module attributes {stable_mosaic.version = 11 : i64} {
  func.func @_l2norm_kernel(%arg0: memref<2x32xf32, #tpu.memory_space<vmem>>, %arg1: memref<2x32xf32, #tpu.memory_space<vmem>>) attributes {dimension_semantics = [], scalar_prefetch = 0 : i64, scratch_operands = 0 : i64, tpu.core_type = #tpu.core_type<tc>} {
    %c0 = arith.constant 0 : index
    %c0_0 = arith.constant 0 : index
    %0 = vector.load %arg0[%c0, %c0_0] : memref<2x32xf32, #tpu.memory_space<vmem>>, vector<2x32xf32>
    %1 = arith.mulf %0, %0 : vector<2x32xf32>
    %cst = arith.constant dense<0.000000e+00> : vector<2xf32>
    %2 = vector.multi_reduction <add>, %1, %cst [1] : vector<2x32xf32> to vector<2xf32>
    %3 = vector.shape_cast %2 : vector<2xf32> to vector<2x1xf32>
    %4 = math.sqrt %3 : vector<2x1xf32>
    %cst_1 = arith.constant 9.99999996E-13 : f32
    %5 = vector.broadcast %cst_1 : f32 to vector<2x1xf32>
    %6 = arith.maximumf %4, %5 : vector<2x1xf32>
    %7 = vector.broadcast %6 : vector<2x1xf32> to vector<2x32xf32>
    %8 = arith.divf %0, %7 : vector<2x32xf32>
    %c0_2 = arith.constant 0 : index
    %c0_3 = arith.constant 0 : index
    %9 = vector.load %arg1[%c0_2, %c0_3] : memref<2x32xf32, #tpu.memory_space<vmem>>, vector<2x32xf32>
    tpu.vector_store %arg1[%c0_2, %c0_3], %8 {strides = array<i32>} : memref<2x32xf32, #tpu.memory_space<vmem>>, vector<2x32xf32>,
    return
  }
}

</mosaic_0001>

<llo_original>
// kernel: transformer_forward.5
$region0: #{transformer_forward.5}
  #allocation0 [shape = 'u32[]', space=smem, size = 0x4, offset = 0x4, fixed_abs, tag = 'smem constant byte address 0x4 - core index']
  #allocation1 [shape = 'u32[144,128]{1,0:T(1,128)}', space=vmem, size = 0x12000, scoped, tag = 'internal scratch']
  %s0 = inlined_call_operand.vmem [shape: f32[2,8,16], index: 0, kind: input, shape index: {}]
  %s1 = inlined_call_operand.vmem [shape: f32[8,32], index: 1, kind: input, shape index: {}]
  %s2 = inlined_call_operand.vmem [shape: bf16[16,32], index: 2, kind: input, shape index: {}]
  %s3 = inlined_call_operand.vmem [shape: f32[1,32], index: 3, kind: input, shape index: {}]
  %s4 = inlined_call_operand.vmem [shape: f32[1,32], index: 4, kind: input, shape index: {}]
  %s5 = inlined_call_operand.vmem [shape: f32[1,32], index: 5, kind: input, shape index: {}]
  %s6 = inlined_call_operand.vmem [shape: f32[2,8,32], index: 6, kind: output, shape index: {}]
  %s7 = sld [smem:[#allocation0]]
  $region57: #{transformer_forward.5} parent=0
    _
  %s9 = ssub.s32 1, %s7
  %s10 = scalar_select 0, %s9, %s7
  loop: start=0, step=1, limit=4
  $region2: #{transformer_forward.5} parent=0 // loop_pre_header
    _
  $region3: #{transformer_forward.5} parent=0 // loop_header
    %s12 = sphi 0, %s16
    %p13 = scmp.ge.s32.totalorder %s12, 4
    %s19 = sphi 0, %s31
    %s20 = sphi 0, %s27
    %s21 = sphi 0, %s19
    %s22 = sphi 0, %s20
    %s23 = sphi 0, %s21
    %s24 = sphi 0, %s22
    %s36 = sphi 0, %s38
    %s39 = sphi 0, %s36
    %s40 = sphi 0, %s39
    %s56 = sphi 0, %s40
    %s62 = sphi 0, %s64
    %s65 = sphi 0, %s62
    %s66 = sphi 0, %s65
    %s82 = sphi 0, %s66
    %s86 = sphi 0, %s86
    %s88 = sphi 0, %s86
    %s89 = sphi 0, %s88
    %s103 = sphi 0, %s89
    %s107 = sphi 0, %s107
    %s109 = sphi 0, %s107
    %s110 = sphi 0, %s109
    %s124 = sphi 0, %s110
    %s128 = sphi 0, %s128
    %s130 = sphi 0, %s128
    %s131 = sphi 0, %s130
    %s145 = sphi 0, %s131
    %s149 = sphi 0, %s149
    %s151 = sphi 0, %s149
    %s152 = sphi 0, %s151
    %s166 = sphi 0, %s152
    %s174 = sphi 0, %s176
    %s177 = sphi 0, %s174
    %s178 = sphi 0, %s177
    %s194 = sphi 0, %s178
  $region4: #{transformer_forward.5} parent=0 // loop_header_branch
    %15 = sbr.rel (%p13) target = $region8
  $region5: #{transformer_forward.5} parent=0 // loop_body
    %s17 = ssub.s32 %s12, 1
    %s18 = ssub.s32 %s12, 2
    %s25 = sadd.s32 1, %s20
    %p26 = scmp.ge.s32.totalorder %s25, 1
    %s27 = scalar_select %p26, 0, %s25
    %s28 = sadd.s32 1, %s19
    %s29 = scalar_select %p26, %s28, %s19
    %p30 = scmp.ge.s32.totalorder %s29, 2
    %s31 = scalar_select %p30, 0, %s29
    %s32 = ssub.s32 %s19, %s31
    %s33 = ssub.s32 %s20, %s27
    %s34 = sor.u32 %s32, %s33
    %p35 = scmp.eq.s32.totalorder %s34, 0
    %s37 = sadd.s32 %s36, 1
    %s38 = scalar_select %p35, %s36, %s37
    %p41 = pneg %p35
    %p42 = scmp.eq.s32.totalorder %s12, 1
    %p43 = por %p41, %p42
    %p44 = scmp.ne.s32.totalorder %s36, %s39
    %p45 = scmp.eq.s32.totalorder %s12, 0
    %p46 = por %p44, %p45
    %p47 = scmp.ne.s32.totalorder %s36, %s39
    %p48 = scmp.eq.s32.totalorder %s17, 1
    %p49 = por %p47, %p48
    %p50 = scmp.ne.s32.totalorder %s39, %s40
    %p51 = scmp.eq.s32.totalorder %s17, 0
    %p52 = por %p50, %p51
    %p53 = scmp.ne.s32.totalorder %s39, %s40
    %p54 = scmp.eq.s32.totalorder %s18, 1
    %p55 = por %p53, %p54
    %p57 = scmp.ne.s32.totalorder %s40, %s56
    %p58 = scmp.eq.s32.totalorder %s18, 0
    %p59 = por %p57, %p58
    %s60 = ssub.s32 %s20, %s27
    %p61 = scmp.eq.s32.totalorder %s60, 0
    %s63 = sadd.s32 %s62, 1
    %s64 = scalar_select %p61, %s62, %s63
    %p67 = pneg %p61
    %p68 = scmp.eq.s32.totalorder %s12, 1
    %p69 = por %p67, %p68
    %p70 = scmp.ne.s32.totalorder %s62, %s65
    %p71 = scmp.eq.s32.totalorder %s12, 0
    %p72 = por %p70, %p71
    %p73 = scmp.ne.s32.totalorder %s62, %s65
    %p74 = scmp.eq.s32.totalorder %s17, 1
    %p75 = por %p73, %p74
    %p76 = scmp.ne.s32.totalorder %s65, %s66
    %p77 = scmp.eq.s32.totalorder %s17, 0
    %p78 = por %p76, %p77
    %p79 = scmp.ne.s32.totalorder %s65, %s66
    %p80 = scmp.eq.s32.totalorder %s18, 1
    %p81 = por %p79, %p80
    %p83 = scmp.ne.s32.totalorder %s66, %s82
    %p84 = scmp.eq.s32.totalorder %s18, 0
    %p85 = por %p83, %p84
    %s87 = sadd.s32 %s86, 1
    %p90 = scmp.eq.s32.totalorder %s12, 1
    %p91 = scmp.ne.s32.totalorder %s86, %s88
    %p92 = scmp.eq.s32.totalorder %s12, 0
    %p93 = por %p91, %p92
    %p94 = scmp.ne.s32.totalorder %s86, %s88
    %p95 = scmp.eq.s32.totalorder %s17, 1
    %p96 = por %p94, %p95
    %p97 = scmp.ne.s32.totalorder %s88, %s89
    %p98 = scmp.eq.s32.totalorder %s17, 0
    %p99 = por %p97, %p98
    %p100 = scmp.ne.s32.totalorder %s88, %s89
    %p101 = scmp.eq.s32.totalorder %s18, 1
    %p102 = por %p100, %p101
    %p104 = scmp.ne.s32.totalorder %s89, %s103
    %p105 = scmp.eq.s32.totalorder %s18, 0
    %p106 = por %p104, %p105
    %s108 = sadd.s32 %s107, 1
    %p111 = scmp.eq.s32.totalorder %s12, 1
    %p112 = scmp.ne.s32.totalorder %s107, %s109
    %p113 = scmp.eq.s32.totalorder %s12, 0
    %p114 = por %p112, %p113
    %p115 = scmp.ne.s32.totalorder %s107, %s109
    %p116 = scmp.eq.s32.totalorder %s17, 1
    %p117 = por %p115, %p116
    %p118 = scmp.ne.s32.totalorder %s109, %s110
    %p119 = scmp.eq.s32.totalorder %s17, 0
    %p120 = por %p118, %p119
    %p121 = scmp.ne.s32.totalorder %s109, %s110
    %p122 = scmp.eq.s32.totalorder %s18, 1
    %p123 = por %p121, %p122
    %p125 = scmp.ne.s32.totalorder %s110, %s124
    %p126 = scmp.eq.s32.totalorder %s18, 0
    %p127 = por %p125, %p126
    %s129 = sadd.s32 %s128, 1
    %p132 = scmp.eq.s32.totalorder %s12, 1
    %p133 = scmp.ne.s32.totalorder %s128, %s130
    %p134 = scmp.eq.s32.totalorder %s12, 0
    %p135 = por %p133, %p134
    %p136 = scmp.ne.s32.totalorder %s128, %s130
    %p137 = scmp.eq.s32.totalorder %s17, 1
    %p138 = por %p136, %p137
    %p139 = scmp.ne.s32.totalorder %s130, %s131
    %p140 = scmp.eq.s32.totalorder %s17, 0
    %p141 = por %p139, %p140
    %p142 = scmp.ne.s32.totalorder %s130, %s131
    %p143 = scmp.eq.s32.totalorder %s18, 1
    %p144 = por %p142, %p143
    %p146 = scmp.ne.s32.totalorder %s131, %s145
    %p147 = scmp.eq.s32.totalorder %s18, 0
    %p148 = por %p146, %p147
    %s150 = sadd.s32 %s149, 1
    %p153 = scmp.eq.s32.totalorder %s12, 1
    %p154 = scmp.ne.s32.totalorder %s149, %s151
    %p155 = scmp.eq.s32.totalorder %s12, 0
    %p156 = por %p154, %p155
    %p157 = scmp.ne.s32.totalorder %s149, %s151
    %p158 = scmp.eq.s32.totalorder %s17, 1
    %p159 = por %p157, %p158
    %p160 = scmp.ne.s32.totalorder %s151, %s152
    %p161 = scmp.eq.s32.totalorder %s17, 0
    %p162 = por %p160, %p161
    %p163 = scmp.ne.s32.totalorder %s151, %s152
    %p164 = scmp.eq.s32.totalorder %s18, 1
    %p165 = por %p163, %p164
    %p167 = scmp.ne.s32.totalorder %s152, %s166
    %p168 = scmp.eq.s32.totalorder %s18, 0
    %p169 = por %p167, %p168
    %s170 = ssub.s32 %s19, %s31
    %s171 = ssub.s32 %s20, %s27
    %s172 = sor.u32 %s170, %s171
    %p173 = scmp.eq.s32.totalorder %s172, 0
    %s175 = sadd.s32 %s174, 1
    %s176 = scalar_select %p173, %s174, %s175
    %p179 = pneg %p173
    %p180 = scmp.eq.s32.totalorder %s12, 1
    %p181 = por %p179, %p180
    %p182 = scmp.ne.s32.totalorder %s174, %s177
    %p183 = scmp.eq.s32.totalorder %s12, 0
    %p184 = por %p182, %p183
    %p185 = scmp.ne.s32.totalorder %s174, %s177
    %p186 = scmp.eq.s32.totalorder %s17, 1
    %p187 = por %p185, %p186
    %p188 = scmp.ne.s32.totalorder %s177, %s178
    %p189 = scmp.eq.s32.totalorder %s17, 0
    %p190 = por %p188, %p189
    %p191 = scmp.ne.s32.totalorder %s177, %s178
    %p192 = scmp.eq.s32.totalorder %s18, 1
    %p193 = por %p191, %p192
    %p195 = scmp.ne.s32.totalorder %s178, %s194
    %p196 = scmp.eq.s32.totalorder %s18, 0
    %p197 = por %p195, %p196
    %p198 = scmp.le.s32.totalorder 1, %s12
    %p199 = scmp.lt.s32.totalorder %s12, 3
    %p200 = pnand %p198, %p199
    %p201 = pneg %p200
    // Predicated region
    $region9: #{transformer_forward.5} parent=5 // pred_check
      _
    $region10: #{transformer_forward.5} parent=5 // pred_check_branch
      %203 = sbr.rel (%p200) target = $region12
    $region11: #{transformer_forward.5} parent=5 // pred_region
      %s204 = ssub.s32 %s12, 1
      // Predicated region
      $region13: #{transformer_forward.5} parent=11 // pred_check
        %p205 = pneg %p78
      $region14: #{transformer_forward.5} parent=11 // pred_check_branch
        %207 = sbr.rel (%p205) target = $region16
      $region15: #{transformer_forward.5} parent=11 // pred_region
        %p208 = scmp.lt.s32.totalorder %s22, 0
        %s209 = scalar_select %p208, %s22, 0
        %s210 = smul.addr %s209, 8
        %s211 = scalar_lea.vmem %s1, %s210
      $region16: #{transformer_forward.5} parent=11 // pred_fallthru
        _
      // Predicated region
      $region17: #{transformer_forward.5} parent=11 // pred_check
        %p212 = pneg %p99
      $region18: #{transformer_forward.5} parent=11 // pred_check_branch
        %214 = sbr.rel (%p212) target = $region20
      $region19: #{transformer_forward.5} parent=11 // pred_region
        _
      $region20: #{transformer_forward.5} parent=11 // pred_fallthru
        _
      // Predicated region
      $region21: #{transformer_forward.5} parent=11 // pred_check
        %p215 = pneg %p120
      $region22: #{transformer_forward.5} parent=11 // pred_check_branch
        %217 = sbr.rel (%p215) target = $region24
      $region23: #{transformer_forward.5} parent=11 // pred_region
        _
      $region24: #{transformer_forward.5} parent=11 // pred_fallthru
        _
      // Predicated region
      $region25: #{transformer_forward.5} parent=11 // pred_check
        %p218 = pneg %p141
      $region26: #{transformer_forward.5} parent=11 // pred_check_branch
        %220 = sbr.rel (%p218) target = $region28
      $region27: #{transformer_forward.5} parent=11 // pred_region
        _
      $region28: #{transformer_forward.5} parent=11 // pred_fallthru
        _
      // Predicated region
      $region29: #{transformer_forward.5} parent=11 // pred_check
        %p221 = pneg %p162
      $region30: #{transformer_forward.5} parent=11 // pred_check_branch
        %223 = sbr.rel (%p221) target = $region32
      $region31: #{transformer_forward.5} parent=11 // pred_region
        _
      $region32: #{transformer_forward.5} parent=11 // pred_fallthru
        _
    $region12: #{transformer_forward.5} parent=5 // pred_fallthru
      _
    %p224 = scmp.lt.s32.totalorder %s12, 2
    // Predicated region
    $region33: #{transformer_forward.5} parent=5 // pred_check
      %p225 = pneg %p224
    $region34: #{transformer_forward.5} parent=5 // pred_check_branch
      %227 = sbr.rel (%p225) target = $region36
    $region35: #{transformer_forward.5} parent=5 // pred_region
      // Predicated region
      $region37: #{transformer_forward.5} parent=35 // pred_check
        %p228 = pneg %p46
      $region38: #{transformer_forward.5} parent=35 // pred_check_branch
        %230 = sbr.rel (%p228) target = $region40
      $region39: #{transformer_forward.5} parent=35 // pred_region
        %p231 = scmp.lt.s32.totalorder %s19, 1
        %s232 = scalar_select %p231, %s19, 1
        %p233 = scmp.lt.s32.totalorder %s20, 0
        %s234 = scalar_select %p233, %s20, 0
        %s235 = sadd.s32 %s234, %s232
        %s236 = smul.addr %s235, 8
        %s237 = scalar_lea.vmem %s0, %s236
      $region40: #{transformer_forward.5} parent=35 // pred_fallthru
        _
    $region36: #{transformer_forward.5} parent=5 // pred_fallthru
      _
    %p238 = scmp.le.s32.totalorder 1, %s12
    %p239 = scmp.lt.s32.totalorder %s12, 3
    %p240 = pnand %p238, %p239
    %p241 = pneg %p240
    // Predicated region
    $region41: #{transformer_forward.5} parent=5 // pred_check
      _
    $region42: #{transformer_forward.5} parent=5 // pred_check_branch
      %243 = sbr.rel (%p240) target = $region44
    $region43: #{transformer_forward.5} parent=5 // pred_region
      %s244 = ssub.s32 %s12, 1
      %p245 = scmp.lt.s32.totalorder %s21, 1
      %s246 = scalar_select %p245, %s21, 1
      %p247 = scmp.lt.s32.totalorder %s22, 0
      %s248 = scalar_select %p247, %s22, 0
      %s249 = sadd.s32 %s248, %s246
      %s250 = smul.addr %s249, 8
      %s251 = scalar_lea.vmem %s0, %s250
      %p252 = pneg %p52
      %p253 = pneg %p49
      %p254 = scmp.lt.s32.totalorder %s22, 0
      %s255 = scalar_select %p254, %s22, 0
      %s256 = smul.addr %s255, 8
      %s257 = scalar_lea.vmem %s1, %s256
      %p258 = pneg %p78
      %p259 = pneg %p75
      %p260 = pneg %p99
      %p261 = pneg %p96
      %p262 = pneg %p120
      %p263 = pneg %p117
      %p264 = pneg %p141
      %p265 = pneg %p138
      %p266 = pneg %p162
      %p267 = pneg %p159
      %p268 = pneg %p190
      %p269 = pneg %p187
      %p270 = scmp.lt.s32.totalorder %s21, 1
      %s271 = scalar_select %p270, %s21, 1
      %p272 = scmp.lt.s32.totalorder %s22, 0
      %s273 = scalar_select %p272, %s22, 0
      %s274 = sadd.s32 %s273, %s271
      %s275 = smul.addr %s274, 8
      %s276 = scalar_lea.vmem %s6, %s275
      %p277 = scmp.lt.s32.totalorder %s21, 1
      %s278 = scalar_select %p277, %s21, 1
      %p279 = scmp.lt.s32.totalorder %s22, 0
      %s280 = scalar_select %p279, %s22, 0
      %s281 = sadd.s32 %s280, %s278
      %s282 = smul.addr %s281, 8
      %s283 = scalar_lea.vmem %s0, %s282
      %p284 = scmp.lt.s32.totalorder %s22, 0
      %s285 = scalar_select %p284, %s22, 0
      %s286 = smul.addr %s285, 8
      %s287 = scalar_lea.vmem %s1, %s286
      %p288 = scmp.lt.s32.totalorder %s21, 1
      %s289 = scalar_select %p288, %s21, 1
      %p290 = scmp.lt.s32.totalorder %s22, 0
      %s291 = scalar_select %p290, %s22, 0
      %s292 = sadd.s32 %s291, %s289
      %s293 = smul.addr %s292, 8
      %s294 = scalar_lea.vmem %s6, %s293
      %v296 = vld [vmem:[%s283] sm:$0xff]
      %v297 = vld [vmem:[%s2] sm:$0xf]
      %v298 = vld [vmem:[%s2 + $0x4] sm:$0xf]
      %v299 = vpack.c.bf16 %v296, %v296
      %v300 = vld [vmem:[%s3] sm:$0x1]
      %v302 = vlaneseq
      %v303 = vshrl.u32 %v302, 7
      %v304 = vsub.s32 0, %v303
      %v305 = vrot.slane %v300, %v304
      %v309 = vunpack.c.l.b16 %v297
      %v310 = vunpack.c.l.b16 %v298
      %v311 = vpack.c.b16 %v310, %v309
      %vm313 = vcmask 130048
      %v315 = vsel %vm313, %v299, 0
      %317 = vmatprep.subr.bf16.mxu0 0
      %318 = vmatpush1.bf16.msra.mxu0 0
      %319 = vmatprep.subr.bf16.mxu0 0
      %320 = vmatpush1.bf16.msra.mxu0 0
      %321 = vmatprep.subr.bf16.mxu0 0
      %322 = vmatpush1.bf16.msra.mxu0 0
      %323 = vmatprep.subr.bf16.mxu0 0
      %324 = vmatpush1.bf16.msra.mxu0 0
      %325 = vmatprep.subr.bf16.mxu0 0
      %326 = vmatpush1.bf16.msra.mxu0 0
      %327 = vmatprep.subr.bf16.mxu0 0
      %328 = vmatpush1.bf16.msra.mxu0 0
      %329 = vmatprep.subr.bf16.mxu0 0
      %330 = vmatpush1.bf16.msra.mxu0 0
      %331 = vmatprep.subr.bf16.mxu0 0
      %332 = vmatpush1.bf16.msra.mxu0 %v311
      %333 = vmatprep.subr.bf16.mxu0 0
      %334 = vmatpush2.bf16.msra.mxu0 0
      %335 = vmatprep.subr.bf16.mxu0 0
      %336 = vmatpush2.bf16.msra.mxu0 0
      %337 = vmatprep.subr.bf16.mxu0 0
      %338 = vmatpush2.bf16.msra.mxu0 0
      %339 = vmatprep.subr.bf16.mxu0 0
      %340 = vmatpush2.bf16.msra.mxu0 0
      %341 = vmatprep.subr.bf16.mxu0 0
      %342 = vmatpush2.bf16.msra.mxu0 0
      %343 = vmatprep.subr.bf16.mxu0 0
      %344 = vmatpush2.bf16.msra.mxu0 0
      %345 = vmatprep.subr.bf16.mxu0 0
      %346 = vmatpush2.bf16.msra.mxu0 0
      %347 = vmatprep.subr.bf16.mxu0 0
      %348 = vmatpush2.bf16.msra.mxu0 0
      %349 = vmatprep.mubr.bf16.mxu0 0
      %350 = vmatmul.mubr.bf16.gmra.mxu0 %v315
      %v351 = vpop.f32.mrf.mxu0
      %v352 = vadd.f32 %v305, %v351
      %v353 = vpop.f32.mrf.mxu0
      %v354 = vpop.f32.mrf.mxu0
      %v355 = vpop.f32.mrf.mxu0
      %356 = vdwg.mxu0
      %v357 = vmul.f32 %v352, 0.5
      %v358 = vrcp.pop 1.4142135
      %v359 = vmul.f32 %v352, %v358
      %v360 = verf.f32.pop %v359
      %v361 = vadd.f32 %v360, 1.0
      %v362 = vmul.f32 %v357, %v361
      %v363 = vld [vmem:[%s4] sm:$0x1]
      %v364 = vld [vmem:[%s5] sm:$0x1]
      %vm365 = vcmask 261120
      %v366 = vsel %vm365, %v362, 0.0
      %367 = vadd.xlane.f32.xlu0 %v366
      %v368 = vpop.xlane.xlu0 %367
      %v369 = vrcp.pop 32.0
      %v370 = vmul.f32 %v368, %v369
      %v371 = vsub.f32 %v362, %v370
      %v372 = vmul.f32 %v371, %v371
      %v373 = vsel %vm365, %v372, 0.0
      %374 = vadd.xlane.f32.xlu0 %v373
      %v375 = vpop.xlane.xlu0 %374
      %v376 = vmul.f32 %v375, %v369
      %v377 = vadd.f32 %v376, 1e-05
      %v378 = vrsqrt.pop %v377
      %v379 = vmul.f32 %v371, %v378
      %v381 = vlaneseq
      %v382 = vshrl.u32 %v381, 7
      %v383 = vsub.s32 0, %v382
      %v384 = vrot.slane %v363, %v383
      %v386 = vmul.f32 %v379, %v384
      %v388 = vlaneseq
      %v389 = vshrl.u32 %v388, 7
      %v390 = vsub.s32 0, %v389
      %v391 = vrot.slane %v364, %v390
      %v393 = vadd.f32 %v386, %v391
      %v394 = vmul.f32 %v393, 5.656854
      %v395 = vld [vmem:[%s287] sm:$0xff]
      %v396 = vadd.f32 %v394, %v395
      %397 = vst.msk [vmem:[%s294] sm:$0xff] %vm365, %v396
      %p398 = scmp.lt.s32.totalorder %s21, 1
      %s399 = scalar_select %p398, %s21, 1
      %p400 = scmp.lt.s32.totalorder %s22, 0
      %s401 = scalar_select %p400, %s22, 0
      %s402 = sadd.s32 %s401, %s399
      %s403 = smul.addr %s402, 8
      %s404 = scalar_lea.vmem %s6, %s403
      // Predicated region
      $region45: #{transformer_forward.5} parent=43 // pred_check
        %p405 = pneg %p187
      $region46: #{transformer_forward.5} parent=43 // pred_check_branch
        %407 = sbr.rel (%p405) target = $region48
      $region47: #{transformer_forward.5} parent=43 // pred_region
        _
      $region48: #{transformer_forward.5} parent=43 // pred_fallthru
        _
    $region44: #{transformer_forward.5} parent=5 // pred_fallthru
      _
    %p408 = scmp.le.s32.totalorder 2, %s12
    // Predicated region
    $region49: #{transformer_forward.5} parent=5 // pred_check
      %p409 = pneg %p408
    $region50: #{transformer_forward.5} parent=5 // pred_check_branch
      %411 = sbr.rel (%p409) target = $region52
    $region51: #{transformer_forward.5} parent=5 // pred_region
      %s412 = ssub.s32 %s12, 2
      // Predicated region
      $region53: #{transformer_forward.5} parent=51 // pred_check
        %p413 = pneg %p193
      $region54: #{transformer_forward.5} parent=51 // pred_check_branch
        %415 = sbr.rel (%p413) target = $region56
      $region55: #{transformer_forward.5} parent=51 // pred_region
        %p416 = scmp.lt.s32.totalorder %s23, 1
        %s417 = scalar_select %p416, %s23, 1
        %p418 = scmp.lt.s32.totalorder %s24, 0
        %s419 = scalar_select %p418, %s24, 0
        %s420 = sadd.s32 %s419, %s417
        %s421 = smul.addr %s420, 8
        %s422 = scalar_lea.vmem %s6, %s421
      $region56: #{transformer_forward.5} parent=51 // pred_fallthru
        _
    $region52: #{transformer_forward.5} parent=5 // pred_fallthru
      _
  $region6: #{transformer_forward.5} parent=0 // loop_footer
    %s16 = sadd.s32 1, %s12
  $region7: #{transformer_forward.5} parent=0 // loop_footer_branch
    %11 = sbr.rel target = $region3
  $region8: #{transformer_forward.5} parent=0 // loop_exit
    _

// kernel: transformer_forward.9
$region0: #{transformer_forward.9}
  #allocation0 [shape = 'u32[]', space=smem, size = 0x4, offset = 0x4, fixed_abs, tag = 'smem constant byte address 0x4 - core index']
  #allocation1 [shape = 'u32[144,128]{1,0:T(1,128)}', space=vmem, size = 0x12000, scoped, tag = 'internal scratch']
  %s0 = inlined_call_operand.vmem [shape: f32[2,32], index: 0, kind: input, shape index: {}]
  %s1 = inlined_call_operand.hbm [shape: f32[2,32], index: 1, kind: output, shape index: {}]
  %s2 = sld [smem:[#allocation0]]
  $region14: #{transformer_forward.9} parent=0
    _
  %s4 = ssub.s32 1, %s2
  %s5 = scalar_select 0, %s4, %s2
  $region1: #{transformer_forward.9} parent=0
    #allocation2 [shape = 'u8[1024]{0}', space=vmem, size = 0x400, scoped, tag = 'output window, operand 0, single buffered']
    #allocation3 [shape = 's32[1]{0}', space=sflag, size = 0x4, scoped, tag = 'scoped memory for transformer_forward.9']
    %6 = vsyncpa [#allocation3], 0
    // Predicated region
    $region2: #{transformer_forward.9} parent=1 // pred_check
      _
    $region3: #{transformer_forward.9} parent=1 // pred_check_branch
      %8 = sbr.rel (0) target = $region5
    $region4: #{transformer_forward.9} parent=1 // pred_region
      _
    $region5: #{transformer_forward.9} parent=1 // pred_fallthru
      _
    %v9 = vld [vmem:[%s0] sm:$0x3]
    %v10 = vmul.f32 %v9, %v9
    %vm11 = vcmask 254976
    %v12 = vsel %vm11, %v10, 0.0
    %13 = vadd.xlane.f32.xlu0 %v12
    %v14 = vpop.xlane.xlu0 %13
    %v15 = vrsqrt.pop %v14
    %v16 = vmul.f32 %v14, %v15
    %vm17 = vcmp.eq.f32.partialorder %v14, inf
    %v18 = vsel %vm17, %v14, %v16
    %vm19 = vcmp.eq.f32.partialorder %v14, 0.0
    %v20 = vand.u32 %v14, 2147483648
    %v21 = vsel %vm19, %v20, %v18
    %v22 = vmax.f32 %v21, 1e-12
    %v23 = vrcp.pop %v22
    %v24 = vmul.f32 %v9, %v23
    %25 = vst.msk [vmem:[#allocation2] sm:$0x3] %vm11, %v24
    // Predicated region
    $region6: #{transformer_forward.9} parent=1 // pred_check
      _
    $region7: #{transformer_forward.9} parent=1 // pred_check_branch
      %27 = sbr.rel (0) target = $region9
    $region8: #{transformer_forward.9} parent=1 // pred_region
      %s29 = ssub.s32 32, 32
      %30 = vsyncadd [#allocation3], %s29
      %s32 = sshll.u32 [#allocation2], 4
      %s33 = int_to_ptr.vmem [resolvable:$true] %s32
      %35 = dma.vmem_to_hbm [thread:$0]  %s33, 32, %s1, [#allocation3]
    $region9: #{transformer_forward.9} parent=1 // pred_fallthru
      _
    // Predicated region
    $region10: #{transformer_forward.9} parent=1 // pred_check
      _
    $region11: #{transformer_forward.9} parent=1 // pred_check_branch
      %37 = sbr.rel (0) target = $region13
    $region12: #{transformer_forward.9} parent=1 // pred_region
      %38 = dma.done [#allocation3], 32
    $region13: #{transformer_forward.9} parent=1 // pred_fallthru
      _
    %39 = vsyncpa [#allocation3], 1

// kernel: transformer_forward.8
$region0: #{transformer_forward.8}
  #allocation0 [shape = 'u32[]', space=smem, size = 0x4, offset = 0x4, fixed_abs, tag = 'smem constant byte address 0x4 - core index']
  #allocation1 [shape = 'u32[144,128]{1,0:T(1,128)}', space=vmem, size = 0x12000, scoped, tag = 'internal scratch']
  %s0 = inlined_call_operand.vmem [shape: f32[16,32], index: 0, kind: input, shape index: {}]
  %s1 = inlined_call_operand.vmem [shape: bf16[32,1024], index: 1, kind: input, shape index: {}]
  %s2 = inlined_call_operand.vmem [shape: f32[1,1024], index: 2, kind: input, shape index: {}]
  %s3 = inlined_call_operand.vmem [shape: f32[1,1024], index: 3, kind: input, shape index: {}]
  %s4 = inlined_call_operand.vmem [shape: f32[1,1024], index: 4, kind: input, shape index: {}]
  %s5 = inlined_call_operand.vmem [shape: bf16[1024,32], index: 5, kind: input, shape index: {}]
  %s6 = inlined_call_operand.vmem [shape: f32[1,32], index: 6, kind: input, shape index: {}]
  %s7 = inlined_call_operand.vmem [shape: f32[1,32], index: 7, kind: input, shape index: {}]
  %s8 = inlined_call_operand.vmem [shape: f32[1,32], index: 8, kind: input, shape index: {}]
  %s9 = inlined_call_operand.vmem [shape: bf16[32,32], index: 9, kind: input, shape index: {}]
  %s10 = inlined_call_operand.vmem [shape: f32[1,32], index: 10, kind: input, shape index: {}]
  %s11 = inlined_call_operand.vmem [shape: f32[1,32], index: 11, kind: input, shape index: {}]
  %s12 = inlined_call_operand.vmem [shape: f32[1,32], index: 12, kind: input, shape index: {}]
  %s13 = inlined_call_operand.vmem [shape: bf16[32,32], index: 13, kind: input, shape index: {}]
  %s14 = inlined_call_operand.vmem [shape: f32[1,32], index: 14, kind: input, shape index: {}]
  %s15 = inlined_call_operand.vmem [shape: f32[16,32], index: 15, kind: output, shape index: {}]
  %s16 = sld [smem:[#allocation0]]
  $region70: #{transformer_forward.8} parent=0
    _
  %s18 = ssub.s32 1, %s16
  %s19 = scalar_select 0, %s18, %s16
  // Predicated region
  $region2: #{transformer_forward.8} parent=0 // pred_check
    _
  $region3: #{transformer_forward.8} parent=0 // pred_check_branch
    %21 = sbr.rel (0) target = $region5
  $region4: #{transformer_forward.8} parent=0 // pred_region
    _
  $region5: #{transformer_forward.8} parent=0 // pred_fallthru
    _
  // Predicated region
  $region6: #{transformer_forward.8} parent=0 // pred_check
    _
  $region7: #{transformer_forward.8} parent=0 // pred_check_branch
    %23 = sbr.rel (0) target = $region9
  $region8: #{transformer_forward.8} parent=0 // pred_region
    _
  $region9: #{transformer_forward.8} parent=0 // pred_fallthru
    _
  // Predicated region
  $region10: #{transformer_forward.8} parent=0 // pred_check
    _
  $region11: #{transformer_forward.8} parent=0 // pred_check_branch
    %25 = sbr.rel (0) target = $region13
  $region12: #{transformer_forward.8} parent=0 // pred_region
    _
  $region13: #{transformer_forward.8} parent=0 // pred_fallthru
    _
  // Predicated region
  $region14: #{transformer_forward.8} parent=0 // pred_check
    _
  $region15: #{transformer_forward.8} parent=0 // pred_check_branch
    %27 = sbr.rel (0) target = $region17
  $region16: #{transformer_forward.8} parent=0 // pred_region
    _
  $region17: #{transformer_forward.8} parent=0 // pred_fallthru
    _
  // Predicated region
  $region18: #{transformer_forward.8} parent=0 // pred_check
    _
  $region19: #{transformer_forward.8} parent=0 // pred_check_branch
    %29 = sbr.rel (0) target = $region21
  $region20: #{transformer_forward.8} parent=0 // pred_region
    _
  $region21: #{transformer_forward.8} parent=0 // pred_fallthru
    _
  // Predicated region
  $region22: #{transformer_forward.8} parent=0 // pred_check
    _
  $region23: #{transformer_forward.8} parent=0 // pred_check_branch
    %31 = sbr.rel (0) target = $region25
  $region24: #{transformer_forward.8} parent=0 // pred_region
    _
  $region25: #{transformer_forward.8} parent=0 // pred_fallthru
    _
  // Predicated region
  $region26: #{transformer_forward.8} parent=0 // pred_check
    _
  $region27: #{transformer_forward.8} parent=0 // pred_check_branch
    %33 = sbr.rel (0) target = $region29
  $region28: #{transformer_forward.8} parent=0 // pred_region
    _
  $region29: #{transformer_forward.8} parent=0 // pred_fallthru
    _
  // Predicated region
  $region30: #{transformer_forward.8} parent=0 // pred_check
    _
  $region31: #{transformer_forward.8} parent=0 // pred_check_branch
    %35 = sbr.rel (0) target = $region33
  $region32: #{transformer_forward.8} parent=0 // pred_region
    _
  $region33: #{transformer_forward.8} parent=0 // pred_fallthru
    _
  // Predicated region
  $region34: #{transformer_forward.8} parent=0 // pred_check
    _
  $region35: #{transformer_forward.8} parent=0 // pred_check_branch
    %37 = sbr.rel (0) target = $region37
  $region36: #{transformer_forward.8} parent=0 // pred_region
    _
  $region37: #{transformer_forward.8} parent=0 // pred_fallthru
    _
  // Predicated region
  $region38: #{transformer_forward.8} parent=0 // pred_check
    _
  $region39: #{transformer_forward.8} parent=0 // pred_check_branch
    %39 = sbr.rel (0) target = $region41
  $region40: #{transformer_forward.8} parent=0 // pred_region
    _
  $region41: #{transformer_forward.8} parent=0 // pred_fallthru
    _
  // Predicated region
  $region42: #{transformer_forward.8} parent=0 // pred_check
    _
  $region43: #{transformer_forward.8} parent=0 // pred_check_branch
    %41 = sbr.rel (0) target = $region45
  $region44: #{transformer_forward.8} parent=0 // pred_region
    _
  $region45: #{transformer_forward.8} parent=0 // pred_fallthru
    _
  // Predicated region
  $region46: #{transformer_forward.8} parent=0 // pred_check
    _
  $region47: #{transformer_forward.8} parent=0 // pred_check_branch
    %43 = sbr.rel (0) target = $region49
  $region48: #{transformer_forward.8} parent=0 // pred_region
    _
  $region49: #{transformer_forward.8} parent=0 // pred_fallthru
    _
  // Predicated region
  $region50: #{transformer_forward.8} parent=0 // pred_check
    _
  $region51: #{transformer_forward.8} parent=0 // pred_check_branch
    %45 = sbr.rel (0) target = $region53
  $region52: #{transformer_forward.8} parent=0 // pred_region
    _
  $region53: #{transformer_forward.8} parent=0 // pred_fallthru
    _
  // Predicated region
  $region54: #{transformer_forward.8} parent=0 // pred_check
    _
  $region55: #{transformer_forward.8} parent=0 // pred_check_branch
    %47 = sbr.rel (0) target = $region57
  $region56: #{transformer_forward.8} parent=0 // pred_region
    _
  $region57: #{transformer_forward.8} parent=0 // pred_fallthru
    _
  // Predicated region
  $region58: #{transformer_forward.8} parent=0 // pred_check
    _
  $region59: #{transformer_forward.8} parent=0 // pred_check_branch
    %49 = sbr.rel (0) target = $region61
  $region60: #{transformer_forward.8} parent=0 // pred_region
    _
  $region61: #{transformer_forward.8} parent=0 // pred_fallthru
    _
  %v51 = vld [vmem:[%s0] sm:$0xff]
  %v52 = vld [vmem:[%s0 + $0x8] sm:$0xff]
  %v53 = vld [vmem:[%s1] sm:$0xff]
  %v54 = vld [vmem:[%s1 + $0x8] sm:$0xff]
  %v55 = vld [vmem:[%s1 + $0x10] sm:$0xff]
  %v56 = vld [vmem:[%s1 + $0x18] sm:$0xff]
  %v57 = vld [vmem:[%s1 + $0x20] sm:$0xff]
  %v58 = vld [vmem:[%s1 + $0x28] sm:$0xff]
  %v59 = vld [vmem:[%s1 + $0x30] sm:$0xff]
  %v60 = vld [vmem:[%s1 + $0x38] sm:$0xff]
  %v61 = vld [vmem:[%s1 + $0x40] sm:$0xff]
  %v62 = vld [vmem:[%s1 + $0x48] sm:$0xff]
  %v63 = vld [vmem:[%s1 + $0x50] sm:$0xff]
  %v64 = vld [vmem:[%s1 + $0x58] sm:$0xff]
  %v65 = vld [vmem:[%s1 + $0x60] sm:$0xff]
  %v66 = vld [vmem:[%s1 + $0x68] sm:$0xff]
  %v67 = vld [vmem:[%s1 + $0x70] sm:$0xff]
  %v68 = vld [vmem:[%s1 + $0x78] sm:$0xff]
  %v69 = vpack.c.bf16 %v52, %v51
  %v70 = vld [vmem:[%s2] sm:$0xff]
  %v72 = vlaneseq
  %v73 = vshrl.u32 %v72, 7
  %v74 = vsub.s32 0, %v73
  %v75 = vrot.slane %v70, %v74
  %v76 = vlaneseq
  %v77 = vshrl.u32 %v76, 7
  %v78 = vsub.s32 1, %v77
  %v79 = vrot.slane %v70, %v78
  %v80 = vlaneseq
  %v81 = vshrl.u32 %v80, 7
  %v82 = vsub.s32 2, %v81
  %v83 = vrot.slane %v70, %v82
  %v84 = vlaneseq
  %v85 = vshrl.u32 %v84, 7
  %v86 = vsub.s32 3, %v85
  %v87 = vrot.slane %v70, %v86
  %v88 = vlaneseq
  %v89 = vshrl.u32 %v88, 7
  %v90 = vsub.s32 4, %v89
  %v91 = vrot.slane %v70, %v90
  %v92 = vlaneseq
  %v93 = vshrl.u32 %v92, 7
  %v94 = vsub.s32 5, %v93
  %v95 = vrot.slane %v70, %v94
  %v96 = vlaneseq
  %v97 = vshrl.u32 %v96, 7
  %v98 = vsub.s32 6, %v97
  %v99 = vrot.slane %v70, %v98
  %v100 = vlaneseq
  %v101 = vshrl.u32 %v100, 7
  %v102 = vsub.s32 7, %v101
  %v103 = vrot.slane %v70, %v102
  %v128 = vunpack.c.l.b16 %v53
  %v129 = vunpack.c.h.b16 %v53
  %v130 = vunpack.c.l.b16 %v54
  %v131 = vunpack.c.h.b16 %v54
  %v132 = vunpack.c.l.b16 %v55
  %v133 = vunpack.c.h.b16 %v55
  %v134 = vunpack.c.l.b16 %v56
  %v135 = vunpack.c.h.b16 %v56
  %v136 = vunpack.c.l.b16 %v57
  %v137 = vunpack.c.h.b16 %v57
  %v138 = vunpack.c.l.b16 %v58
  %v139 = vunpack.c.h.b16 %v58
  %v140 = vunpack.c.l.b16 %v59
  %v141 = vunpack.c.h.b16 %v59
  %v142 = vunpack.c.l.b16 %v60
  %v143 = vunpack.c.h.b16 %v60
  %v144 = vunpack.c.l.b16 %v61
  %v145 = vunpack.c.h.b16 %v61
  %v146 = vunpack.c.l.b16 %v62
  %v147 = vunpack.c.h.b16 %v62
  %v148 = vunpack.c.l.b16 %v63
  %v149 = vunpack.c.h.b16 %v63
  %v150 = vunpack.c.l.b16 %v64
  %v151 = vunpack.c.h.b16 %v64
  %v152 = vunpack.c.l.b16 %v65
  %v153 = vunpack.c.h.b16 %v65
  %v154 = vunpack.c.l.b16 %v66
  %v155 = vunpack.c.h.b16 %v66
  %v156 = vunpack.c.l.b16 %v67
  %v157 = vunpack.c.h.b16 %v67
  %v158 = vunpack.c.l.b16 %v68
  %v159 = vunpack.c.h.b16 %v68
  %v160 = vpack.c.b16 %v136, %v128
  %v161 = vpack.c.b16 %v137, %v129
  %v162 = vpack.c.b16 %v138, %v130
  %v163 = vpack.c.b16 %v139, %v131
  %v164 = vpack.c.b16 %v140, %v132
  %v165 = vpack.c.b16 %v141, %v133
  %v166 = vpack.c.b16 %v142, %v134
  %v167 = vpack.c.b16 %v143, %v135
  %v168 = vpack.c.b16 %v152, %v144
  %v169 = vpack.c.b16 %v153, %v145
  %v170 = vpack.c.b16 %v154, %v146
  %v171 = vpack.c.b16 %v155, %v147
  %v172 = vpack.c.b16 %v156, %v148
  %v173 = vpack.c.b16 %v157, %v149
  %v174 = vpack.c.b16 %v158, %v150
  %v175 = vpack.c.b16 %v159, %v151
  %vm192 = vcmask 261120
  %v194 = vsel %vm192, %v69, 0
  %196 = vmatprep.subr.bf16.mxu0 0
  %197 = vmatpush1.bf16.msra.mxu0 0
  %198 = vmatprep.subr.bf16.mxu0 0
  %199 = vmatpush1.bf16.msra.mxu0 0
  %200 = vmatprep.subr.bf16.mxu0 0
  %201 = vmatpush1.bf16.msra.mxu0 0
  %202 = vmatprep.subr.bf16.mxu0 0
  %203 = vmatpush1.bf16.msra.mxu0 0
  %204 = vmatprep.subr.bf16.mxu0 0
  %205 = vmatpush1.bf16.msra.mxu0 0
  %206 = vmatprep.subr.bf16.mxu0 0
  %207 = vmatpush1.bf16.msra.mxu0 0
  %208 = vmatprep.subr.bf16.mxu0 %v169
  %209 = vmatpush1.bf16.msra.mxu0 %v168
  %210 = vmatprep.subr.bf16.mxu0 %v161
  %211 = vmatpush1.bf16.msra.mxu0 %v160
  %212 = vmatprep.subr.bf16.mxu0 0
  %213 = vmatpush2.bf16.msra.mxu0 0
  %214 = vmatprep.subr.bf16.mxu0 0
  %215 = vmatpush2.bf16.msra.mxu0 0
  %216 = vmatprep.subr.bf16.mxu0 0
  %217 = vmatpush2.bf16.msra.mxu0 0
  %218 = vmatprep.subr.bf16.mxu0 0
  %219 = vmatpush2.bf16.msra.mxu0 0
  %220 = vmatprep.subr.bf16.mxu0 0
  %221 = vmatpush2.bf16.msra.mxu0 0
  %222 = vmatprep.subr.bf16.mxu0 0
  %223 = vmatpush2.bf16.msra.mxu0 0
  %224 = vmatprep.subr.bf16.mxu0 0
  %225 = vmatpush2.bf16.msra.mxu0 0
  %226 = vmatprep.subr.bf16.mxu0 0
  %227 = vmatpush2.bf16.msra.mxu0 0
  %228 = vmatprep.mubr.bf16.mxu0 0
  %229 = vmatmul.mubr.bf16.gmra.mxu0 %v194
  %v230 = vpop.f32.mrf.mxu0
  %v231 = vadd.f32 %v75, %v230
  %v232 = vpop.f32.mrf.mxu0
  %v233 = vadd.f32 %v79, %v232
  %v234 = vpop.f32.mrf.mxu0
  %v235 = vadd.f32 %v75, %v234
  %v236 = vpop.f32.mrf.mxu0
  %v237 = vadd.f32 %v79, %v236
  %238 = vdwg.mxu0
  %239 = vmatprep.subr.bf16.mxu0 0
  %240 = vmatpush1.bf16.msra.mxu0 0
  %241 = vmatprep.subr.bf16.mxu0 0
  %242 = vmatpush1.bf16.msra.mxu0 0
  %243 = vmatprep.subr.bf16.mxu0 0
  %244 = vmatpush1.bf16.msra.mxu0 0
  %245 = vmatprep.subr.bf16.mxu0 0
  %246 = vmatpush1.bf16.msra.mxu0 0
  %247 = vmatprep.subr.bf16.mxu0 0
  %248 = vmatpush1.bf16.msra.mxu0 0
  %249 = vmatprep.subr.bf16.mxu0 0
  %250 = vmatpush1.bf16.msra.mxu0 0
  %251 = vmatprep.subr.bf16.mxu0 %v171
  %252 = vmatpush1.bf16.msra.mxu0 %v170
  %253 = vmatprep.subr.bf16.mxu0 %v163
  %254 = vmatpush1.bf16.msra.mxu0 %v162
  %255 = vmatprep.subr.bf16.mxu0 0
  %256 = vmatpush2.bf16.msra.mxu0 0
  %257 = vmatprep.subr.bf16.mxu0 0
  %258 = vmatpush2.bf16.msra.mxu0 0
  %259 = vmatprep.subr.bf16.mxu0 0
  %260 = vmatpush2.bf16.msra.mxu0 0
  %261 = vmatprep.subr.bf16.mxu0 0
  %262 = vmatpush2.bf16.msra.mxu0 0
  %263 = vmatprep.subr.bf16.mxu0 0
  %264 = vmatpush2.bf16.msra.mxu0 0
  %265 = vmatprep.subr.bf16.mxu0 0
  %266 = vmatpush2.bf16.msra.mxu0 0
  %267 = vmatprep.subr.bf16.mxu0 0
  %268 = vmatpush2.bf16.msra.mxu0 0
  %269 = vmatprep.subr.bf16.mxu0 0
  %270 = vmatpush2.bf16.msra.mxu0 0
  %271 = vmatprep.mubr.bf16.mxu0 0
  %272 = vmatmul.mubr.bf16.gmra.mxu0 %v194
  %v273 = vpop.f32.mrf.mxu0
  %v274 = vadd.f32 %v83, %v273
  %v275 = vpop.f32.mrf.mxu0
  %v276 = vadd.f32 %v87, %v275
  %v277 = vpop.f32.mrf.mxu0
  %v278 = vadd.f32 %v83, %v277
  %v279 = vpop.f32.mrf.mxu0
  %v280 = vadd.f32 %v87, %v279
  %281 = vdwg.mxu0
  %282 = vmatprep.subr.bf16.mxu0 0
  %283 = vmatpush1.bf16.msra.mxu0 0
  %284 = vmatprep.subr.bf16.mxu0 0
  %285 = vmatpush1.bf16.msra.mxu0 0
  %286 = vmatprep.subr.bf16.mxu0 0
  %287 = vmatpush1.bf16.msra.mxu0 0
  %288 = vmatprep.subr.bf16.mxu0 0
  %289 = vmatpush1.bf16.msra.mxu0 0
  %290 = vmatprep.subr.bf16.mxu0 0
  %291 = vmatpush1.bf16.msra.mxu0 0
  %292 = vmatprep.subr.bf16.mxu0 0
  %293 = vmatpush1.bf16.msra.mxu0 0
  %294 = vmatprep.subr.bf16.mxu0 %v173
  %295 = vmatpush1.bf16.msra.mxu0 %v172
  %296 = vmatprep.subr.bf16.mxu0 %v165
  %297 = vmatpush1.bf16.msra.mxu0 %v164
  %298 = vmatprep.subr.bf16.mxu0 0
  %299 = vmatpush2.bf16.msra.mxu0 0
  %300 = vmatprep.subr.bf16.mxu0 0
  %301 = vmatpush2.bf16.msra.mxu0 0
  %302 = vmatprep.subr.bf16.mxu0 0
  %303 = vmatpush2.bf16.msra.mxu0 0
  %304 = vmatprep.subr.bf16.mxu0 0
  %305 = vmatpush2.bf16.msra.mxu0 0
  %306 = vmatprep.subr.bf16.mxu0 0
  %307 = vmatpush2.bf16.msra.mxu0 0
  %308 = vmatprep.subr.bf16.mxu0 0
  %309 = vmatpush2.bf16.msra.mxu0 0
  %310 = vmatprep.subr.bf16.mxu0 0
  %311 = vmatpush2.bf16.msra.mxu0 0
  %312 = vmatprep.subr.bf16.mxu0 0
  %313 = vmatpush2.bf16.msra.mxu0 0
  %314 = vmatprep.mubr.bf16.mxu0 0
  %315 = vmatmul.mubr.bf16.gmra.mxu0 %v194
  %v316 = vpop.f32.mrf.mxu0
  %v317 = vadd.f32 %v91, %v316
  %v318 = vpop.f32.mrf.mxu0
  %v319 = vadd.f32 %v95, %v318
  %v320 = vpop.f32.mrf.mxu0
  %v321 = vadd.f32 %v91, %v320
  %v322 = vpop.f32.mrf.mxu0
  %v323 = vadd.f32 %v95, %v322
  %324 = vdwg.mxu0
  %325 = vmatprep.subr.bf16.mxu0 0
  %326 = vmatpush1.bf16.msra.mxu0 0
  %327 = vmatprep.subr.bf16.mxu0 0
  %328 = vmatpush1.bf16.msra.mxu0 0
  %329 = vmatprep.subr.bf16.mxu0 0
  %330 = vmatpush1.bf16.msra.mxu0 0
  %331 = vmatprep.subr.bf16.mxu0 0
  %332 = vmatpush1.bf16.msra.mxu0 0
  %333 = vmatprep.subr.bf16.mxu0 0
  %334 = vmatpush1.bf16.msra.mxu0 0
  %335 = vmatprep.subr.bf16.mxu0 0
  %336 = vmatpush1.bf16.msra.mxu0 0
  %337 = vmatprep.subr.bf16.mxu0 %v175
  %338 = vmatpush1.bf16.msra.mxu0 %v174
  %339 = vmatprep.subr.bf16.mxu0 %v167
  %340 = vmatpush1.bf16.msra.mxu0 %v166
  %341 = vmatprep.subr.bf16.mxu0 0
  %342 = vmatpush2.bf16.msra.mxu0 0
  %343 = vmatprep.subr.bf16.mxu0 0
  %344 = vmatpush2.bf16.msra.mxu0 0
  %345 = vmatprep.subr.bf16.mxu0 0
  %346 = vmatpush2.bf16.msra.mxu0 0
  %347 = vmatprep.subr.bf16.mxu0 0
  %348 = vmatpush2.bf16.msra.mxu0 0
  %349 = vmatprep.subr.bf16.mxu0 0
  %350 = vmatpush2.bf16.msra.mxu0 0
  %351 = vmatprep.subr.bf16.mxu0 0
  %352 = vmatpush2.bf16.msra.mxu0 0
  %353 = vmatprep.subr.bf16.mxu0 0
  %354 = vmatpush2.bf16.msra.mxu0 0
  %355 = vmatprep.subr.bf16.mxu0 0
  %356 = vmatpush2.bf16.msra.mxu0 0
  %357 = vmatprep.mubr.bf16.mxu0 0
  %358 = vmatmul.mubr.bf16.gmra.mxu0 %v194
  %v359 = vpop.f32.mrf.mxu0
  %v360 = vadd.f32 %v99, %v359
  %v361 = vpop.f32.mrf.mxu0
  %v362 = vadd.f32 %v103, %v361
  %v363 = vpop.f32.mrf.mxu0
  %v364 = vadd.f32 %v99, %v363
  %v365 = vpop.f32.mrf.mxu0
  %v366 = vadd.f32 %v103, %v365
  %367 = vdwg.mxu0
  %v368 = vld [vmem:[%s3] sm:$0xff]
  %v369 = vld [vmem:[%s4] sm:$0xff]
  %v370 = vadd.f32 %v231, %v233
  %v371 = vadd.f32 %v370, %v274
  %v372 = vadd.f32 %v371, %v276
  %v373 = vadd.f32 %v372, %v317
  %v374 = vadd.f32 %v373, %v319
  %v375 = vadd.f32 %v374, %v360
  %v376 = vadd.f32 %v375, %v362
  %377 = vadd.xlane.f32.xlu0 %v376
  %v378 = vpop.xlane.xlu0 %377
  %v379 = vadd.f32 %v235, %v237
  %v380 = vadd.f32 %v379, %v278
  %v381 = vadd.f32 %v380, %v280
  %v382 = vadd.f32 %v381, %v321
  %v383 = vadd.f32 %v382, %v323
  %v384 = vadd.f32 %v383, %v364
  %v385 = vadd.f32 %v384, %v366
  %386 = vadd.xlane.f32.xlu0 %v385
  %v387 = vpop.xlane.xlu0 %386
  %v388 = vrcp.pop 1024.0
  %v389 = vmul.f32 %v378, %v388
  %v390 = vmul.f32 %v387, %v388
  %v391 = vsub.f32 %v231, %v389
  %v392 = vsub.f32 %v233, %v389
  %v393 = vsub.f32 %v274, %v389
  %v394 = vsub.f32 %v276, %v389
  %v395 = vsub.f32 %v317, %v389
  %v396 = vsub.f32 %v319, %v389
  %v397 = vsub.f32 %v360, %v389
  %v398 = vsub.f32 %v362, %v389
  %v399 = vsub.f32 %v235, %v390
  %v400 = vsub.f32 %v237, %v390
  %v401 = vsub.f32 %v278, %v390
  %v402 = vsub.f32 %v280, %v390
  %v403 = vsub.f32 %v321, %v390
  %v404 = vsub.f32 %v323, %v390
  %v405 = vsub.f32 %v364, %v390
  %v406 = vsub.f32 %v366, %v390
  %v407 = vmul.f32 %v391, %v391
  %v408 = vmul.f32 %v392, %v392
  %v409 = vmul.f32 %v393, %v393
  %v410 = vmul.f32 %v394, %v394
  %v411 = vmul.f32 %v395, %v395
  %v412 = vmul.f32 %v396, %v396
  %v413 = vmul.f32 %v397, %v397
  %v414 = vmul.f32 %v398, %v398
  %v415 = vmul.f32 %v399, %v399
  %v416 = vmul.f32 %v400, %v400
  %v417 = vmul.f32 %v401, %v401
  %v418 = vmul.f32 %v402, %v402
  %v419 = vmul.f32 %v403, %v403
  %v420 = vmul.f32 %v404, %v404
  %v421 = vmul.f32 %v405, %v405
  %v422 = vmul.f32 %v406, %v406
  %v423 = vadd.f32 %v407, %v408
  %v424 = vadd.f32 %v423, %v409
  %v425 = vadd.f32 %v424, %v410
  %v426 = vadd.f32 %v425, %v411
  %v427 = vadd.f32 %v426, %v412
  %v428 = vadd.f32 %v427, %v413
  %v429 = vadd.f32 %v428, %v414
  %430 = vadd.xlane.f32.xlu0 %v429
  %v431 = vpop.xlane.xlu0 %430
  %v432 = vadd.f32 %v415, %v416
  %v433 = vadd.f32 %v432, %v417
  %v434 = vadd.f32 %v433, %v418
  %v435 = vadd.f32 %v434, %v419
  %v436 = vadd.f32 %v435, %v420
  %v437 = vadd.f32 %v436, %v421
  %v438 = vadd.f32 %v437, %v422
  %439 = vadd.xlane.f32.xlu0 %v438
  %v440 = vpop.xlane.xlu0 %439
  %v441 = vmul.f32 %v431, %v388
  %v442 = vmul.f32 %v440, %v388
  %v443 = vadd.f32 %v441, 1e-05
  %v444 = vadd.f32 %v442, 1e-05
  %v445 = vrsqrt.pop %v443
  %v446 = vrsqrt.pop %v444
  %v447 = vmul.f32 %v391, %v445
  %v448 = vmul.f32 %v392, %v445
  %v449 = vmul.f32 %v393, %v445
  %v450 = vmul.f32 %v394, %v445
  %v451 = vmul.f32 %v395, %v445
  %v452 = vmul.f32 %v396, %v445
  %v453 = vmul.f32 %v397, %v445
  %v454 = vmul.f32 %v398, %v445
  %v455 = vmul.f32 %v399, %v446
  %v456 = vmul.f32 %v400, %v446
  %v457 = vmul.f32 %v401, %v446
  %v458 = vmul.f32 %v402, %v446
  %v459 = vmul.f32 %v403, %v446
  %v460 = vmul.f32 %v404, %v446
  %v461 = vmul.f32 %v405, %v446
  %v462 = vmul.f32 %v406, %v446
  %v464 = vlaneseq
  %v465 = vshrl.u32 %v464, 7
  %v466 = vsub.s32 0, %v465
  %v467 = vrot.slane %v368, %v466
  %v468 = vlaneseq
  %v469 = vshrl.u32 %v468, 7
  %v470 = vsub.s32 1, %v469
  %v471 = vrot.slane %v368, %v470
  %v472 = vlaneseq
  %v473 = vshrl.u32 %v472, 7
  %v474 = vsub.s32 2, %v473
  %v475 = vrot.slane %v368, %v474
  %v476 = vlaneseq
  %v477 = vshrl.u32 %v476, 7
  %v478 = vsub.s32 3, %v477
  %v479 = vrot.slane %v368, %v478
  %v480 = vlaneseq
  %v481 = vshrl.u32 %v480, 7
  %v482 = vsub.s32 4, %v481
  %v483 = vrot.slane %v368, %v482
  %v484 = vlaneseq
  %v485 = vshrl.u32 %v484, 7
  %v486 = vsub.s32 5, %v485
  %v487 = vrot.slane %v368, %v486
  %v488 = vlaneseq
  %v489 = vshrl.u32 %v488, 7
  %v490 = vsub.s32 6, %v489
  %v491 = vrot.slane %v368, %v490
  %v492 = vlaneseq
  %v493 = vshrl.u32 %v492, 7
  %v494 = vsub.s32 7, %v493
  %v495 = vrot.slane %v368, %v494
  %v504 = vmul.f32 %v447, %v467
  %v505 = vmul.f32 %v448, %v471
  %v506 = vmul.f32 %v449, %v475
  %v507 = vmul.f32 %v450, %v479
  %v508 = vmul.f32 %v451, %v483
  %v509 = vmul.f32 %v452, %v487
  %v510 = vmul.f32 %v453, %v491
  %v511 = vmul.f32 %v454, %v495
  %v512 = vmul.f32 %v455, %v467
  %v513 = vmul.f32 %v456, %v471
  %v514 = vmul.f32 %v457, %v475
  %v515 = vmul.f32 %v458, %v479
  %v516 = vmul.f32 %v459, %v483
  %v517 = vmul.f32 %v460, %v487
  %v518 = vmul.f32 %v461, %v491
  %v519 = vmul.f32 %v462, %v495
  %v521 = vlaneseq
  %v522 = vshrl.u32 %v521, 7
  %v523 = vsub.s32 0, %v522
  %v524 = vrot.slane %v369, %v523
  %v525 = vlaneseq
  %v526 = vshrl.u32 %v525, 7
  %v527 = vsub.s32 1, %v526
  %v528 = vrot.slane %v369, %v527
  %v529 = vlaneseq
  %v530 = vshrl.u32 %v529, 7
  %v531 = vsub.s32 2, %v530
  %v532 = vrot.slane %v369, %v531
  %v533 = vlaneseq
  %v534 = vshrl.u32 %v533, 7
  %v535 = vsub.s32 3, %v534
  %v536 = vrot.slane %v369, %v535
  %v537 = vlaneseq
  %v538 = vshrl.u32 %v537, 7
  %v539 = vsub.s32 4, %v538
  %v540 = vrot.slane %v369, %v539
  %v541 = vlaneseq
  %v542 = vshrl.u32 %v541, 7
  %v543 = vsub.s32 5, %v542
  %v544 = vrot.slane %v369, %v543
  %v545 = vlaneseq
  %v546 = vshrl.u32 %v545, 7
  %v547 = vsub.s32 6, %v546
  %v548 = vrot.slane %v369, %v547
  %v549 = vlaneseq
  %v550 = vshrl.u32 %v549, 7
  %v551 = vsub.s32 7, %v550
  %v552 = vrot.slane %v369, %v551
  %v561 = vadd.f32 %v504, %v524
  %v562 = vadd.f32 %v505, %v528
  %v563 = vadd.f32 %v506, %v532
  %v564 = vadd.f32 %v507, %v536
  %v565 = vadd.f32 %v508, %v540
  %v566 = vadd.f32 %v509, %v544
  %v567 = vadd.f32 %v510, %v548
  %v568 = vadd.f32 %v511, %v552
  %v569 = vadd.f32 %v512, %v524
  %v570 = vadd.f32 %v513, %v528
  %v571 = vadd.f32 %v514, %v532
  %v572 = vadd.f32 %v515, %v536
  %v573 = vadd.f32 %v516, %v540
  %v574 = vadd.f32 %v517, %v544
  %v575 = vadd.f32 %v518, %v548
  %v576 = vadd.f32 %v519, %v552
  %v577 = vmul.f32 %v561, 0.5
  %v578 = vmul.f32 %v562, 0.5
  %v579 = vmul.f32 %v563, 0.5
  %v580 = vmul.f32 %v564, 0.5
  %v581 = vmul.f32 %v565, 0.5
  %v582 = vmul.f32 %v566, 0.5
  %v583 = vmul.f32 %v567, 0.5
  %v584 = vmul.f32 %v568, 0.5
  %v585 = vmul.f32 %v569, 0.5
  %v586 = vmul.f32 %v570, 0.5
  %v587 = vmul.f32 %v571, 0.5
  %v588 = vmul.f32 %v572, 0.5
  %v589 = vmul.f32 %v573, 0.5
  %v590 = vmul.f32 %v574, 0.5
  %v591 = vmul.f32 %v575, 0.5
  %v592 = vmul.f32 %v576, 0.5
  %v593 = vrcp.pop 1.4142135
  %v594 = vmul.f32 %v561, %v593
  %v595 = vmul.f32 %v562, %v593
  %v596 = vmul.f32 %v563, %v593
  %v597 = vmul.f32 %v564, %v593
  %v598 = vmul.f32 %v565, %v593
  %v599 = vmul.f32 %v566, %v593
  %v600 = vmul.f32 %v567, %v593
  %v601 = vmul.f32 %v568, %v593
  %v602 = vmul.f32 %v569, %v593
  %v603 = vmul.f32 %v570, %v593
  %v604 = vmul.f32 %v571, %v593
  %v605 = vmul.f32 %v572, %v593
  %v606 = vmul.f32 %v573, %v593
  %v607 = vmul.f32 %v574, %v593
  %v608 = vmul.f32 %v575, %v593
  %v609 = vmul.f32 %v576, %v593
  %v610 = verf.f32.pop %v594
  %v611 = verf.f32.pop %v595
  %v612 = verf.f32.pop %v596
  %v613 = verf.f32.pop %v597
  %v614 = verf.f32.pop %v598
  %v615 = verf.f32.pop %v599
  %v616 = verf.f32.pop %v600
  %v617 = verf.f32.pop %v601
  %v618 = verf.f32.pop %v602
  %v619 = verf.f32.pop %v603
  %v620 = verf.f32.pop %v604
  %v621 = verf.f32.pop %v605
  %v622 = verf.f32.pop %v606
  %v623 = verf.f32.pop %v607
  %v624 = verf.f32.pop %v608
  %v625 = verf.f32.pop %v609
  %v626 = vadd.f32 %v610, 1.0
  %v627 = vadd.f32 %v611, 1.0
  %v628 = vadd.f32 %v612, 1.0
  %v629 = vadd.f32 %v613, 1.0
  %v630 = vadd.f32 %v614, 1.0
  %v631 = vadd.f32 %v615, 1.0
  %v632 = vadd.f32 %v616, 1.0
  %v633 = vadd.f32 %v617, 1.0
  %v634 = vadd.f32 %v618, 1.0
  %v635 = vadd.f32 %v619, 1.0
  %v636 = vadd.f32 %v620, 1.0
  %v637 = vadd.f32 %v621, 1.0
  %v638 = vadd.f32 %v622, 1.0
  %v639 = vadd.f32 %v623, 1.0
  %v640 = vadd.f32 %v624, 1.0
  %v641 = vadd.f32 %v625, 1.0
  %v642 = vmul.f32 %v577, %v626
  %v643 = vmul.f32 %v578, %v627
  %v644 = vmul.f32 %v579, %v628
  %v645 = vmul.f32 %v580, %v629
  %v646 = vmul.f32 %v581, %v630
  %v647 = vmul.f32 %v582, %v631
  %v648 = vmul.f32 %v583, %v632
  %v649 = vmul.f32 %v584, %v633
  %v650 = vmul.f32 %v585, %v634
  %v651 = vmul.f32 %v586, %v635
  %v652 = vmul.f32 %v587, %v636
  %v653 = vmul.f32 %v588, %v637
  %v654 = vmul.f32 %v589, %v638
  %v655 = vmul.f32 %v590, %v639
  %v656 = vmul.f32 %v591, %v640
  %v657 = vmul.f32 %v592, %v641
  %v658 = vld [vmem:[%s5] sm:$0xf]
  %v659 = vld [vmem:[%s5 + $0x4] sm:$0xf]
  %v660 = vld [vmem:[%s5 + $0x8] sm:$0xf]
  %v661 = vld [vmem:[%s5 + $0xc] sm:$0xf]
  %v662 = vld [vmem:[%s5 + $0x10] sm:$0xf]
  %v663 = vld [vmem:[%s5 + $0x14] sm:$0xf]
  %v664 = vld [vmem:[%s5 + $0x18] sm:$0xf]
  %v665 = vld [vmem:[%s5 + $0x1c] sm:$0xf]
  %v666 = vld [vmem:[%s5 + $0x20] sm:$0xf]
  %v667 = vld [vmem:[%s5 + $0x24] sm:$0xf]
  %v668 = vld [vmem:[%s5 + $0x28] sm:$0xf]
  %v669 = vld [vmem:[%s5 + $0x2c] sm:$0xf]
  %v670 = vld [vmem:[%s5 + $0x30] sm:$0xf]
  %v671 = vld [vmem:[%s5 + $0x34] sm:$0xf]
  %v672 = vld [vmem:[%s5 + $0x38] sm:$0xf]
  %v673 = vld [vmem:[%s5 + $0x3c] sm:$0xf]
  %v674 = vld [vmem:[%s5 + $0x40] sm:$0xf]
  %v675 = vld [vmem:[%s5 + $0x44] sm:$0xf]
  %v676 = vld [vmem:[%s5 + $0x48] sm:$0xf]
  %v677 = vld [vmem:[%s5 + $0x4c] sm:$0xf]
  %v678 = vld [vmem:[%s5 + $0x50] sm:$0xf]
  %v679 = vld [vmem:[%s5 + $0x54] sm:$0xf]
  %v680 = vld [vmem:[%s5 + $0x58] sm:$0xf]
  %v681 = vld [vmem:[%s5 + $0x5c] sm:$0xf]
  %v682 = vld [vmem:[%s5 + $0x60] sm:$0xf]
  %v683 = vld [vmem:[%s5 + $0x64] sm:$0xf]
  %v684 = vld [vmem:[%s5 + $0x68] sm:$0xf]
  %v685 = vld [vmem:[%s5 + $0x6c] sm:$0xf]
  %v686 = vld [vmem:[%s5 + $0x70] sm:$0xf]
  %v687 = vld [vmem:[%s5 + $0x74] sm:$0xf]
  %v688 = vld [vmem:[%s5 + $0x78] sm:$0xf]
  %v689 = vld [vmem:[%s5 + $0x7c] sm:$0xf]
  %v690 = vld [vmem:[%s5 + $0x80] sm:$0xf]
  %v691 = vld [vmem:[%s5 + $0x84] sm:$0xf]
  %v692 = vld [vmem:[%s5 + $0x88] sm:$0xf]
  %v693 = vld [vmem:[%s5 + $0x8c] sm:$0xf]
  %v694 = vld [vmem:[%s5 + $0x90] sm:$0xf]
  %v695 = vld [vmem:[%s5 + $0x94] sm:$0xf]
  %v696 = vld [vmem:[%s5 + $0x98] sm:$0xf]
  %v697 = vld [vmem:[%s5 + $0x9c] sm:$0xf]
  %v698 = vld [vmem:[%s5 + $0xa0] sm:$0xf]
  %v699 = vld [vmem:[%s5 + $0xa4] sm:$0xf]
  %v700 = vld [vmem:[%s5 + $0xa8] sm:$0xf]
  %v701 = vld [vmem:[%s5 + $0xac] sm:$0xf]
  %v702 = vld [vmem:[%s5 + $0xb0] sm:$0xf]
  %v703 = vld [vmem:[%s5 + $0xb4] sm:$0xf]
  %v704 = vld [vmem:[%s5 + $0xb8] sm:$0xf]
  %v705 = vld [vmem:[%s5 + $0xbc] sm:$0xf]
  %v706 = vld [vmem:[%s5 + $0xc0] sm:$0xf]
  %v707 = vld [vmem:[%s5 + $0xc4] sm:$0xf]
  %v708 = vld [vmem:[%s5 + $0xc8] sm:$0xf]
  %v709 = vld [vmem:[%s5 + $0xcc] sm:$0xf]
  %v710 = vld [vmem:[%s5 + $0xd0] sm:$0xf]
  %v711 = vld [vmem:[%s5 + $0xd4] sm:$0xf]
  %v712 = vld [vmem:[%s5 + $0xd8] sm:$0xf]
  %v713 = vld [vmem:[%s5 + $0xdc] sm:$0xf]
  %v714 = vld [vmem:[%s5 + $0xe0] sm:$0xf]
  %v715 = vld [vmem:[%s5 + $0xe4] sm:$0xf]
  %v716 = vld [vmem:[%s5 + $0xe8] sm:$0xf]
  %v717 = vld [vmem:[%s5 + $0xec] sm:$0xf]
  %v718 = vld [vmem:[%s5 + $0xf0] sm:$0xf]
  %v719 = vld [vmem:[%s5 + $0xf4] sm:$0xf]
  %v720 = vld [vmem:[%s5 + $0xf8] sm:$0xf]
  %v721 = vld [vmem:[%s5 + $0xfc] sm:$0xf]
  %v722 = vld [vmem:[%s5 + $0x100] sm:$0xf]
  %v723 = vld [vmem:[%s5 + $0x104] sm:$0xf]
  %v724 = vld [vmem:[%s5 + $0x108] sm:$0xf]
  %v725 = vld [vmem:[%s5 + $0x10c] sm:$0xf]
  %v726 = vld [vmem:[%s5 + $0x110] sm:$0xf]
  %v727 = vld [vmem:[%s5 + $0x114] sm:$0xf]
  %v728 = vld [vmem:[%s5 + $0x118] sm:$0xf]
  %v729 = vld [vmem:[%s5 + $0x11c] sm:$0xf]
  %v730 = vld [vmem:[%s5 + $0x120] sm:$0xf]
  %v731 = vld [vmem:[%s5 + $0x124] sm:$0xf]
  %v732 = vld [vmem:[%s5 + $0x128] sm:$0xf]
  %v733 = vld [vmem:[%s5 + $0x12c] sm:$0xf]
  %v734 = vld [vmem:[%s5 + $0x130] sm:$0xf]
  %v735 = vld [vmem:[%s5 + $0x134] sm:$0xf]
  %v736 = vld [vmem:[%s5 + $0x138] sm:$0xf]
  %v737 = vld [vmem:[%s5 + $0x13c] sm:$0xf]
  %v738 = vld [vmem:[%s5 + $0x140] sm:$0xf]
  %v739 = vld [vmem:[%s5 + $0x144] sm:$0xf]
  %v740 = vld [vmem:[%s5 + $0x148] sm:$0xf]
  %v741 = vld [vmem:[%s5 + $0x14c] sm:$0xf]
  %v742 = vld [vmem:[%s5 + $0x150] sm:$0xf]
  %v743 = vld [vmem:[%s5 + $0x154] sm:$0xf]
  %v744 = vld [vmem:[%s5 + $0x158] sm:$0xf]
  %v745 = vld [vmem:[%s5 + $0x15c] sm:$0xf]
  %v746 = vld [vmem:[%s5 + $0x160] sm:$0xf]
  %v747 = vld [vmem:[%s5 + $0x164] sm:$0xf]
  %v748 = vld [vmem:[%s5 + $0x168] sm:$0xf]
  %v749 = vld [vmem:[%s5 + $0x16c] sm:$0xf]
  %v750 = vld [vmem:[%s5 + $0x170] sm:$0xf]
  %v751 = vld [vmem:[%s5 + $0x174] sm:$0xf]
  %v752 = vld [vmem:[%s5 + $0x178] sm:$0xf]
  %v753 = vld [vmem:[%s5 + $0x17c] sm:$0xf]
  %v754 = vld [vmem:[%s5 + $0x180] sm:$0xf]
  %v755 = vld [vmem:[%s5 + $0x184] sm:$0xf]
  %v756 = vld [vmem:[%s5 + $0x188] sm:$0xf]
  %v757 = vld [vmem:[%s5 + $0x18c] sm:$0xf]
  %v758 = vld [vmem:[%s5 + $0x190] sm:$0xf]
  %v759 = vld [vmem:[%s5 + $0x194] sm:$0xf]
  %v760 = vld [vmem:[%s5 + $0x198] sm:$0xf]
  %v761 = vld [vmem:[%s5 + $0x19c] sm:$0xf]
  %v762 = vld [vmem:[%s5 + $0x1a0] sm:$0xf]
  %v763 = vld [vmem:[%s5 + $0x1a4] sm:$0xf]
  %v764 = vld [vmem:[%s5 + $0x1a8] sm:$0xf]
  %v765 = vld [vmem:[%s5 + $0x1ac] sm:$0xf]
  %v766 = vld [vmem:[%s5 + $0x1b0] sm:$0xf]
  %v767 = vld [vmem:[%s5 + $0x1b4] sm:$0xf]
  %v768 = vld [vmem:[%s5 + $0x1b8] sm:$0xf]
  %v769 = vld [vmem:[%s5 + $0x1bc] sm:$0xf]
  %v770 = vld [vmem:[%s5 + $0x1c0] sm:$0xf]
  %v771 = vld [vmem:[%s5 + $0x1c4] sm:$0xf]
  %v772 = vld [vmem:[%s5 + $0x1c8] sm:$0xf]
  %v773 = vld [vmem:[%s5 + $0x1cc] sm:$0xf]
  %v774 = vld [vmem:[%s5 + $0x1d0] sm:$0xf]
  %v775 = vld [vmem:[%s5 + $0x1d4] sm:$0xf]
  %v776 = vld [vmem:[%s5 + $0x1d8] sm:$0xf]
  %v777 = vld [vmem:[%s5 + $0x1dc] sm:$0xf]
  %v778 = vld [vmem:[%s5 + $0x1e0] sm:$0xf]
  %v779 = vld [vmem:[%s5 + $0x1e4] sm:$0xf]
  %v780 = vld [vmem:[%s5 + $0x1e8] sm:$0xf]
  %v781 = vld [vmem:[%s5 + $0x1ec] sm:$0xf]
  %v782 = vld [vmem:[%s5 + $0x1f0] sm:$0xf]
  %v783 = vld [vmem:[%s5 + $0x1f4] sm:$0xf]
  %v784 = vld [vmem:[%s5 + $0x1f8] sm:$0xf]
  %v785 = vld [vmem:[%s5 + $0x1fc] sm:$0xf]
  %v786 = vpack.c.bf16 %v650, %v642
  %v787 = vpack.c.bf16 %v651, %v643
  %v788 = vpack.c.bf16 %v652, %v644
  %v789 = vpack.c.bf16 %v653, %v645
  %v790 = vpack.c.bf16 %v654, %v646
  %v791 = vpack.c.bf16 %v655, %v647
  %v792 = vpack.c.bf16 %v656, %v648
  %v793 = vpack.c.bf16 %v657, %v649
  %v794 = vld [vmem:[%s6] sm:$0x1]
  %v796 = vlaneseq
  %v797 = vshrl.u32 %v796, 7
  %v798 = vsub.s32 0, %v797
  %v799 = vrot.slane %v794, %v798
  %v929 = vunpack.c.l.b16 %v658
  %v930 = vunpack.c.l.b16 %v659
  %v931 = vunpack.c.l.b16 %v660
  %v932 = vunpack.c.l.b16 %v661
  %v933 = vunpack.c.l.b16 %v662
  %v934 = vunpack.c.l.b16 %v663
  %v935 = vunpack.c.l.b16 %v664
  %v936 = vunpack.c.l.b16 %v665
  %v937 = vunpack.c.l.b16 %v666
  %v938 = vunpack.c.l.b16 %v667
  %v939 = vunpack.c.l.b16 %v668
  %v940 = vunpack.c.l.b16 %v669
  %v941 = vunpack.c.l.b16 %v670
  %v942 = vunpack.c.l.b16 %v671
  %v943 = vunpack.c.l.b16 %v672
  %v944 = vunpack.c.l.b16 %v673
  %v945 = vunpack.c.l.b16 %v674
  %v946 = vunpack.c.l.b16 %v675
  %v947 = vunpack.c.l.b16 %v676
  %v948 = vunpack.c.l.b16 %v677
  %v949 = vunpack.c.l.b16 %v678
  %v950 = vunpack.c.l.b16 %v679
  %v951 = vunpack.c.l.b16 %v680
  %v952 = vunpack.c.l.b16 %v681
  %v953 = vunpack.c.l.b16 %v682
  %v954 = vunpack.c.l.b16 %v683
  %v955 = vunpack.c.l.b16 %v684
  %v956 = vunpack.c.l.b16 %v685
  %v957 = vunpack.c.l.b16 %v686
  %v958 = vunpack.c.l.b16 %v687
  %v959 = vunpack.c.l.b16 %v688
  %v960 = vunpack.c.l.b16 %v689
  %v961 = vunpack.c.l.b16 %v690
  %v962 = vunpack.c.l.b16 %v691
  %v963 = vunpack.c.l.b16 %v692
  %v964 = vunpack.c.l.b16 %v693
  %v965 = vunpack.c.l.b16 %v694
  %v966 = vunpack.c.l.b16 %v695
  %v967 = vunpack.c.l.b16 %v696
  %v968 = vunpack.c.l.b16 %v697
  %v969 = vunpack.c.l.b16 %v698
  %v970 = vunpack.c.l.b16 %v699
  %v971 = vunpack.c.l.b16 %v700
  %v972 = vunpack.c.l.b16 %v701
  %v973 = vunpack.c.l.b16 %v702
  %v974 = vunpack.c.l.b16 %v703
  %v975 = vunpack.c.l.b16 %v704
  %v976 = vunpack.c.l.b16 %v705
  %v977 = vunpack.c.l.b16 %v706
  %v978 = vunpack.c.l.b16 %v707
  %v979 = vunpack.c.l.b16 %v708
  %v980 = vunpack.c.l.b16 %v709
  %v981 = vunpack.c.l.b16 %v710
  %v982 = vunpack.c.l.b16 %v711
  %v983 = vunpack.c.l.b16 %v712
  %v984 = vunpack.c.l.b16 %v713
  %v985 = vunpack.c.l.b16 %v714
  %v986 = vunpack.c.l.b16 %v715
  %v987 = vunpack.c.l.b16 %v716
  %v988 = vunpack.c.l.b16 %v717
  %v989 = vunpack.c.l.b16 %v718
  %v990 = vunpack.c.l.b16 %v719
  %v991 = vunpack.c.l.b16 %v720
  %v992 = vunpack.c.l.b16 %v721
  %v993 = vunpack.c.l.b16 %v722
  %v994 = vunpack.c.l.b16 %v723
  %v995 = vunpack.c.l.b16 %v724
  %v996 = vunpack.c.l.b16 %v725
  %v997 = vunpack.c.l.b16 %v726
  %v998 = vunpack.c.l.b16 %v727
  %v999 = vunpack.c.l.b16 %v728
  %v1000 = vunpack.c.l.b16 %v729
  %v1001 = vunpack.c.l.b16 %v730
  %v1002 = vunpack.c.l.b16 %v731
  %v1003 = vunpack.c.l.b16 %v732
  %v1004 = vunpack.c.l.b16 %v733
  %v1005 = vunpack.c.l.b16 %v734
  %v1006 = vunpack.c.l.b16 %v735
  %v1007 = vunpack.c.l.b16 %v736
  %v1008 = vunpack.c.l.b16 %v737
  %v1009 = vunpack.c.l.b16 %v738
  %v1010 = vunpack.c.l.b16 %v739
  %v1011 = vunpack.c.l.b16 %v740
  %v1012 = vunpack.c.l.b16 %v741
  %v1013 = vunpack.c.l.b16 %v742
  %v1014 = vunpack.c.l.b16 %v743
  %v1015 = vunpack.c.l.b16 %v744
  %v1016 = vunpack.c.l.b16 %v745
  %v1017 = vunpack.c.l.b16 %v746
  %v1018 = vunpack.c.l.b16 %v747
  %v1019 = vunpack.c.l.b16 %v748
  %v1020 = vunpack.c.l.b16 %v749
  %v1021 = vunpack.c.l.b16 %v750
  %v1022 = vunpack.c.l.b16 %v751
  %v1023 = vunpack.c.l.b16 %v752
  %v1024 = vunpack.c.l.b16 %v753
  %v1025 = vunpack.c.l.b16 %v754
  %v1026 = vunpack.c.l.b16 %v755
  %v1027 = vunpack.c.l.b16 %v756
  %v1028 = vunpack.c.l.b16 %v757
  %v1029 = vunpack.c.l.b16 %v758
  %v1030 = vunpack.c.l.b16 %v759
  %v1031 = vunpack.c.l.b16 %v760
  %v1032 = vunpack.c.l.b16 %v761
  %v1033 = vunpack.c.l.b16 %v762
  %v1034 = vunpack.c.l.b16 %v763
  %v1035 = vunpack.c.l.b16 %v764
  %v1036 = vunpack.c.l.b16 %v765
  %v1037 = vunpack.c.l.b16 %v766
  %v1038 = vunpack.c.l.b16 %v767
  %v1039 = vunpack.c.l.b16 %v768
  %v1040 = vunpack.c.l.b16 %v769
  %v1041 = vunpack.c.l.b16 %v770
  %v1042 = vunpack.c.l.b16 %v771
  %v1043 = vunpack.c.l.b16 %v772
  %v1044 = vunpack.c.l.b16 %v773
  %v1045 = vunpack.c.l.b16 %v774
  %v1046 = vunpack.c.l.b16 %v775
  %v1047 = vunpack.c.l.b16 %v776
  %v1048 = vunpack.c.l.b16 %v777
  %v1049 = vunpack.c.l.b16 %v778
  %v1050 = vunpack.c.l.b16 %v779
  %v1051 = vunpack.c.l.b16 %v780
  %v1052 = vunpack.c.l.b16 %v781
  %v1053 = vunpack.c.l.b16 %v782
  %v1054 = vunpack.c.l.b16 %v783
  %v1055 = vunpack.c.l.b16 %v784
  %v1056 = vunpack.c.l.b16 %v785
  %v1057 = vpack.c.b16 %v930, %v929
  %v1058 = vpack.c.b16 %v932, %v931
  %v1059 = vpack.c.b16 %v934, %v933
  %v1060 = vpack.c.b16 %v936, %v935
  %v1061 = vpack.c.b16 %v938, %v937
  %v1062 = vpack.c.b16 %v940, %v939
  %v1063 = vpack.c.b16 %v942, %v941
  %v1064 = vpack.c.b16 %v944, %v943
  %v1065 = vpack.c.b16 %v946, %v945
  %v1066 = vpack.c.b16 %v948, %v947
  %v1067 = vpack.c.b16 %v950, %v949
  %v1068 = vpack.c.b16 %v952, %v951
  %v1069 = vpack.c.b16 %v954, %v953
  %v1070 = vpack.c.b16 %v956, %v955
  %v1071 = vpack.c.b16 %v958, %v957
  %v1072 = vpack.c.b16 %v960, %v959
  %v1073 = vpack.c.b16 %v962, %v961
  %v1074 = vpack.c.b16 %v964, %v963
  %v1075 = vpack.c.b16 %v966, %v965
  %v1076 = vpack.c.b16 %v968, %v967
  %v1077 = vpack.c.b16 %v970, %v969
  %v1078 = vpack.c.b16 %v972, %v971
  %v1079 = vpack.c.b16 %v974, %v973
  %v1080 = vpack.c.b16 %v976, %v975
  %v1081 = vpack.c.b16 %v978, %v977
  %v1082 = vpack.c.b16 %v980, %v979
  %v1083 = vpack.c.b16 %v982, %v981
  %v1084 = vpack.c.b16 %v984, %v983
  %v1085 = vpack.c.b16 %v986, %v985
  %v1086 = vpack.c.b16 %v988, %v987
  %v1087 = vpack.c.b16 %v990, %v989
  %v1088 = vpack.c.b16 %v992, %v991
  %v1089 = vpack.c.b16 %v994, %v993
  %v1090 = vpack.c.b16 %v996, %v995
  %v1091 = vpack.c.b16 %v998, %v997
  %v1092 = vpack.c.b16 %v1000, %v999
  %v1093 = vpack.c.b16 %v1002, %v1001
  %v1094 = vpack.c.b16 %v1004, %v1003
  %v1095 = vpack.c.b16 %v1006, %v1005
  %v1096 = vpack.c.b16 %v1008, %v1007
  %v1097 = vpack.c.b16 %v1010, %v1009
  %v1098 = vpack.c.b16 %v1012, %v1011
  %v1099 = vpack.c.b16 %v1014, %v1013
  %v1100 = vpack.c.b16 %v1016, %v1015
  %v1101 = vpack.c.b16 %v1018, %v1017
  %v1102 = vpack.c.b16 %v1020, %v1019
  %v1103 = vpack.c.b16 %v1022, %v1021
  %v1104 = vpack.c.b16 %v1024, %v1023
  %v1105 = vpack.c.b16 %v1026, %v1025
  %v1106 = vpack.c.b16 %v1028, %v1027
  %v1107 = vpack.c.b16 %v1030, %v1029
  %v1108 = vpack.c.b16 %v1032, %v1031
  %v1109 = vpack.c.b16 %v1034, %v1033
  %v1110 = vpack.c.b16 %v1036, %v1035
  %v1111 = vpack.c.b16 %v1038, %v1037
  %v1112 = vpack.c.b16 %v1040, %v1039
  %v1113 = vpack.c.b16 %v1042, %v1041
  %v1114 = vpack.c.b16 %v1044, %v1043
  %v1115 = vpack.c.b16 %v1046, %v1045
  %v1116 = vpack.c.b16 %v1048, %v1047
  %v1117 = vpack.c.b16 %v1050, %v1049
  %v1118 = vpack.c.b16 %v1052, %v1051
  %v1119 = vpack.c.b16 %v1054, %v1053
  %v1120 = vpack.c.b16 %v1056, %v1055
  %1185 = vmatprep.subr.bf16.mxu0 0
  %1186 = vmatpush1.bf16.msra.mxu0 %v1064
  %1187 = vmatprep.subr.bf16.mxu0 0
  %1188 = vmatpush1.bf16.msra.mxu0 %v1063
  %1189 = vmatprep.subr.bf16.mxu0 0
  %1190 = vmatpush1.bf16.msra.mxu0 %v1062
  %1191 = vmatprep.subr.bf16.mxu0 0
  %1192 = vmatpush1.bf16.msra.mxu0 %v1061
  %1193 = vmatprep.subr.bf16.mxu0 0
  %1194 = vmatpush1.bf16.msra.mxu0 %v1060
  %1195 = vmatprep.subr.bf16.mxu0 0
  %1196 = vmatpush1.bf16.msra.mxu0 %v1059
  %1197 = vmatprep.subr.bf16.mxu0 0
  %1198 = vmatpush1.bf16.msra.mxu0 %v1058
  %1199 = vmatprep.subr.bf16.mxu0 0
  %1200 = vmatpush1.bf16.msra.mxu0 %v1057
  %1201 = vmatprep.subr.bf16.mxu0 0
  %1202 = vmatpush2.bf16.msra.mxu0 %v1072
  %1203 = vmatprep.subr.bf16.mxu0 0
  %1204 = vmatpush2.bf16.msra.mxu0 %v1071
  %1205 = vmatprep.subr.bf16.mxu0 0
  %1206 = vmatpush2.bf16.msra.mxu0 %v1070
  %1207 = vmatprep.subr.bf16.mxu0 0
  %1208 = vmatpush2.bf16.msra.mxu0 %v1069
  %1209 = vmatprep.subr.bf16.mxu0 0
  %1210 = vmatpush2.bf16.msra.mxu0 %v1068
  %1211 = vmatprep.subr.bf16.mxu0 0
  %1212 = vmatpush2.bf16.msra.mxu0 %v1067
  %1213 = vmatprep.subr.bf16.mxu0 0
  %1214 = vmatpush2.bf16.msra.mxu0 %v1066
  %1215 = vmatprep.subr.bf16.mxu0 0
  %1216 = vmatpush2.bf16.msra.mxu0 %v1065
  %1217 = vmatprep.mubr.bf16.mxu0 %v787
  %1218 = vmatmul.mubr.bf16.gmra.mxu0 %v786
  %v1219 = vpop.f32.mrf.mxu0
  %v1220 = vadd.f32 %v799, %v1219
  %v1221 = vpop.f32.mrf.mxu0
  %v1222 = vpop.f32.mrf.mxu0
  %v1223 = vadd.f32 %v799, %v1222
  %v1224 = vpop.f32.mrf.mxu0
  %1225 = vdwg.mxu0
  %1226 = vmatprep.subr.bf16.mxu0 0
  %1227 = vmatpush1.bf16.msra.mxu0 %v1080
  %1228 = vmatprep.subr.bf16.mxu0 0
  %1229 = vmatpush1.bf16.msra.mxu0 %v1079
  %1230 = vmatprep.subr.bf16.mxu0 0
  %1231 = vmatpush1.bf16.msra.mxu0 %v1078
  %1232 = vmatprep.subr.bf16.mxu0 0
  %1233 = vmatpush1.bf16.msra.mxu0 %v1077
  %1234 = vmatprep.subr.bf16.mxu0 0
  %1235 = vmatpush1.bf16.msra.mxu0 %v1076
  %1236 = vmatprep.subr.bf16.mxu0 0
  %1237 = vmatpush1.bf16.msra.mxu0 %v1075
  %1238 = vmatprep.subr.bf16.mxu0 0
  %1239 = vmatpush1.bf16.msra.mxu0 %v1074
  %1240 = vmatprep.subr.bf16.mxu0 0
  %1241 = vmatpush1.bf16.msra.mxu0 %v1073
  %1242 = vmatprep.subr.bf16.mxu0 0
  %1243 = vmatpush2.bf16.msra.mxu0 %v1088
  %1244 = vmatprep.subr.bf16.mxu0 0
  %1245 = vmatpush2.bf16.msra.mxu0 %v1087
  %1246 = vmatprep.subr.bf16.mxu0 0
  %1247 = vmatpush2.bf16.msra.mxu0 %v1086
  %1248 = vmatprep.subr.bf16.mxu0 0
  %1249 = vmatpush2.bf16.msra.mxu0 %v1085
  %1250 = vmatprep.subr.bf16.mxu0 0
  %1251 = vmatpush2.bf16.msra.mxu0 %v1084
  %1252 = vmatprep.subr.bf16.mxu0 0
  %1253 = vmatpush2.bf16.msra.mxu0 %v1083
  %1254 = vmatprep.subr.bf16.mxu0 0
  %1255 = vmatpush2.bf16.msra.mxu0 %v1082
  %1256 = vmatprep.subr.bf16.mxu0 0
  %1257 = vmatpush2.bf16.msra.mxu0 %v1081
  %1258 = vmatprep.mubr.bf16.mxu0 %v789
  %1259 = vmatmul.mubr.bf16.gmra.mxu0 %v788
  %v1260 = vpop.f32.mrf.mxu0
  %v1261 = vadd.f32 %v1220, %v1260
  %v1262 = vpop.f32.mrf.mxu0
  %v1263 = vpop.f32.mrf.mxu0
  %v1264 = vadd.f32 %v1223, %v1263
  %v1265 = vpop.f32.mrf.mxu0
  %1266 = vdwg.mxu0
  %1267 = vmatprep.subr.bf16.mxu0 0
  %1268 = vmatpush1.bf16.msra.mxu0 %v1096
  %1269 = vmatprep.subr.bf16.mxu0 0
  %1270 = vmatpush1.bf16.msra.mxu0 %v1095
  %1271 = vmatprep.subr.bf16.mxu0 0
  %1272 = vmatpush1.bf16.msra.mxu0 %v1094
  %1273 = vmatprep.subr.bf16.mxu0 0
  %1274 = vmatpush1.bf16.msra.mxu0 %v1093
  %1275 = vmatprep.subr.bf16.mxu0 0
  %1276 = vmatpush1.bf16.msra.mxu0 %v1092
  %1277 = vmatprep.subr.bf16.mxu0 0
  %1278 = vmatpush1.bf16.msra.mxu0 %v1091
  %1279 = vmatprep.subr.bf16.mxu0 0
  %1280 = vmatpush1.bf16.msra.mxu0 %v1090
  %1281 = vmatprep.subr.bf16.mxu0 0
  %1282 = vmatpush1.bf16.msra.mxu0 %v1089
  %1283 = vmatprep.subr.bf16.mxu0 0
  %1284 = vmatpush2.bf16.msra.mxu0 %v1104
  %1285 = vmatprep.subr.bf16.mxu0 0
  %1286 = vmatpush2.bf16.msra.mxu0 %v1103
  %1287 = vmatprep.subr.bf16.mxu0 0
  %1288 = vmatpush2.bf16.msra.mxu0 %v1102
  %1289 = vmatprep.subr.bf16.mxu0 0
  %1290 = vmatpush2.bf16.msra.mxu0 %v1101
  %1291 = vmatprep.subr.bf16.mxu0 0
  %1292 = vmatpush2.bf16.msra.mxu0 %v1100
  %1293 = vmatprep.subr.bf16.mxu0 0
  %1294 = vmatpush2.bf16.msra.mxu0 %v1099
  %1295 = vmatprep.subr.bf16.mxu0 0
  %1296 = vmatpush2.bf16.msra.mxu0 %v1098
  %1297 = vmatprep.subr.bf16.mxu0 0
  %1298 = vmatpush2.bf16.msra.mxu0 %v1097
  %1299 = vmatprep.mubr.bf16.mxu0 %v791
  %1300 = vmatmul.mubr.bf16.gmra.mxu0 %v790
  %v1301 = vpop.f32.mrf.mxu0
  %v1302 = vadd.f32 %v1261, %v1301
  %v1303 = vpop.f32.mrf.mxu0
  %v1304 = vpop.f32.mrf.mxu0
  %v1305 = vadd.f32 %v1264, %v1304
  %v1306 = vpop.f32.mrf.mxu0
  %1307 = vdwg.mxu0
  %1308 = vmatprep.subr.bf16.mxu0 0
  %1309 = vmatpush1.bf16.msra.mxu0 %v1112
  %1310 = vmatprep.subr.bf16.mxu0 0
  %1311 = vmatpush1.bf16.msra.mxu0 %v1111
  %1312 = vmatprep.subr.bf16.mxu0 0
  %1313 = vmatpush1.bf16.msra.mxu0 %v1110
  %1314 = vmatprep.subr.bf16.mxu0 0
  %1315 = vmatpush1.bf16.msra.mxu0 %v1109
  %1316 = vmatprep.subr.bf16.mxu0 0
  %1317 = vmatpush1.bf16.msra.mxu0 %v1108
  %1318 = vmatprep.subr.bf16.mxu0 0
  %1319 = vmatpush1.bf16.msra.mxu0 %v1107
  %1320 = vmatprep.subr.bf16.mxu0 0
  %1321 = vmatpush1.bf16.msra.mxu0 %v1106
  %1322 = vmatprep.subr.bf16.mxu0 0
  %1323 = vmatpush1.bf16.msra.mxu0 %v1105
  %1324 = vmatprep.subr.bf16.mxu0 0
  %1325 = vmatpush2.bf16.msra.mxu0 %v1120
  %1326 = vmatprep.subr.bf16.mxu0 0
  %1327 = vmatpush2.bf16.msra.mxu0 %v1119
  %1328 = vmatprep.subr.bf16.mxu0 0
  %1329 = vmatpush2.bf16.msra.mxu0 %v1118
  %1330 = vmatprep.subr.bf16.mxu0 0
  %1331 = vmatpush2.bf16.msra.mxu0 %v1117
  %1332 = vmatprep.subr.bf16.mxu0 0
  %1333 = vmatpush2.bf16.msra.mxu0 %v1116
  %1334 = vmatprep.subr.bf16.mxu0 0
  %1335 = vmatpush2.bf16.msra.mxu0 %v1115
  %1336 = vmatprep.subr.bf16.mxu0 0
  %1337 = vmatpush2.bf16.msra.mxu0 %v1114
  %1338 = vmatprep.subr.bf16.mxu0 0
  %1339 = vmatpush2.bf16.msra.mxu0 %v1113
  %1340 = vmatprep.mubr.bf16.mxu0 %v793
  %1341 = vmatmul.mubr.bf16.gmra.mxu0 %v792
  %v1342 = vpop.f32.mrf.mxu0
  %v1343 = vadd.f32 %v1302, %v1342
  %v1344 = vpop.f32.mrf.mxu0
  %v1345 = vpop.f32.mrf.mxu0
  %v1346 = vadd.f32 %v1305, %v1345
  %v1347 = vpop.f32.mrf.mxu0
  %1348 = vdwg.mxu0
  %v1349 = vld [vmem:[%s7] sm:$0x1]
  %v1350 = vld [vmem:[%s8] sm:$0x1]
  %v1351 = vsel %vm192, %v1343, 0.0
  %1352 = vadd.xlane.f32.xlu0 %v1351
  %v1353 = vpop.xlane.xlu0 %1352
  %v1354 = vsel %vm192, %v1346, 0.0
  %1355 = vadd.xlane.f32.xlu0 %v1354
  %v1356 = vpop.xlane.xlu0 %1355
  %v1357 = vrcp.pop 32.0
  %v1358 = vmul.f32 %v1353, %v1357
  %v1359 = vmul.f32 %v1356, %v1357
  %v1360 = vsub.f32 %v1343, %v1358
  %v1361 = vsub.f32 %v1346, %v1359
  %v1362 = vmul.f32 %v1360, %v1360
  %v1363 = vmul.f32 %v1361, %v1361
  %v1364 = vsel %vm192, %v1362, 0.0
  %1365 = vadd.xlane.f32.xlu0 %v1364
  %v1366 = vpop.xlane.xlu0 %1365
  %v1367 = vsel %vm192, %v1363, 0.0
  %1368 = vadd.xlane.f32.xlu0 %v1367
  %v1369 = vpop.xlane.xlu0 %1368
  %v1370 = vmul.f32 %v1366, %v1357
  %v1371 = vmul.f32 %v1369, %v1357
  %v1372 = vadd.f32 %v1370, 1e-05
  %v1373 = vadd.f32 %v1371, 1e-05
  %v1374 = vrsqrt.pop %v1372
  %v1375 = vrsqrt.pop %v1373
  %v1376 = vmul.f32 %v1360, %v1374
  %v1377 = vmul.f32 %v1361, %v1375
  %v1379 = vlaneseq
  %v1380 = vshrl.u32 %v1379, 7
  %v1381 = vsub.s32 0, %v1380
  %v1382 = vrot.slane %v1349, %v1381
  %v1384 = vmul.f32 %v1376, %v1382
  %v1385 = vmul.f32 %v1377, %v1382
  %v1387 = vlaneseq
  %v1388 = vshrl.u32 %v1387, 7
  %v1389 = vsub.s32 0, %v1388
  %v1390 = vrot.slane %v1350, %v1389
  %v1392 = vadd.f32 %v1384, %v1390
  %v1393 = vadd.f32 %v1385, %v1390
  %v1394 = vmul.f32 %v1392, 0.5
  %v1395 = vmul.f32 %v1393, 0.5
  %v1396 = vmul.f32 %v1392, %v593
  %v1397 = vmul.f32 %v1393, %v593
  %v1398 = verf.f32.pop %v1396
  %v1399 = verf.f32.pop %v1397
  %v1400 = vadd.f32 %v1398, 1.0
  %v1401 = vadd.f32 %v1399, 1.0
  %v1402 = vmul.f32 %v1394, %v1400
  %v1403 = vmul.f32 %v1395, %v1401
  %v1404 = vld [vmem:[%s9] sm:$0xf]
  %v1405 = vld [vmem:[%s9 + $0x4] sm:$0xf]
  %v1406 = vld [vmem:[%s9 + $0x8] sm:$0xf]
  %v1407 = vld [vmem:[%s9 + $0xc] sm:$0xf]
  %v1408 = vpack.c.bf16 %v1403, %v1402
  %v1409 = vld [vmem:[%s10] sm:$0x1]
  %v1411 = vlaneseq
  %v1412 = vshrl.u32 %v1411, 7
  %v1413 = vsub.s32 0, %v1412
  %v1414 = vrot.slane %v1409, %v1413
  %v1420 = vunpack.c.l.b16 %v1404
  %v1421 = vunpack.c.l.b16 %v1405
  %v1422 = vunpack.c.l.b16 %v1406
  %v1423 = vunpack.c.l.b16 %v1407
  %v1424 = vpack.c.b16 %v1421, %v1420
  %v1425 = vpack.c.b16 %v1423, %v1422
  %v1429 = vsel %vm192, %v1408, 0
  %1431 = vmatprep.subr.bf16.mxu0 0
  %1432 = vmatpush1.bf16.msra.mxu0 0
  %1433 = vmatprep.subr.bf16.mxu0 0
  %1434 = vmatpush1.bf16.msra.mxu0 0
  %1435 = vmatprep.subr.bf16.mxu0 0
  %1436 = vmatpush1.bf16.msra.mxu0 0
  %1437 = vmatprep.subr.bf16.mxu0 0
  %1438 = vmatpush1.bf16.msra.mxu0 0
  %1439 = vmatprep.subr.bf16.mxu0 0
  %1440 = vmatpush1.bf16.msra.mxu0 0
  %1441 = vmatprep.subr.bf16.mxu0 0
  %1442 = vmatpush1.bf16.msra.mxu0 0
  %1443 = vmatprep.subr.bf16.mxu0 0
  %1444 = vmatpush1.bf16.msra.mxu0 %v1425
  %1445 = vmatprep.subr.bf16.mxu0 0
  %1446 = vmatpush1.bf16.msra.mxu0 %v1424
  %1447 = vmatprep.subr.bf16.mxu0 0
  %1448 = vmatpush2.bf16.msra.mxu0 0
  %1449 = vmatprep.subr.bf16.mxu0 0
  %1450 = vmatpush2.bf16.msra.mxu0 0
  %1451 = vmatprep.subr.bf16.mxu0 0
  %1452 = vmatpush2.bf16.msra.mxu0 0
  %1453 = vmatprep.subr.bf16.mxu0 0
  %1454 = vmatpush2.bf16.msra.mxu0 0
  %1455 = vmatprep.subr.bf16.mxu0 0
  %1456 = vmatpush2.bf16.msra.mxu0 0
  %1457 = vmatprep.subr.bf16.mxu0 0
  %1458 = vmatpush2.bf16.msra.mxu0 0
  %1459 = vmatprep.subr.bf16.mxu0 0
  %1460 = vmatpush2.bf16.msra.mxu0 0
  %1461 = vmatprep.subr.bf16.mxu0 0
  %1462 = vmatpush2.bf16.msra.mxu0 0
  %1463 = vmatprep.mubr.bf16.mxu0 0
  %1464 = vmatmul.mubr.bf16.gmra.mxu0 %v1429
  %v1465 = vpop.f32.mrf.mxu0
  %v1466 = vadd.f32 %v1414, %v1465
  %v1467 = vpop.f32.mrf.mxu0
  %v1468 = vpop.f32.mrf.mxu0
  %v1469 = vadd.f32 %v1414, %v1468
  %v1470 = vpop.f32.mrf.mxu0
  %1471 = vdwg.mxu0
  %v1472 = vld [vmem:[%s11] sm:$0x1]
  %v1473 = vld [vmem:[%s12] sm:$0x1]
  %v1474 = vsel %vm192, %v1466, 0.0
  %1475 = vadd.xlane.f32.xlu0 %v1474
  %v1476 = vpop.xlane.xlu0 %1475
  %v1477 = vsel %vm192, %v1469, 0.0
  %1478 = vadd.xlane.f32.xlu0 %v1477
  %v1479 = vpop.xlane.xlu0 %1478
  %v1480 = vmul.f32 %v1476, %v1357
  %v1481 = vmul.f32 %v1479, %v1357
  %v1482 = vsub.f32 %v1466, %v1480
  %v1483 = vsub.f32 %v1469, %v1481
  %v1484 = vmul.f32 %v1482, %v1482
  %v1485 = vmul.f32 %v1483, %v1483
  %v1486 = vsel %vm192, %v1484, 0.0
  %1487 = vadd.xlane.f32.xlu0 %v1486
  %v1488 = vpop.xlane.xlu0 %1487
  %v1489 = vsel %vm192, %v1485, 0.0
  %1490 = vadd.xlane.f32.xlu0 %v1489
  %v1491 = vpop.xlane.xlu0 %1490
  %v1492 = vmul.f32 %v1488, %v1357
  %v1493 = vmul.f32 %v1491, %v1357
  %v1494 = vadd.f32 %v1492, 1e-05
  %v1495 = vadd.f32 %v1493, 1e-05
  %v1496 = vrsqrt.pop %v1494
  %v1497 = vrsqrt.pop %v1495
  %v1498 = vmul.f32 %v1482, %v1496
  %v1499 = vmul.f32 %v1483, %v1497
  %v1501 = vlaneseq
  %v1502 = vshrl.u32 %v1501, 7
  %v1503 = vsub.s32 0, %v1502
  %v1504 = vrot.slane %v1472, %v1503
  %v1506 = vmul.f32 %v1498, %v1504
  %v1507 = vmul.f32 %v1499, %v1504
  %v1509 = vlaneseq
  %v1510 = vshrl.u32 %v1509, 7
  %v1511 = vsub.s32 0, %v1510
  %v1512 = vrot.slane %v1473, %v1511
  %v1514 = vadd.f32 %v1506, %v1512
  %v1515 = vadd.f32 %v1507, %v1512
  %v1516 = vmul.f32 %v1514, 0.5
  %v1517 = vmul.f32 %v1515, 0.5
  %v1518 = vmul.f32 %v1514, %v593
  %v1519 = vmul.f32 %v1515, %v593
  %v1520 = verf.f32.pop %v1518
  %v1521 = verf.f32.pop %v1519
  %v1522 = vadd.f32 %v1520, 1.0
  %v1523 = vadd.f32 %v1521, 1.0
  %v1524 = vmul.f32 %v1516, %v1522
  %v1525 = vmul.f32 %v1517, %v1523
  %v1526 = vld [vmem:[%s13] sm:$0xf]
  %v1527 = vld [vmem:[%s13 + $0x4] sm:$0xf]
  %v1528 = vld [vmem:[%s13 + $0x8] sm:$0xf]
  %v1529 = vld [vmem:[%s13 + $0xc] sm:$0xf]
  %v1530 = vpack.c.bf16 %v1525, %v1524
  %v1531 = vld [vmem:[%s14] sm:$0x1]
  %v1533 = vlaneseq
  %v1534 = vshrl.u32 %v1533, 7
  %v1535 = vsub.s32 0, %v1534
  %v1536 = vrot.slane %v1531, %v1535
  %v1542 = vunpack.c.l.b16 %v1526
  %v1543 = vunpack.c.l.b16 %v1527
  %v1544 = vunpack.c.l.b16 %v1528
  %v1545 = vunpack.c.l.b16 %v1529
  %v1546 = vpack.c.b16 %v1543, %v1542
  %v1547 = vpack.c.b16 %v1545, %v1544
  %v1551 = vsel %vm192, %v1530, 0
  %1553 = vmatprep.subr.bf16.mxu0 0
  %1554 = vmatpush1.bf16.msra.mxu0 0
  %1555 = vmatprep.subr.bf16.mxu0 0
  %1556 = vmatpush1.bf16.msra.mxu0 0
  %1557 = vmatprep.subr.bf16.mxu0 0
  %1558 = vmatpush1.bf16.msra.mxu0 0
  %1559 = vmatprep.subr.bf16.mxu0 0
  %1560 = vmatpush1.bf16.msra.mxu0 0
  %1561 = vmatprep.subr.bf16.mxu0 0
  %1562 = vmatpush1.bf16.msra.mxu0 0
  %1563 = vmatprep.subr.bf16.mxu0 0
  %1564 = vmatpush1.bf16.msra.mxu0 0
  %1565 = vmatprep.subr.bf16.mxu0 0
  %1566 = vmatpush1.bf16.msra.mxu0 %v1547
  %1567 = vmatprep.subr.bf16.mxu0 0
  %1568 = vmatpush1.bf16.msra.mxu0 %v1546
  %1569 = vmatprep.subr.bf16.mxu0 0
  %1570 = vmatpush2.bf16.msra.mxu0 0
  %1571 = vmatprep.subr.bf16.mxu0 0
  %1572 = vmatpush2.bf16.msra.mxu0 0
  %1573 = vmatprep.subr.bf16.mxu0 0
  %1574 = vmatpush2.bf16.msra.mxu0 0
  %1575 = vmatprep.subr.bf16.mxu0 0
  %1576 = vmatpush2.bf16.msra.mxu0 0
  %1577 = vmatprep.subr.bf16.mxu0 0
  %1578 = vmatpush2.bf16.msra.mxu0 0
  %1579 = vmatprep.subr.bf16.mxu0 0
  %1580 = vmatpush2.bf16.msra.mxu0 0
  %1581 = vmatprep.subr.bf16.mxu0 0
  %1582 = vmatpush2.bf16.msra.mxu0 0
  %1583 = vmatprep.subr.bf16.mxu0 0
  %1584 = vmatpush2.bf16.msra.mxu0 0
  %1585 = vmatprep.mubr.bf16.mxu0 0
  %1586 = vmatmul.mubr.bf16.gmra.mxu0 %v1551
  %v1587 = vpop.f32.mrf.mxu0
  %v1588 = vadd.f32 %v1536, %v1587
  %v1589 = vpop.f32.mrf.mxu0
  %v1590 = vpop.f32.mrf.mxu0
  %v1591 = vadd.f32 %v1536, %v1590
  %v1592 = vpop.f32.mrf.mxu0
  %1593 = vdwg.mxu0
  %1594 = vst.msk [vmem:[%s15] sm:$0xff] %vm192, %v1588
  %1595 = vst.msk [vmem:[%s15 + $0x8] sm:$0xff] %vm192, %v1591
  // Predicated region
  $region62: #{transformer_forward.8} parent=0 // pred_check
    _
  $region63: #{transformer_forward.8} parent=0 // pred_check_branch
    %1597 = sbr.rel (0) target = $region65
  $region64: #{transformer_forward.8} parent=0 // pred_region
    _
  $region65: #{transformer_forward.8} parent=0 // pred_fallthru
    _
  // Predicated region
  $region66: #{transformer_forward.8} parent=0 // pred_check
    _
  $region67: #{transformer_forward.8} parent=0 // pred_check_branch
    %1599 = sbr.rel (0) target = $region69
  $region68: #{transformer_forward.8} parent=0 // pred_region
    _
  $region69: #{transformer_forward.8} parent=0 // pred_fallthru
    _

// kernel: transformer_forward.6
$region0: #{transformer_forward.6}
  #allocation0 [shape = 'u32[]', space=smem, size = 0x4, offset = 0x4, fixed_abs, tag = 'smem constant byte address 0x4 - core index']
  #allocation1 [shape = 'u32[144,128]{1,0:T(1,128)}', space=vmem, size = 0x12000, scoped, tag = 'internal scratch']
  %s0 = inlined_call_operand.vmem [shape: f32[2,8,32], index: 0, kind: input, shape index: {}]
  %s1 = inlined_call_operand.vmem [shape: f32[2,1,8], index: 1, kind: input, shape index: {}]
  %s2 = inlined_call_operand.vmem [shape: bf16[4,32,8], index: 2, kind: input, shape index: {}]
  %s3 = inlined_call_operand.vmem [shape: bf16[4,32,8], index: 3, kind: input, shape index: {}]
  %s4 = inlined_call_operand.vmem [shape: bf16[4,32,8], index: 4, kind: input, shape index: {}]
  %s5 = inlined_call_operand.vmem [shape: f32[4,1,8], index: 5, kind: input, shape index: {}]
  %s6 = inlined_call_operand.vmem [shape: f32[4,1,8], index: 6, kind: input, shape index: {}]
  %s7 = inlined_call_operand.vmem [shape: f32[4,1,8], index: 7, kind: input, shape index: {}]
  %s8 = inlined_call_operand.vmem [shape: bf16[4,8,32], index: 8, kind: input, shape index: {}]
  %s9 = inlined_call_operand.vmem [shape: f32[1,32], index: 9, kind: input, shape index: {}]
  %s10 = inlined_call_operand.vmem [shape: f32[1,32], index: 10, kind: input, shape index: {}]
  %s11 = inlined_call_operand.vmem [shape: f32[1,32], index: 11, kind: input, shape index: {}]
  %s12 = inlined_call_operand.vmem [shape: bf16[32,64], index: 12, kind: input, shape index: {}]
  %s13 = inlined_call_operand.vmem [shape: f32[1,64], index: 13, kind: input, shape index: {}]
  %s14 = inlined_call_operand.vmem [shape: bf16[64,32], index: 14, kind: input, shape index: {}]
  %s15 = inlined_call_operand.vmem [shape: f32[1,32], index: 15, kind: input, shape index: {}]
  %s16 = inlined_call_operand.vmem [shape: f32[1,32], index: 16, kind: input, shape index: {}]
  %s17 = inlined_call_operand.vmem [shape: f32[1,32], index: 17, kind: input, shape index: {}]
  %s18 = inlined_call_operand.vmem [shape: f32[2,8,32], index: 18, kind: output, shape index: {}]
  %s19 = sld [smem:[#allocation0]]
  $region105: #{transformer_forward.6} parent=0
    _
  %s21 = ssub.s32 1, %s19
  %s22 = scalar_select 0, %s21, %s19
  loop: start=0, step=1, limit=4
  $region2: #{transformer_forward.6} parent=0 // loop_pre_header
    _
  $region3: #{transformer_forward.6} parent=0 // loop_header
    %s24 = sphi 0, %s28
    %p25 = scmp.ge.s32.totalorder %s24, 4
    %s34 = sphi 0, %s36
    %s37 = sphi 0, %s34
    %s38 = sphi 0, %s37
    %s54 = sphi 0, %s38
    %s60 = sphi 0, %s62
    %s63 = sphi 0, %s60
    %s64 = sphi 0, %s63
    %s80 = sphi 0, %s64
    %s84 = sphi 0, %s84
    %s86 = sphi 0, %s84
    %s87 = sphi 0, %s86
    %s101 = sphi 0, %s87
    %s105 = sphi 0, %s105
    %s107 = sphi 0, %s105
    %s108 = sphi 0, %s107
    %s122 = sphi 0, %s108
    %s126 = sphi 0, %s126
    %s128 = sphi 0, %s126
    %s129 = sphi 0, %s128
    %s143 = sphi 0, %s129
    %s147 = sphi 0, %s147
    %s149 = sphi 0, %s147
    %s150 = sphi 0, %s149
    %s164 = sphi 0, %s150
    %s168 = sphi 0, %s168
    %s170 = sphi 0, %s168
    %s171 = sphi 0, %s170
    %s185 = sphi 0, %s171
    %s189 = sphi 0, %s189
    %s191 = sphi 0, %s189
    %s192 = sphi 0, %s191
    %s206 = sphi 0, %s192
    %s210 = sphi 0, %s210
    %s212 = sphi 0, %s210
    %s213 = sphi 0, %s212
    %s227 = sphi 0, %s213
    %s231 = sphi 0, %s231
    %s233 = sphi 0, %s231
    %s234 = sphi 0, %s233
    %s248 = sphi 0, %s234
    %s252 = sphi 0, %s252
    %s254 = sphi 0, %s252
    %s255 = sphi 0, %s254
    %s269 = sphi 0, %s255
    %s273 = sphi 0, %s273
    %s275 = sphi 0, %s273
    %s276 = sphi 0, %s275
    %s290 = sphi 0, %s276
    %s294 = sphi 0, %s294
    %s296 = sphi 0, %s294
    %s297 = sphi 0, %s296
    %s311 = sphi 0, %s297
    %s315 = sphi 0, %s315
    %s317 = sphi 0, %s315
    %s318 = sphi 0, %s317
    %s332 = sphi 0, %s318
    %s336 = sphi 0, %s336
    %s338 = sphi 0, %s336
    %s339 = sphi 0, %s338
    %s353 = sphi 0, %s339
    %s357 = sphi 0, %s357
    %s359 = sphi 0, %s357
    %s360 = sphi 0, %s359
    %s374 = sphi 0, %s360
    %s378 = sphi 0, %s378
    %s380 = sphi 0, %s378
    %s381 = sphi 0, %s380
    %s395 = sphi 0, %s381
    %s399 = sphi 0, %s399
    %s401 = sphi 0, %s399
    %s402 = sphi 0, %s401
    %s416 = sphi 0, %s402
    %s422 = sphi 0, %s424
    %s425 = sphi 0, %s422
    %s426 = sphi 0, %s425
    %s442 = sphi 0, %s426
  $region4: #{transformer_forward.6} parent=0 // loop_header_branch
    %27 = sbr.rel (%p25) target = $region8
  $region5: #{transformer_forward.6} parent=0 // loop_body
    %s29 = ssub.s32 %s24, 1
    %s30 = ssub.s32 %s24, 2
    %s31 = sadd.s32 %s24, 1
    %s32 = ssub.s32 %s24, %s31
    %p33 = scmp.eq.s32.totalorder %s32, 0
    %s35 = sadd.s32 %s34, 1
    %s36 = scalar_select %p33, %s34, %s35
    %p39 = pneg %p33
    %p40 = scmp.eq.s32.totalorder %s24, 1
    %p41 = por %p39, %p40
    %p42 = scmp.ne.s32.totalorder %s34, %s37
    %p43 = scmp.eq.s32.totalorder %s24, 0
    %p44 = por %p42, %p43
    %p45 = scmp.ne.s32.totalorder %s34, %s37
    %p46 = scmp.eq.s32.totalorder %s29, 1
    %p47 = por %p45, %p46
    %p48 = scmp.ne.s32.totalorder %s37, %s38
    %p49 = scmp.eq.s32.totalorder %s29, 0
    %p50 = por %p48, %p49
    %p51 = scmp.ne.s32.totalorder %s37, %s38
    %p52 = scmp.eq.s32.totalorder %s30, 1
    %p53 = por %p51, %p52
    %p55 = scmp.ne.s32.totalorder %s38, %s54
    %p56 = scmp.eq.s32.totalorder %s30, 0
    %p57 = por %p55, %p56
    %s58 = ssub.s32 %s24, %s31
    %p59 = scmp.eq.s32.totalorder %s58, 0
    %s61 = sadd.s32 %s60, 1
    %s62 = scalar_select %p59, %s60, %s61
    %p65 = pneg %p59
    %p66 = scmp.eq.s32.totalorder %s24, 1
    %p67 = por %p65, %p66
    %p68 = scmp.ne.s32.totalorder %s60, %s63
    %p69 = scmp.eq.s32.totalorder %s24, 0
    %p70 = por %p68, %p69
    %p71 = scmp.ne.s32.totalorder %s60, %s63
    %p72 = scmp.eq.s32.totalorder %s29, 1
    %p73 = por %p71, %p72
    %p74 = scmp.ne.s32.totalorder %s63, %s64
    %p75 = scmp.eq.s32.totalorder %s29, 0
    %p76 = por %p74, %p75
    %p77 = scmp.ne.s32.totalorder %s63, %s64
    %p78 = scmp.eq.s32.totalorder %s30, 1
    %p79 = por %p77, %p78
    %p81 = scmp.ne.s32.totalorder %s64, %s80
    %p82 = scmp.eq.s32.totalorder %s30, 0
    %p83 = por %p81, %p82
    %s85 = sadd.s32 %s84, 1
    %p88 = scmp.eq.s32.totalorder %s24, 1
    %p89 = scmp.ne.s32.totalorder %s84, %s86
    %p90 = scmp.eq.s32.totalorder %s24, 0
    %p91 = por %p89, %p90
    %p92 = scmp.ne.s32.totalorder %s84, %s86
    %p93 = scmp.eq.s32.totalorder %s29, 1
    %p94 = por %p92, %p93
    %p95 = scmp.ne.s32.totalorder %s86, %s87
    %p96 = scmp.eq.s32.totalorder %s29, 0
    %p97 = por %p95, %p96
    %p98 = scmp.ne.s32.totalorder %s86, %s87
    %p99 = scmp.eq.s32.totalorder %s30, 1
    %p100 = por %p98, %p99
    %p102 = scmp.ne.s32.totalorder %s87, %s101
    %p103 = scmp.eq.s32.totalorder %s30, 0
    %p104 = por %p102, %p103
    %s106 = sadd.s32 %s105, 1
    %p109 = scmp.eq.s32.totalorder %s24, 1
    %p110 = scmp.ne.s32.totalorder %s105, %s107
    %p111 = scmp.eq.s32.totalorder %s24, 0
    %p112 = por %p110, %p111
    %p113 = scmp.ne.s32.totalorder %s105, %s107
    %p114 = scmp.eq.s32.totalorder %s29, 1
    %p115 = por %p113, %p114
    %p116 = scmp.ne.s32.totalorder %s107, %s108
    %p117 = scmp.eq.s32.totalorder %s29, 0
    %p118 = por %p116, %p117
    %p119 = scmp.ne.s32.totalorder %s107, %s108
    %p120 = scmp.eq.s32.totalorder %s30, 1
    %p121 = por %p119, %p120
    %p123 = scmp.ne.s32.totalorder %s108, %s122
    %p124 = scmp.eq.s32.totalorder %s30, 0
    %p125 = por %p123, %p124
    %s127 = sadd.s32 %s126, 1
    %p130 = scmp.eq.s32.totalorder %s24, 1
    %p131 = scmp.ne.s32.totalorder %s126, %s128
    %p132 = scmp.eq.s32.totalorder %s24, 0
    %p133 = por %p131, %p132
    %p134 = scmp.ne.s32.totalorder %s126, %s128
    %p135 = scmp.eq.s32.totalorder %s29, 1
    %p136 = por %p134, %p135
    %p137 = scmp.ne.s32.totalorder %s128, %s129
    %p138 = scmp.eq.s32.totalorder %s29, 0
    %p139 = por %p137, %p138
    %p140 = scmp.ne.s32.totalorder %s128, %s129
    %p141 = scmp.eq.s32.totalorder %s30, 1
    %p142 = por %p140, %p141
    %p144 = scmp.ne.s32.totalorder %s129, %s143
    %p145 = scmp.eq.s32.totalorder %s30, 0
    %p146 = por %p144, %p145
    %s148 = sadd.s32 %s147, 1
    %p151 = scmp.eq.s32.totalorder %s24, 1
    %p152 = scmp.ne.s32.totalorder %s147, %s149
    %p153 = scmp.eq.s32.totalorder %s24, 0
    %p154 = por %p152, %p153
    %p155 = scmp.ne.s32.totalorder %s147, %s149
    %p156 = scmp.eq.s32.totalorder %s29, 1
    %p157 = por %p155, %p156
    %p158 = scmp.ne.s32.totalorder %s149, %s150
    %p159 = scmp.eq.s32.totalorder %s29, 0
    %p160 = por %p158, %p159
    %p161 = scmp.ne.s32.totalorder %s149, %s150
    %p162 = scmp.eq.s32.totalorder %s30, 1
    %p163 = por %p161, %p162
    %p165 = scmp.ne.s32.totalorder %s150, %s164
    %p166 = scmp.eq.s32.totalorder %s30, 0
    %p167 = por %p165, %p166
    %s169 = sadd.s32 %s168, 1
    %p172 = scmp.eq.s32.totalorder %s24, 1
    %p173 = scmp.ne.s32.totalorder %s168, %s170
    %p174 = scmp.eq.s32.totalorder %s24, 0
    %p175 = por %p173, %p174
    %p176 = scmp.ne.s32.totalorder %s168, %s170
    %p177 = scmp.eq.s32.totalorder %s29, 1
    %p178 = por %p176, %p177
    %p179 = scmp.ne.s32.totalorder %s170, %s171
    %p180 = scmp.eq.s32.totalorder %s29, 0
    %p181 = por %p179, %p180
    %p182 = scmp.ne.s32.totalorder %s170, %s171
    %p183 = scmp.eq.s32.totalorder %s30, 1
    %p184 = por %p182, %p183
    %p186 = scmp.ne.s32.totalorder %s171, %s185
    %p187 = scmp.eq.s32.totalorder %s30, 0
    %p188 = por %p186, %p187
    %s190 = sadd.s32 %s189, 1
    %p193 = scmp.eq.s32.totalorder %s24, 1
    %p194 = scmp.ne.s32.totalorder %s189, %s191
    %p195 = scmp.eq.s32.totalorder %s24, 0
    %p196 = por %p194, %p195
    %p197 = scmp.ne.s32.totalorder %s189, %s191
    %p198 = scmp.eq.s32.totalorder %s29, 1
    %p199 = por %p197, %p198
    %p200 = scmp.ne.s32.totalorder %s191, %s192
    %p201 = scmp.eq.s32.totalorder %s29, 0
    %p202 = por %p200, %p201
    %p203 = scmp.ne.s32.totalorder %s191, %s192
    %p204 = scmp.eq.s32.totalorder %s30, 1
    %p205 = por %p203, %p204
    %p207 = scmp.ne.s32.totalorder %s192, %s206
    %p208 = scmp.eq.s32.totalorder %s30, 0
    %p209 = por %p207, %p208
    %s211 = sadd.s32 %s210, 1
    %p214 = scmp.eq.s32.totalorder %s24, 1
    %p215 = scmp.ne.s32.totalorder %s210, %s212
    %p216 = scmp.eq.s32.totalorder %s24, 0
    %p217 = por %p215, %p216
    %p218 = scmp.ne.s32.totalorder %s210, %s212
    %p219 = scmp.eq.s32.totalorder %s29, 1
    %p220 = por %p218, %p219
    %p221 = scmp.ne.s32.totalorder %s212, %s213
    %p222 = scmp.eq.s32.totalorder %s29, 0
    %p223 = por %p221, %p222
    %p224 = scmp.ne.s32.totalorder %s212, %s213
    %p225 = scmp.eq.s32.totalorder %s30, 1
    %p226 = por %p224, %p225
    %p228 = scmp.ne.s32.totalorder %s213, %s227
    %p229 = scmp.eq.s32.totalorder %s30, 0
    %p230 = por %p228, %p229
    %s232 = sadd.s32 %s231, 1
    %p235 = scmp.eq.s32.totalorder %s24, 1
    %p236 = scmp.ne.s32.totalorder %s231, %s233
    %p237 = scmp.eq.s32.totalorder %s24, 0
    %p238 = por %p236, %p237
    %p239 = scmp.ne.s32.totalorder %s231, %s233
    %p240 = scmp.eq.s32.totalorder %s29, 1
    %p241 = por %p239, %p240
    %p242 = scmp.ne.s32.totalorder %s233, %s234
    %p243 = scmp.eq.s32.totalorder %s29, 0
    %p244 = por %p242, %p243
    %p245 = scmp.ne.s32.totalorder %s233, %s234
    %p246 = scmp.eq.s32.totalorder %s30, 1
    %p247 = por %p245, %p246
    %p249 = scmp.ne.s32.totalorder %s234, %s248
    %p250 = scmp.eq.s32.totalorder %s30, 0
    %p251 = por %p249, %p250
    %s253 = sadd.s32 %s252, 1
    %p256 = scmp.eq.s32.totalorder %s24, 1
    %p257 = scmp.ne.s32.totalorder %s252, %s254
    %p258 = scmp.eq.s32.totalorder %s24, 0
    %p259 = por %p257, %p258
    %p260 = scmp.ne.s32.totalorder %s252, %s254
    %p261 = scmp.eq.s32.totalorder %s29, 1
    %p262 = por %p260, %p261
    %p263 = scmp.ne.s32.totalorder %s254, %s255
    %p264 = scmp.eq.s32.totalorder %s29, 0
    %p265 = por %p263, %p264
    %p266 = scmp.ne.s32.totalorder %s254, %s255
    %p267 = scmp.eq.s32.totalorder %s30, 1
    %p268 = por %p266, %p267
    %p270 = scmp.ne.s32.totalorder %s255, %s269
    %p271 = scmp.eq.s32.totalorder %s30, 0
    %p272 = por %p270, %p271
    %s274 = sadd.s32 %s273, 1
    %p277 = scmp.eq.s32.totalorder %s24, 1
    %p278 = scmp.ne.s32.totalorder %s273, %s275
    %p279 = scmp.eq.s32.totalorder %s24, 0
    %p280 = por %p278, %p279
    %p281 = scmp.ne.s32.totalorder %s273, %s275
    %p282 = scmp.eq.s32.totalorder %s29, 1
    %p283 = por %p281, %p282
    %p284 = scmp.ne.s32.totalorder %s275, %s276
    %p285 = scmp.eq.s32.totalorder %s29, 0
    %p286 = por %p284, %p285
    %p287 = scmp.ne.s32.totalorder %s275, %s276
    %p288 = scmp.eq.s32.totalorder %s30, 1
    %p289 = por %p287, %p288
    %p291 = scmp.ne.s32.totalorder %s276, %s290
    %p292 = scmp.eq.s32.totalorder %s30, 0
    %p293 = por %p291, %p292
    %s295 = sadd.s32 %s294, 1
    %p298 = scmp.eq.s32.totalorder %s24, 1
    %p299 = scmp.ne.s32.totalorder %s294, %s296
    %p300 = scmp.eq.s32.totalorder %s24, 0
    %p301 = por %p299, %p300
    %p302 = scmp.ne.s32.totalorder %s294, %s296
    %p303 = scmp.eq.s32.totalorder %s29, 1
    %p304 = por %p302, %p303
    %p305 = scmp.ne.s32.totalorder %s296, %s297
    %p306 = scmp.eq.s32.totalorder %s29, 0
    %p307 = por %p305, %p306
    %p308 = scmp.ne.s32.totalorder %s296, %s297
    %p309 = scmp.eq.s32.totalorder %s30, 1
    %p310 = por %p308, %p309
    %p312 = scmp.ne.s32.totalorder %s297, %s311
    %p313 = scmp.eq.s32.totalorder %s30, 0
    %p314 = por %p312, %p313
    %s316 = sadd.s32 %s315, 1
    %p319 = scmp.eq.s32.totalorder %s24, 1
    %p320 = scmp.ne.s32.totalorder %s315, %s317
    %p321 = scmp.eq.s32.totalorder %s24, 0
    %p322 = por %p320, %p321
    %p323 = scmp.ne.s32.totalorder %s315, %s317
    %p324 = scmp.eq.s32.totalorder %s29, 1
    %p325 = por %p323, %p324
    %p326 = scmp.ne.s32.totalorder %s317, %s318
    %p327 = scmp.eq.s32.totalorder %s29, 0
    %p328 = por %p326, %p327
    %p329 = scmp.ne.s32.totalorder %s317, %s318
    %p330 = scmp.eq.s32.totalorder %s30, 1
    %p331 = por %p329, %p330
    %p333 = scmp.ne.s32.totalorder %s318, %s332
    %p334 = scmp.eq.s32.totalorder %s30, 0
    %p335 = por %p333, %p334
    %s337 = sadd.s32 %s336, 1
    %p340 = scmp.eq.s32.totalorder %s24, 1
    %p341 = scmp.ne.s32.totalorder %s336, %s338
    %p342 = scmp.eq.s32.totalorder %s24, 0
    %p343 = por %p341, %p342
    %p344 = scmp.ne.s32.totalorder %s336, %s338
    %p345 = scmp.eq.s32.totalorder %s29, 1
    %p346 = por %p344, %p345
    %p347 = scmp.ne.s32.totalorder %s338, %s339
    %p348 = scmp.eq.s32.totalorder %s29, 0
    %p349 = por %p347, %p348
    %p350 = scmp.ne.s32.totalorder %s338, %s339
    %p351 = scmp.eq.s32.totalorder %s30, 1
    %p352 = por %p350, %p351
    %p354 = scmp.ne.s32.totalorder %s339, %s353
    %p355 = scmp.eq.s32.totalorder %s30, 0
    %p356 = por %p354, %p355
    %s358 = sadd.s32 %s357, 1
    %p361 = scmp.eq.s32.totalorder %s24, 1
    %p362 = scmp.ne.s32.totalorder %s357, %s359
    %p363 = scmp.eq.s32.totalorder %s24, 0
    %p364 = por %p362, %p363
    %p365 = scmp.ne.s32.totalorder %s357, %s359
    %p366 = scmp.eq.s32.totalorder %s29, 1
    %p367 = por %p365, %p366
    %p368 = scmp.ne.s32.totalorder %s359, %s360
    %p369 = scmp.eq.s32.totalorder %s29, 0
    %p370 = por %p368, %p369
    %p371 = scmp.ne.s32.totalorder %s359, %s360
    %p372 = scmp.eq.s32.totalorder %s30, 1
    %p373 = por %p371, %p372
    %p375 = scmp.ne.s32.totalorder %s360, %s374
    %p376 = scmp.eq.s32.totalorder %s30, 0
    %p377 = por %p375, %p376
    %s379 = sadd.s32 %s378, 1
    %p382 = scmp.eq.s32.totalorder %s24, 1
    %p383 = scmp.ne.s32.totalorder %s378, %s380
    %p384 = scmp.eq.s32.totalorder %s24, 0
    %p385 = por %p383, %p384
    %p386 = scmp.ne.s32.totalorder %s378, %s380
    %p387 = scmp.eq.s32.totalorder %s29, 1
    %p388 = por %p386, %p387
    %p389 = scmp.ne.s32.totalorder %s380, %s381
    %p390 = scmp.eq.s32.totalorder %s29, 0
    %p391 = por %p389, %p390
    %p392 = scmp.ne.s32.totalorder %s380, %s381
    %p393 = scmp.eq.s32.totalorder %s30, 1
    %p394 = por %p392, %p393
    %p396 = scmp.ne.s32.totalorder %s381, %s395
    %p397 = scmp.eq.s32.totalorder %s30, 0
    %p398 = por %p396, %p397
    %s400 = sadd.s32 %s399, 1
    %p403 = scmp.eq.s32.totalorder %s24, 1
    %p404 = scmp.ne.s32.totalorder %s399, %s401
    %p405 = scmp.eq.s32.totalorder %s24, 0
    %p406 = por %p404, %p405
    %p407 = scmp.ne.s32.totalorder %s399, %s401
    %p408 = scmp.eq.s32.totalorder %s29, 1
    %p409 = por %p407, %p408
    %p410 = scmp.ne.s32.totalorder %s401, %s402
    %p411 = scmp.eq.s32.totalorder %s29, 0
    %p412 = por %p410, %p411
    %p413 = scmp.ne.s32.totalorder %s401, %s402
    %p414 = scmp.eq.s32.totalorder %s30, 1
    %p415 = por %p413, %p414
    %p417 = scmp.ne.s32.totalorder %s402, %s416
    %p418 = scmp.eq.s32.totalorder %s30, 0
    %p419 = por %p417, %p418
    %s420 = ssub.s32 %s24, %s31
    %p421 = scmp.eq.s32.totalorder %s420, 0
    %s423 = sadd.s32 %s422, 1
    %s424 = scalar_select %p421, %s422, %s423
    %p427 = pneg %p421
    %p428 = scmp.eq.s32.totalorder %s24, 1
    %p429 = por %p427, %p428
    %p430 = scmp.ne.s32.totalorder %s422, %s425
    %p431 = scmp.eq.s32.totalorder %s24, 0
    %p432 = por %p430, %p431
    %p433 = scmp.ne.s32.totalorder %s422, %s425
    %p434 = scmp.eq.s32.totalorder %s29, 1
    %p435 = por %p433, %p434
    %p436 = scmp.ne.s32.totalorder %s425, %s426
    %p437 = scmp.eq.s32.totalorder %s29, 0
    %p438 = por %p436, %p437
    %p439 = scmp.ne.s32.totalorder %s425, %s426
    %p440 = scmp.eq.s32.totalorder %s30, 1
    %p441 = por %p439, %p440
    %p443 = scmp.ne.s32.totalorder %s426, %s442
    %p444 = scmp.eq.s32.totalorder %s30, 0
    %p445 = por %p443, %p444
    %p446 = scmp.le.s32.totalorder 1, %s24
    %p447 = scmp.lt.s32.totalorder %s24, 3
    %p448 = pnand %p446, %p447
    %p449 = pneg %p448
    // Predicated region
    $region9: #{transformer_forward.6} parent=5 // pred_check
      _
    $region10: #{transformer_forward.6} parent=5 // pred_check_branch
      %451 = sbr.rel (%p448) target = $region12
    $region11: #{transformer_forward.6} parent=5 // pred_region
      %s452 = ssub.s32 %s24, 1
      // Predicated region
      $region13: #{transformer_forward.6} parent=11 // pred_check
        %p453 = pneg %p97
      $region14: #{transformer_forward.6} parent=11 // pred_check_branch
        %455 = sbr.rel (%p453) target = $region16
      $region15: #{transformer_forward.6} parent=11 // pred_region
        _
      $region16: #{transformer_forward.6} parent=11 // pred_fallthru
        _
      // Predicated region
      $region17: #{transformer_forward.6} parent=11 // pred_check
        %p456 = pneg %p118
      $region18: #{transformer_forward.6} parent=11 // pred_check_branch
        %458 = sbr.rel (%p456) target = $region20
      $region19: #{transformer_forward.6} parent=11 // pred_region
        _
      $region20: #{transformer_forward.6} parent=11 // pred_fallthru
        _
      // Predicated region
      $region21: #{transformer_forward.6} parent=11 // pred_check
        %p459 = pneg %p139
      $region22: #{transformer_forward.6} parent=11 // pred_check_branch
        %461 = sbr.rel (%p459) target = $region24
      $region23: #{transformer_forward.6} parent=11 // pred_region
        _
      $region24: #{transformer_forward.6} parent=11 // pred_fallthru
        _
      // Predicated region
      $region25: #{transformer_forward.6} parent=11 // pred_check
        %p462 = pneg %p160
      $region26: #{transformer_forward.6} parent=11 // pred_check_branch
        %464 = sbr.rel (%p462) target = $region28
      $region27: #{transformer_forward.6} parent=11 // pred_region
        _
      $region28: #{transformer_forward.6} parent=11 // pred_fallthru
        _
      // Predicated region
      $region29: #{transformer_forward.6} parent=11 // pred_check
        %p465 = pneg %p181
      $region30: #{transformer_forward.6} parent=11 // pred_check_branch
        %467 = sbr.rel (%p465) target = $region32
      $region31: #{transformer_forward.6} parent=11 // pred_region
        _
      $region32: #{transformer_forward.6} parent=11 // pred_fallthru
        _
      // Predicated region
      $region33: #{transformer_forward.6} parent=11 // pred_check
        %p468 = pneg %p202
      $region34: #{transformer_forward.6} parent=11 // pred_check_branch
        %470 = sbr.rel (%p468) target = $region36
      $region35: #{transformer_forward.6} parent=11 // pred_region
        _
      $region36: #{transformer_forward.6} parent=11 // pred_fallthru
        _
      // Predicated region
      $region37: #{transformer_forward.6} parent=11 // pred_check
        %p471 = pneg %p223
      $region38: #{transformer_forward.6} parent=11 // pred_check_branch
        %473 = sbr.rel (%p471) target = $region40
      $region39: #{transformer_forward.6} parent=11 // pred_region
        _
      $region40: #{transformer_forward.6} parent=11 // pred_fallthru
        _
      // Predicated region
      $region41: #{transformer_forward.6} parent=11 // pred_check
        %p474 = pneg %p244
      $region42: #{transformer_forward.6} parent=11 // pred_check_branch
        %476 = sbr.rel (%p474) target = $region44
      $region43: #{transformer_forward.6} parent=11 // pred_region
        _
      $region44: #{transformer_forward.6} parent=11 // pred_fallthru
        _
      // Predicated region
      $region45: #{transformer_forward.6} parent=11 // pred_check
        %p477 = pneg %p265
      $region46: #{transformer_forward.6} parent=11 // pred_check_branch
        %479 = sbr.rel (%p477) target = $region48
      $region47: #{transformer_forward.6} parent=11 // pred_region
        _
      $region48: #{transformer_forward.6} parent=11 // pred_fallthru
        _
      // Predicated region
      $region49: #{transformer_forward.6} parent=11 // pred_check
        %p480 = pneg %p286
      $region50: #{transformer_forward.6} parent=11 // pred_check_branch
        %482 = sbr.rel (%p480) target = $region52
      $region51: #{transformer_forward.6} parent=11 // pred_region
        _
      $region52: #{transformer_forward.6} parent=11 // pred_fallthru
        _
      // Predicated region
      $region53: #{transformer_forward.6} parent=11 // pred_check
        %p483 = pneg %p307
      $region54: #{transformer_forward.6} parent=11 // pred_check_branch
        %485 = sbr.rel (%p483) target = $region56
      $region55: #{transformer_forward.6} parent=11 // pred_region
        _
      $region56: #{transformer_forward.6} parent=11 // pred_fallthru
        _
      // Predicated region
      $region57: #{transformer_forward.6} parent=11 // pred_check
        %p486 = pneg %p328
      $region58: #{transformer_forward.6} parent=11 // pred_check_branch
        %488 = sbr.rel (%p486) target = $region60
      $region59: #{transformer_forward.6} parent=11 // pred_region
        _
      $region60: #{transformer_forward.6} parent=11 // pred_fallthru
        _
      // Predicated region
      $region61: #{transformer_forward.6} parent=11 // pred_check
        %p489 = pneg %p349
      $region62: #{transformer_forward.6} parent=11 // pred_check_branch
        %491 = sbr.rel (%p489) target = $region64
      $region63: #{transformer_forward.6} parent=11 // pred_region
        _
      $region64: #{transformer_forward.6} parent=11 // pred_fallthru
        _
      // Predicated region
      $region65: #{transformer_forward.6} parent=11 // pred_check
        %p492 = pneg %p370
      $region66: #{transformer_forward.6} parent=11 // pred_check_branch
        %494 = sbr.rel (%p492) target = $region68
      $region67: #{transformer_forward.6} parent=11 // pred_region
        _
      $region68: #{transformer_forward.6} parent=11 // pred_fallthru
        _
      // Predicated region
      $region69: #{transformer_forward.6} parent=11 // pred_check
        %p495 = pneg %p391
      $region70: #{transformer_forward.6} parent=11 // pred_check_branch
        %497 = sbr.rel (%p495) target = $region72
      $region71: #{transformer_forward.6} parent=11 // pred_region
        _
      $region72: #{transformer_forward.6} parent=11 // pred_fallthru
        _
      // Predicated region
      $region73: #{transformer_forward.6} parent=11 // pred_check
        %p498 = pneg %p412
      $region74: #{transformer_forward.6} parent=11 // pred_check_branch
        %500 = sbr.rel (%p498) target = $region76
      $region75: #{transformer_forward.6} parent=11 // pred_region
        _
      $region76: #{transformer_forward.6} parent=11 // pred_fallthru
        _
    $region12: #{transformer_forward.6} parent=5 // pred_fallthru
      _
    %p501 = scmp.lt.s32.totalorder %s24, 2
    // Predicated region
    $region77: #{transformer_forward.6} parent=5 // pred_check
      %p502 = pneg %p501
    $region78: #{transformer_forward.6} parent=5 // pred_check_branch
      %504 = sbr.rel (%p502) target = $region80
    $region79: #{transformer_forward.6} parent=5 // pred_region
      // Predicated region
      $region81: #{transformer_forward.6} parent=79 // pred_check
        %p505 = pneg %p44
      $region82: #{transformer_forward.6} parent=79 // pred_check_branch
        %507 = sbr.rel (%p505) target = $region84
      $region83: #{transformer_forward.6} parent=79 // pred_region
        %p508 = scmp.lt.s32.totalorder %s24, 1
        %s509 = scalar_select %p508, %s24, 1
        %s510 = smul.addr %s509, 8
        %s511 = scalar_lea.vmem %s0, %s510
      $region84: #{transformer_forward.6} parent=79 // pred_fallthru
        _
      // Predicated region
      $region85: #{transformer_forward.6} parent=79 // pred_check
        %p512 = pneg %p70
      $region86: #{transformer_forward.6} parent=79 // pred_check_branch
        %514 = sbr.rel (%p512) target = $region88
      $region87: #{transformer_forward.6} parent=79 // pred_region
        %p515 = scmp.lt.s32.totalorder %s24, 1
        %s516 = scalar_select %p515, %s24, 1
        %s517 = scalar_lea.vmem %s1, %s516
      $region88: #{transformer_forward.6} parent=79 // pred_fallthru
        _
    $region80: #{transformer_forward.6} parent=5 // pred_fallthru
      _
    %p518 = scmp.le.s32.totalorder 1, %s24
    %p519 = scmp.lt.s32.totalorder %s24, 3
    %p520 = pnand %p518, %p519
    %p521 = pneg %p520
    // Predicated region
    $region89: #{transformer_forward.6} parent=5 // pred_check
      _
    $region90: #{transformer_forward.6} parent=5 // pred_check_branch
      %523 = sbr.rel (%p520) target = $region92
    $region91: #{transformer_forward.6} parent=5 // pred_region
      %s524 = ssub.s32 %s24, 1
      %p525 = scmp.lt.s32.totalorder %s29, 1
      %s526 = scalar_select %p525, %s29, 1
      %s527 = smul.addr %s526, 8
      %s528 = scalar_lea.vmem %s0, %s527
      %p529 = pneg %p50
      %p530 = pneg %p47
      %p531 = scmp.lt.s32.totalorder %s29, 1
      %s532 = scalar_select %p531, %s29, 1
      %s533 = scalar_lea.vmem %s1, %s532
      %p534 = pneg %p76
      %p535 = pneg %p73
      %p536 = pneg %p97
      %p537 = pneg %p94
      %p538 = pneg %p118
      %p539 = pneg %p115
      %p540 = pneg %p139
      %p541 = pneg %p136
      %p542 = pneg %p160
      %p543 = pneg %p157
      %p544 = pneg %p181
      %p545 = pneg %p178
      %p546 = pneg %p202
      %p547 = pneg %p199
      %p548 = pneg %p223
      %p549 = pneg %p220
      %p550 = pneg %p244
      %p551 = pneg %p241
      %p552 = pneg %p265
      %p553 = pneg %p262
      %p554 = pneg %p286
      %p555 = pneg %p283
      %p556 = pneg %p307
      %p557 = pneg %p304
      %p558 = pneg %p328
      %p559 = pneg %p325
      %p560 = pneg %p349
      %p561 = pneg %p346
      %p562 = pneg %p370
      %p563 = pneg %p367
      %p564 = pneg %p391
      %p565 = pneg %p388
      %p566 = pneg %p412
      %p567 = pneg %p409
      %p568 = pneg %p438
      %p569 = pneg %p435
      %p570 = scmp.lt.s32.totalorder %s29, 1
      %s571 = scalar_select %p570, %s29, 1
      %s572 = smul.addr %s571, 8
      %s573 = scalar_lea.vmem %s18, %s572
      %p574 = scmp.lt.s32.totalorder %s29, 1
      %s575 = scalar_select %p574, %s29, 1
      %s576 = smul.addr %s575, 8
      %s577 = scalar_lea.vmem %s0, %s576
      %p578 = scmp.lt.s32.totalorder %s29, 1
      %s579 = scalar_select %p578, %s29, 1
      %s580 = scalar_lea.vmem %s1, %s579
      %p581 = scmp.lt.s32.totalorder %s29, 1
      %s582 = scalar_select %p581, %s29, 1
      %s583 = smul.addr %s582, 8
      %s584 = scalar_lea.vmem %s18, %s583
      %v586 = vld [vmem:[%s577] sm:$0xff]
      %v587 = vld [vmem:[%s580] sm:$0x1]
      %v588 = vld [vmem:[%s2] sm:$0xf]
      %v589 = vld [vmem:[%s2 + $0x4] sm:$0xf]
      %v590 = vld [vmem:[%s2 + $0x8] sm:$0xf]
      %v591 = vld [vmem:[%s2 + $0xc] sm:$0xf]
      %v592 = vpack.c.bf16 %v586, %v586
      %v593 = vld [vmem:[%s5] sm:$0x1]
      %v595 = vlaneseq
      %v596 = vshrl.u32 %v595, 7
      %v597 = vsub.s32 0, %v596
      %v598 = vrot.slane %v593, %v597
      %v604 = vunpack.c.l.b16 %v588
      %v605 = vunpack.c.l.b16 %v589
      %v606 = vunpack.c.l.b16 %v590
      %v607 = vunpack.c.l.b16 %v591
      %v608 = vpack.c.b16 %v605, %v604
      %v609 = vpack.c.b16 %v607, %v606
      %vm612 = vcmask 261120
      %v614 = vsel %vm612, %v592, 0
      %616 = vmatprep.subr.bf16.mxu0 0
      %617 = vmatpush1.bf16.msra.mxu0 0
      %618 = vmatprep.subr.bf16.mxu0 0
      %619 = vmatpush1.bf16.msra.mxu0 0
      %620 = vmatprep.subr.bf16.mxu0 0
      %621 = vmatpush1.bf16.msra.mxu0 0
      %622 = vmatprep.subr.bf16.mxu0 0
      %623 = vmatpush1.bf16.msra.mxu0 0
      %624 = vmatprep.subr.bf16.mxu0 0
      %625 = vmatpush1.bf16.msra.mxu0 0
      %626 = vmatprep.subr.bf16.mxu0 0
      %627 = vmatpush1.bf16.msra.mxu0 0
      %628 = vmatprep.subr.bf16.mxu0 0
      %629 = vmatpush1.bf16.msra.mxu0 %v609
      %630 = vmatprep.subr.bf16.mxu0 0
      %631 = vmatpush1.bf16.msra.mxu0 %v608
      %632 = vmatprep.subr.bf16.mxu0 0
      %633 = vmatpush2.bf16.msra.mxu0 0
      %634 = vmatprep.subr.bf16.mxu0 0
      %635 = vmatpush2.bf16.msra.mxu0 0
      %636 = vmatprep.subr.bf16.mxu0 0
      %637 = vmatpush2.bf16.msra.mxu0 0
      %638 = vmatprep.subr.bf16.mxu0 0
      %639 = vmatpush2.bf16.msra.mxu0 0
      %640 = vmatprep.subr.bf16.mxu0 0
      %641 = vmatpush2.bf16.msra.mxu0 0
      %642 = vmatprep.subr.bf16.mxu0 0
      %643 = vmatpush2.bf16.msra.mxu0 0
      %644 = vmatprep.subr.bf16.mxu0 0
      %645 = vmatpush2.bf16.msra.mxu0 0
      %646 = vmatprep.subr.bf16.mxu0 0
      %647 = vmatpush2.bf16.msra.mxu0 0
      %648 = vmatprep.mubr.bf16.mxu0 0
      %649 = vmatmul.mubr.bf16.gmra.mxu0 %v614
      %v650 = vpop.f32.mrf.mxu0
      %v651 = vadd.f32 %v598, %v650
      %v652 = vpop.f32.mrf.mxu0
      %v653 = vpop.f32.mrf.mxu0
      %v654 = vpop.f32.mrf.mxu0
      %655 = vdwg.mxu0
      %v656 = vld [vmem:[%s3] sm:$0xf]
      %v657 = vld [vmem:[%s3 + $0x4] sm:$0xf]
      %v658 = vld [vmem:[%s3 + $0x8] sm:$0xf]
      %v659 = vld [vmem:[%s3 + $0xc] sm:$0xf]
      %v660 = vld [vmem:[%s6] sm:$0x1]
      %v662 = vlaneseq
      %v663 = vshrl.u32 %v662, 7
      %v664 = vsub.s32 0, %v663
      %v665 = vrot.slane %v660, %v664
      %v671 = vunpack.c.l.b16 %v656
      %v672 = vunpack.c.l.b16 %v657
      %v673 = vunpack.c.l.b16 %v658
      %v674 = vunpack.c.l.b16 %v659
      %v675 = vpack.c.b16 %v672, %v671
      %v676 = vpack.c.b16 %v674, %v673
      %679 = vmatprep.subr.bf16.mxu0 0
      %680 = vmatpush1.bf16.msra.mxu0 0
      %681 = vmatprep.subr.bf16.mxu0 0
      %682 = vmatpush1.bf16.msra.mxu0 0
      %683 = vmatprep.subr.bf16.mxu0 0
      %684 = vmatpush1.bf16.msra.mxu0 0
      %685 = vmatprep.subr.bf16.mxu0 0
      %686 = vmatpush1.bf16.msra.mxu0 0
      %687 = vmatprep.subr.bf16.mxu0 0
      %688 = vmatpush1.bf16.msra.mxu0 0
      %689 = vmatprep.subr.bf16.mxu0 0
      %690 = vmatpush1.bf16.msra.mxu0 0
      %691 = vmatprep.subr.bf16.mxu0 0
      %692 = vmatpush1.bf16.msra.mxu0 %v676
      %693 = vmatprep.subr.bf16.mxu0 0
      %694 = vmatpush1.bf16.msra.mxu0 %v675
      %695 = vmatprep.subr.bf16.mxu0 0
      %696 = vmatpush2.bf16.msra.mxu0 0
      %697 = vmatprep.subr.bf16.mxu0 0
      %698 = vmatpush2.bf16.msra.mxu0 0
      %699 = vmatprep.subr.bf16.mxu0 0
      %700 = vmatpush2.bf16.msra.mxu0 0
      %701 = vmatprep.subr.bf16.mxu0 0
      %702 = vmatpush2.bf16.msra.mxu0 0
      %703 = vmatprep.subr.bf16.mxu0 0
      %704 = vmatpush2.bf16.msra.mxu0 0
      %705 = vmatprep.subr.bf16.mxu0 0
      %706 = vmatpush2.bf16.msra.mxu0 0
      %707 = vmatprep.subr.bf16.mxu0 0
      %708 = vmatpush2.bf16.msra.mxu0 0
      %709 = vmatprep.subr.bf16.mxu0 0
      %710 = vmatpush2.bf16.msra.mxu0 0
      %711 = vmatprep.mubr.bf16.mxu0 0
      %712 = vmatmul.mubr.bf16.gmra.mxu0 %v614
      %v713 = vpop.f32.mrf.mxu0
      %v714 = vadd.f32 %v665, %v713
      %v715 = vpop.f32.mrf.mxu0
      %v716 = vpop.f32.mrf.mxu0
      %v717 = vpop.f32.mrf.mxu0
      %718 = vdwg.mxu0
      %v719 = vld [vmem:[%s4] sm:$0xf]
      %v720 = vld [vmem:[%s4 + $0x4] sm:$0xf]
      %v721 = vld [vmem:[%s4 + $0x8] sm:$0xf]
      %v722 = vld [vmem:[%s4 + $0xc] sm:$0xf]
      %v723 = vld [vmem:[%s7] sm:$0x1]
      %v725 = vlaneseq
      %v726 = vshrl.u32 %v725, 7
      %v727 = vsub.s32 0, %v726
      %v728 = vrot.slane %v723, %v727
      %v734 = vunpack.c.l.b16 %v719
      %v735 = vunpack.c.l.b16 %v720
      %v736 = vunpack.c.l.b16 %v721
      %v737 = vunpack.c.l.b16 %v722
      %v738 = vpack.c.b16 %v735, %v734
      %v739 = vpack.c.b16 %v737, %v736
      %742 = vmatprep.subr.bf16.mxu0 0
      %743 = vmatpush1.bf16.msra.mxu0 0
      %744 = vmatprep.subr.bf16.mxu0 0
      %745 = vmatpush1.bf16.msra.mxu0 0
      %746 = vmatprep.subr.bf16.mxu0 0
      %747 = vmatpush1.bf16.msra.mxu0 0
      %748 = vmatprep.subr.bf16.mxu0 0
      %749 = vmatpush1.bf16.msra.mxu0 0
      %750 = vmatprep.subr.bf16.mxu0 0
      %751 = vmatpush1.bf16.msra.mxu0 0
      %752 = vmatprep.subr.bf16.mxu0 0
      %753 = vmatpush1.bf16.msra.mxu0 0
      %754 = vmatprep.subr.bf16.mxu0 0
      %755 = vmatpush1.bf16.msra.mxu0 %v739
      %756 = vmatprep.subr.bf16.mxu0 0
      %757 = vmatpush1.bf16.msra.mxu0 %v738
      %758 = vmatprep.subr.bf16.mxu0 0
      %759 = vmatpush2.bf16.msra.mxu0 0
      %760 = vmatprep.subr.bf16.mxu0 0
      %761 = vmatpush2.bf16.msra.mxu0 0
      %762 = vmatprep.subr.bf16.mxu0 0
      %763 = vmatpush2.bf16.msra.mxu0 0
      %764 = vmatprep.subr.bf16.mxu0 0
      %765 = vmatpush2.bf16.msra.mxu0 0
      %766 = vmatprep.subr.bf16.mxu0 0
      %767 = vmatpush2.bf16.msra.mxu0 0
      %768 = vmatprep.subr.bf16.mxu0 0
      %769 = vmatpush2.bf16.msra.mxu0 0
      %770 = vmatprep.subr.bf16.mxu0 0
      %771 = vmatpush2.bf16.msra.mxu0 0
      %772 = vmatprep.subr.bf16.mxu0 0
      %773 = vmatpush2.bf16.msra.mxu0 0
      %774 = vmatprep.mubr.bf16.mxu0 0
      %775 = vmatmul.mubr.bf16.gmra.mxu0 %v614
      %v776 = vpop.f32.mrf.mxu0
      %v777 = vadd.f32 %v728, %v776
      %v778 = vpop.f32.mrf.mxu0
      %v779 = vpop.f32.mrf.mxu0
      %v780 = vpop.f32.mrf.mxu0
      %781 = vdwg.mxu0
      %v782 = vpack.c.bf16 %v651, %v651
      %v783 = vpack.c.bf16 %v714, %v714
      %vm784 = vcmask 64512
      %v786 = vsel %vm784, %v782, 0
      %v789 = vsel %vm784, %v783, 0
      %791 = vmatprep.subr.bf16.mxu0 0
      %792 = vmatpush1.bf16.xpose.msra.mxu0 0
      %793 = vmatprep.subr.bf16.mxu0 0
      %794 = vmatpush1.bf16.xpose.msra.mxu0 0
      %795 = vmatprep.subr.bf16.mxu0 0
      %796 = vmatpush1.bf16.xpose.msra.mxu0 0
      %797 = vmatprep.subr.bf16.mxu0 0
      %798 = vmatpush1.bf16.xpose.msra.mxu0 0
      %799 = vmatprep.subr.bf16.mxu0 0
      %800 = vmatpush1.bf16.xpose.msra.mxu0 0
      %801 = vmatprep.subr.bf16.mxu0 0
      %802 = vmatpush1.bf16.xpose.msra.mxu0 0
      %803 = vmatprep.subr.bf16.mxu0 0
      %804 = vmatpush1.bf16.xpose.msra.mxu0 0
      %805 = vmatprep.subr.bf16.mxu0 0
      %806 = vmatpush1.bf16.xpose.msra.mxu0 %v789
      %807 = vmatprep.subr.bf16.mxu0 0
      %808 = vmatpush2.bf16.xpose.msra.mxu0 0
      %809 = vmatprep.subr.bf16.mxu0 0
      %810 = vmatpush2.bf16.xpose.msra.mxu0 0
      %811 = vmatprep.subr.bf16.mxu0 0
      %812 = vmatpush2.bf16.xpose.msra.mxu0 0
      %813 = vmatprep.subr.bf16.mxu0 0
      %814 = vmatpush2.bf16.xpose.msra.mxu0 0
      %815 = vmatprep.subr.bf16.mxu0 0
      %816 = vmatpush2.bf16.xpose.msra.mxu0 0
      %817 = vmatprep.subr.bf16.mxu0 0
      %818 = vmatpush2.bf16.xpose.msra.mxu0 0
      %819 = vmatprep.subr.bf16.mxu0 0
      %820 = vmatpush2.bf16.xpose.msra.mxu0 0
      %821 = vmatprep.subr.bf16.mxu0 0
      %822 = vmatpush2.bf16.xpose.msra.mxu0 0
      %823 = vmatprep.mubr.bf16.mxu0 0
      %824 = vmatmul.mubr.bf16.gmra.mxu0 %v786
      %v825 = vpop.f32.mrf.mxu0
      %v826 = vadd.f32 0.0, %v825
      %v827 = vpop.f32.mrf.mxu0
      %v828 = vpop.f32.mrf.mxu0
      %v829 = vpop.f32.mrf.mxu0
      %830 = vdwg.mxu0
      %v831 = vmul.f32 %v826, 0.35355338
      %v833 = vlaneseq
      %v834 = vshrl.u32 %v833, 7
      %v835 = vsub.s32 0, %v834
      %v836 = vrot.slane %v587, %v835
      %v838 = vadd.f32 %v831, %v836
      %v839 = vsel %vm784, %v838, -inf
      %840 = vmax.xlane.f32.xlu0 %v839
      %v841 = vpop.xlane.xlu0 %840
      %v842 = vsub.f32 %v838, %v841
      %v843 = vmul.f32 %v842, 1.442695
      %v844 = vpow.pop %v843
      %v845 = vsel %vm784, %v844, 0.0
      %846 = vadd.xlane.f32.xlu0 %v845
      %v847 = vpop.xlane.xlu0 %846
      %v848 = vrcp.pop %v847
      %v849 = vmul.f32 %v844, %v848
      %v850 = vpack.c.bf16 %v849, %v849
      %v851 = vpack.c.bf16 %v777, %v777
      %v853 = vsel %vm784, %v850, 0
      %vm855 = vcmask 1043456
      %v857 = vsel %vm855, %v851, 0
      %859 = vmatprep.subr.bf16.mxu0 0
      %860 = vmatpush1.bf16.msra.mxu0 0
      %861 = vmatprep.subr.bf16.mxu0 0
      %862 = vmatpush1.bf16.msra.mxu0 0
      %863 = vmatprep.subr.bf16.mxu0 0
      %864 = vmatpush1.bf16.msra.mxu0 0
      %865 = vmatprep.subr.bf16.mxu0 0
      %866 = vmatpush1.bf16.msra.mxu0 0
      %867 = vmatprep.subr.bf16.mxu0 0
      %868 = vmatpush1.bf16.msra.mxu0 0
      %869 = vmatprep.subr.bf16.mxu0 0
      %870 = vmatpush1.bf16.msra.mxu0 0
      %871 = vmatprep.subr.bf16.mxu0 0
      %872 = vmatpush1.bf16.msra.mxu0 0
      %873 = vmatprep.subr.bf16.mxu0 0
      %874 = vmatpush1.bf16.msra.mxu0 %v857
      %875 = vmatprep.subr.bf16.mxu0 0
      %876 = vmatpush2.bf16.msra.mxu0 0
      %877 = vmatprep.subr.bf16.mxu0 0
      %878 = vmatpush2.bf16.msra.mxu0 0
      %879 = vmatprep.subr.bf16.mxu0 0
      %880 = vmatpush2.bf16.msra.mxu0 0
      %881 = vmatprep.subr.bf16.mxu0 0
      %882 = vmatpush2.bf16.msra.mxu0 0
      %883 = vmatprep.subr.bf16.mxu0 0
      %884 = vmatpush2.bf16.msra.mxu0 0
      %885 = vmatprep.subr.bf16.mxu0 0
      %886 = vmatpush2.bf16.msra.mxu0 0
      %887 = vmatprep.subr.bf16.mxu0 0
      %888 = vmatpush2.bf16.msra.mxu0 0
      %889 = vmatprep.subr.bf16.mxu0 0
      %890 = vmatpush2.bf16.msra.mxu0 0
      %891 = vmatprep.mubr.bf16.mxu0 0
      %892 = vmatmul.mubr.bf16.gmra.mxu0 %v853
      %v893 = vpop.f32.mrf.mxu0
      %v894 = vadd.f32 0.0, %v893
      %v895 = vpop.f32.mrf.mxu0
      %v896 = vpop.f32.mrf.mxu0
      %v897 = vpop.f32.mrf.mxu0
      %898 = vdwg.mxu0
      %v899 = vld [vmem:[%s8] sm:$0xf]
      %v900 = vpack.c.bf16 %v894, %v894
      %s901 = scalar_lea.vmem %s2, 16
      %v902 = vld [vmem:[%s901] sm:$0xf]
      %v903 = vld [vmem:[%s901 + $0x4] sm:$0xf]
      %v904 = vld [vmem:[%s901 + $0x8] sm:$0xf]
      %v905 = vld [vmem:[%s901 + $0xc] sm:$0xf]
      %s906 = scalar_lea.vmem %s5, 1
      %v907 = vld [vmem:[%s906] sm:$0x1]
      %v909 = vlaneseq
      %v910 = vshrl.u32 %v909, 7
      %v911 = vsub.s32 0, %v910
      %v912 = vrot.slane %v907, %v911
      %v918 = vunpack.c.l.b16 %v902
      %v919 = vunpack.c.l.b16 %v903
      %v920 = vunpack.c.l.b16 %v904
      %v921 = vunpack.c.l.b16 %v905
      %v922 = vpack.c.b16 %v919, %v918
      %v923 = vpack.c.b16 %v921, %v920
      %926 = vmatprep.subr.bf16.mxu0 0
      %927 = vmatpush1.bf16.msra.mxu0 0
      %928 = vmatprep.subr.bf16.mxu0 0
      %929 = vmatpush1.bf16.msra.mxu0 0
      %930 = vmatprep.subr.bf16.mxu0 0
      %931 = vmatpush1.bf16.msra.mxu0 0
      %932 = vmatprep.subr.bf16.mxu0 0
      %933 = vmatpush1.bf16.msra.mxu0 0
      %934 = vmatprep.subr.bf16.mxu0 0
      %935 = vmatpush1.bf16.msra.mxu0 0
      %936 = vmatprep.subr.bf16.mxu0 0
      %937 = vmatpush1.bf16.msra.mxu0 0
      %938 = vmatprep.subr.bf16.mxu0 0
      %939 = vmatpush1.bf16.msra.mxu0 %v923
      %940 = vmatprep.subr.bf16.mxu0 0
      %941 = vmatpush1.bf16.msra.mxu0 %v922
      %942 = vmatprep.subr.bf16.mxu0 0
      %943 = vmatpush2.bf16.msra.mxu0 0
      %944 = vmatprep.subr.bf16.mxu0 0
      %945 = vmatpush2.bf16.msra.mxu0 0
      %946 = vmatprep.subr.bf16.mxu0 0
      %947 = vmatpush2.bf16.msra.mxu0 0
      %948 = vmatprep.subr.bf16.mxu0 0
      %949 = vmatpush2.bf16.msra.mxu0 0
      %950 = vmatprep.subr.bf16.mxu0 0
      %951 = vmatpush2.bf16.msra.mxu0 0
      %952 = vmatprep.subr.bf16.mxu0 0
      %953 = vmatpush2.bf16.msra.mxu0 0
      %954 = vmatprep.subr.bf16.mxu0 0
      %955 = vmatpush2.bf16.msra.mxu0 0
      %956 = vmatprep.subr.bf16.mxu0 0
      %957 = vmatpush2.bf16.msra.mxu0 0
      %958 = vmatprep.mubr.bf16.mxu0 0
      %959 = vmatmul.mubr.bf16.gmra.mxu0 %v614
      %v960 = vpop.f32.mrf.mxu0
      %v961 = vadd.f32 %v912, %v960
      %v962 = vpop.f32.mrf.mxu0
      %v963 = vpop.f32.mrf.mxu0
      %v964 = vpop.f32.mrf.mxu0
      %965 = vdwg.mxu0
      %s966 = scalar_lea.vmem %s3, 16
      %v967 = vld [vmem:[%s966] sm:$0xf]
      %v968 = vld [vmem:[%s966 + $0x4] sm:$0xf]
      %v969 = vld [vmem:[%s966 + $0x8] sm:$0xf]
      %v970 = vld [vmem:[%s966 + $0xc] sm:$0xf]
      %s971 = scalar_lea.vmem %s6, 1
      %v972 = vld [vmem:[%s971] sm:$0x1]
      %v974 = vlaneseq
      %v975 = vshrl.u32 %v974, 7
      %v976 = vsub.s32 0, %v975
      %v977 = vrot.slane %v972, %v976
      %v983 = vunpack.c.l.b16 %v967
      %v984 = vunpack.c.l.b16 %v968
      %v985 = vunpack.c.l.b16 %v969
      %v986 = vunpack.c.l.b16 %v970
      %v987 = vpack.c.b16 %v984, %v983
      %v988 = vpack.c.b16 %v986, %v985
      %991 = vmatprep.subr.bf16.mxu0 0
      %992 = vmatpush1.bf16.msra.mxu0 0
      %993 = vmatprep.subr.bf16.mxu0 0
      %994 = vmatpush1.bf16.msra.mxu0 0
      %995 = vmatprep.subr.bf16.mxu0 0
      %996 = vmatpush1.bf16.msra.mxu0 0
      %997 = vmatprep.subr.bf16.mxu0 0
      %998 = vmatpush1.bf16.msra.mxu0 0
      %999 = vmatprep.subr.bf16.mxu0 0
      %1000 = vmatpush1.bf16.msra.mxu0 0
      %1001 = vmatprep.subr.bf16.mxu0 0
      %1002 = vmatpush1.bf16.msra.mxu0 0
      %1003 = vmatprep.subr.bf16.mxu0 0
      %1004 = vmatpush1.bf16.msra.mxu0 %v988
      %1005 = vmatprep.subr.bf16.mxu0 0
      %1006 = vmatpush1.bf16.msra.mxu0 %v987
      %1007 = vmatprep.subr.bf16.mxu0 0
      %1008 = vmatpush2.bf16.msra.mxu0 0
      %1009 = vmatprep.subr.bf16.mxu0 0
      %1010 = vmatpush2.bf16.msra.mxu0 0
      %1011 = vmatprep.subr.bf16.mxu0 0
      %1012 = vmatpush2.bf16.msra.mxu0 0
      %1013 = vmatprep.subr.bf16.mxu0 0
      %1014 = vmatpush2.bf16.msra.mxu0 0
      %1015 = vmatprep.subr.bf16.mxu0 0
      %1016 = vmatpush2.bf16.msra.mxu0 0
      %1017 = vmatprep.subr.bf16.mxu0 0
      %1018 = vmatpush2.bf16.msra.mxu0 0
      %1019 = vmatprep.subr.bf16.mxu0 0
      %1020 = vmatpush2.bf16.msra.mxu0 0
      %1021 = vmatprep.subr.bf16.mxu0 0
      %1022 = vmatpush2.bf16.msra.mxu0 0
      %1023 = vmatprep.mubr.bf16.mxu0 0
      %1024 = vmatmul.mubr.bf16.gmra.mxu0 %v614
      %v1025 = vpop.f32.mrf.mxu0
      %v1026 = vadd.f32 %v977, %v1025
      %v1027 = vpop.f32.mrf.mxu0
      %v1028 = vpop.f32.mrf.mxu0
      %v1029 = vpop.f32.mrf.mxu0
      %1030 = vdwg.mxu0
      %s1031 = scalar_lea.vmem %s4, 16
      %v1032 = vld [vmem:[%s1031] sm:$0xf]
      %v1033 = vld [vmem:[%s1031 + $0x4] sm:$0xf]
      %v1034 = vld [vmem:[%s1031 + $0x8] sm:$0xf]
      %v1035 = vld [vmem:[%s1031 + $0xc] sm:$0xf]
      %s1036 = scalar_lea.vmem %s7, 1
      %v1037 = vld [vmem:[%s1036] sm:$0x1]
      %v1039 = vlaneseq
      %v1040 = vshrl.u32 %v1039, 7
      %v1041 = vsub.s32 0, %v1040
      %v1042 = vrot.slane %v1037, %v1041
      %v1048 = vunpack.c.l.b16 %v1032
      %v1049 = vunpack.c.l.b16 %v1033
      %v1050 = vunpack.c.l.b16 %v1034
      %v1051 = vunpack.c.l.b16 %v1035
      %v1052 = vpack.c.b16 %v1049, %v1048
      %v1053 = vpack.c.b16 %v1051, %v1050
      %1056 = vmatprep.subr.bf16.mxu0 0
      %1057 = vmatpush1.bf16.msra.mxu0 0
      %1058 = vmatprep.subr.bf16.mxu0 0
      %1059 = vmatpush1.bf16.msra.mxu0 0
      %1060 = vmatprep.subr.bf16.mxu0 0
      %1061 = vmatpush1.bf16.msra.mxu0 0
      %1062 = vmatprep.subr.bf16.mxu0 0
      %1063 = vmatpush1.bf16.msra.mxu0 0
      %1064 = vmatprep.subr.bf16.mxu0 0
      %1065 = vmatpush1.bf16.msra.mxu0 0
      %1066 = vmatprep.subr.bf16.mxu0 0
      %1067 = vmatpush1.bf16.msra.mxu0 0
      %1068 = vmatprep.subr.bf16.mxu0 0
      %1069 = vmatpush1.bf16.msra.mxu0 %v1053
      %1070 = vmatprep.subr.bf16.mxu0 0
      %1071 = vmatpush1.bf16.msra.mxu0 %v1052
      %1072 = vmatprep.subr.bf16.mxu0 0
      %1073 = vmatpush2.bf16.msra.mxu0 0
      %1074 = vmatprep.subr.bf16.mxu0 0
      %1075 = vmatpush2.bf16.msra.mxu0 0
      %1076 = vmatprep.subr.bf16.mxu0 0
      %1077 = vmatpush2.bf16.msra.mxu0 0
      %1078 = vmatprep.subr.bf16.mxu0 0
      %1079 = vmatpush2.bf16.msra.mxu0 0
      %1080 = vmatprep.subr.bf16.mxu0 0
      %1081 = vmatpush2.bf16.msra.mxu0 0
      %1082 = vmatprep.subr.bf16.mxu0 0
      %1083 = vmatpush2.bf16.msra.mxu0 0
      %1084 = vmatprep.subr.bf16.mxu0 0
      %1085 = vmatpush2.bf16.msra.mxu0 0
      %1086 = vmatprep.subr.bf16.mxu0 0
      %1087 = vmatpush2.bf16.msra.mxu0 0
      %1088 = vmatprep.mubr.bf16.mxu0 0
      %1089 = vmatmul.mubr.bf16.gmra.mxu0 %v614
      %v1090 = vpop.f32.mrf.mxu0
      %v1091 = vadd.f32 %v1042, %v1090
      %v1092 = vpop.f32.mrf.mxu0
      %v1093 = vpop.f32.mrf.mxu0
      %v1094 = vpop.f32.mrf.mxu0
      %1095 = vdwg.mxu0
      %v1096 = vpack.c.bf16 %v961, %v961
      %v1097 = vpack.c.bf16 %v1026, %v1026
      %v1099 = vsel %vm784, %v1096, 0
      %v1102 = vsel %vm784, %v1097, 0
      %1104 = vmatprep.subr.bf16.mxu0 0
      %1105 = vmatpush1.bf16.xpose.msra.mxu0 0
      %1106 = vmatprep.subr.bf16.mxu0 0
      %1107 = vmatpush1.bf16.xpose.msra.mxu0 0
      %1108 = vmatprep.subr.bf16.mxu0 0
      %1109 = vmatpush1.bf16.xpose.msra.mxu0 0
      %1110 = vmatprep.subr.bf16.mxu0 0
      %1111 = vmatpush1.bf16.xpose.msra.mxu0 0
      %1112 = vmatprep.subr.bf16.mxu0 0
      %1113 = vmatpush1.bf16.xpose.msra.mxu0 0
      %1114 = vmatprep.subr.bf16.mxu0 0
      %1115 = vmatpush1.bf16.xpose.msra.mxu0 0
      %1116 = vmatprep.subr.bf16.mxu0 0
      %1117 = vmatpush1.bf16.xpose.msra.mxu0 0
      %1118 = vmatprep.subr.bf16.mxu0 0
      %1119 = vmatpush1.bf16.xpose.msra.mxu0 %v1102
      %1120 = vmatprep.subr.bf16.mxu0 0
      %1121 = vmatpush2.bf16.xpose.msra.mxu0 0
      %1122 = vmatprep.subr.bf16.mxu0 0
      %1123 = vmatpush2.bf16.xpose.msra.mxu0 0
      %1124 = vmatprep.subr.bf16.mxu0 0
      %1125 = vmatpush2.bf16.xpose.msra.mxu0 0
      %1126 = vmatprep.subr.bf16.mxu0 0
      %1127 = vmatpush2.bf16.xpose.msra.mxu0 0
      %1128 = vmatprep.subr.bf16.mxu0 0
      %1129 = vmatpush2.bf16.xpose.msra.mxu0 0
      %1130 = vmatprep.subr.bf16.mxu0 0
      %1131 = vmatpush2.bf16.xpose.msra.mxu0 0
      %1132 = vmatprep.subr.bf16.mxu0 0
      %1133 = vmatpush2.bf16.xpose.msra.mxu0 0
      %1134 = vmatprep.subr.bf16.mxu0 0
      %1135 = vmatpush2.bf16.xpose.msra.mxu0 0
      %1136 = vmatprep.mubr.bf16.mxu0 0
      %1137 = vmatmul.mubr.bf16.gmra.mxu0 %v1099
      %v1138 = vpop.f32.mrf.mxu0
      %v1139 = vadd.f32 0.0, %v1138
      %v1140 = vpop.f32.mrf.mxu0
      %v1141 = vpop.f32.mrf.mxu0
      %v1142 = vpop.f32.mrf.mxu0
      %1143 = vdwg.mxu0
      %v1144 = vmul.f32 %v1139, 0.35355338
      %v1145 = vadd.f32 %v1144, %v836
      %v1146 = vsel %vm784, %v1145, -inf
      %1147 = vmax.xlane.f32.xlu0 %v1146
      %v1148 = vpop.xlane.xlu0 %1147
      %v1149 = vsub.f32 %v1145, %v1148
      %v1150 = vmul.f32 %v1149, 1.442695
      %v1151 = vpow.pop %v1150
      %v1152 = vsel %vm784, %v1151, 0.0
      %1153 = vadd.xlane.f32.xlu0 %v1152
      %v1154 = vpop.xlane.xlu0 %1153
      %v1155 = vrcp.pop %v1154
      %v1156 = vmul.f32 %v1151, %v1155
      %v1157 = vpack.c.bf16 %v1156, %v1156
      %v1158 = vpack.c.bf16 %v1091, %v1091
      %v1160 = vsel %vm784, %v1157, 0
      %v1163 = vsel %vm855, %v1158, 0
      %1165 = vmatprep.subr.bf16.mxu0 0
      %1166 = vmatpush1.bf16.msra.mxu0 0
      %1167 = vmatprep.subr.bf16.mxu0 0
      %1168 = vmatpush1.bf16.msra.mxu0 0
      %1169 = vmatprep.subr.bf16.mxu0 0
      %1170 = vmatpush1.bf16.msra.mxu0 0
      %1171 = vmatprep.subr.bf16.mxu0 0
      %1172 = vmatpush1.bf16.msra.mxu0 0
      %1173 = vmatprep.subr.bf16.mxu0 0
      %1174 = vmatpush1.bf16.msra.mxu0 0
      %1175 = vmatprep.subr.bf16.mxu0 0
      %1176 = vmatpush1.bf16.msra.mxu0 0
      %1177 = vmatprep.subr.bf16.mxu0 0
      %1178 = vmatpush1.bf16.msra.mxu0 0
      %1179 = vmatprep.subr.bf16.mxu0 0
      %1180 = vmatpush1.bf16.msra.mxu0 %v1163
      %1181 = vmatprep.subr.bf16.mxu0 0
      %1182 = vmatpush2.bf16.msra.mxu0 0
      %1183 = vmatprep.subr.bf16.mxu0 0
      %1184 = vmatpush2.bf16.msra.mxu0 0
      %1185 = vmatprep.subr.bf16.mxu0 0
      %1186 = vmatpush2.bf16.msra.mxu0 0
      %1187 = vmatprep.subr.bf16.mxu0 0
      %1188 = vmatpush2.bf16.msra.mxu0 0
      %1189 = vmatprep.subr.bf16.mxu0 0
      %1190 = vmatpush2.bf16.msra.mxu0 0
      %1191 = vmatprep.subr.bf16.mxu0 0
      %1192 = vmatpush2.bf16.msra.mxu0 0
      %1193 = vmatprep.subr.bf16.mxu0 0
      %1194 = vmatpush2.bf16.msra.mxu0 0
      %1195 = vmatprep.subr.bf16.mxu0 0
      %1196 = vmatpush2.bf16.msra.mxu0 0
      %1197 = vmatprep.mubr.bf16.mxu0 0
      %1198 = vmatmul.mubr.bf16.gmra.mxu0 %v1160
      %v1199 = vpop.f32.mrf.mxu0
      %v1200 = vadd.f32 0.0, %v1199
      %v1201 = vpop.f32.mrf.mxu0
      %v1202 = vpop.f32.mrf.mxu0
      %v1203 = vpop.f32.mrf.mxu0
      %1204 = vdwg.mxu0
      %s1205 = scalar_lea.vmem %s8, 4
      %v1206 = vld [vmem:[%s1205] sm:$0xf]
      %v1207 = vpack.c.bf16 %v1200, %v1200
      %v1209 = vsel %vm784, %v1207, 0
      %v1212 = vsel %vm855, %v1206, 0
      %1214 = vmatprep.subr.bf16.mxu0 0
      %1215 = vmatpush1.bf16.msra.mxu0 0
      %1216 = vmatprep.subr.bf16.mxu0 0
      %1217 = vmatpush1.bf16.msra.mxu0 0
      %1218 = vmatprep.subr.bf16.mxu0 0
      %1219 = vmatpush1.bf16.msra.mxu0 0
      %1220 = vmatprep.subr.bf16.mxu0 0
      %1221 = vmatpush1.bf16.msra.mxu0 0
      %1222 = vmatprep.subr.bf16.mxu0 0
      %1223 = vmatpush1.bf16.msra.mxu0 0
      %1224 = vmatprep.subr.bf16.mxu0 0
      %1225 = vmatpush1.bf16.msra.mxu0 0
      %1226 = vmatprep.subr.bf16.mxu0 0
      %1227 = vmatpush1.bf16.msra.mxu0 0
      %1228 = vmatprep.subr.bf16.mxu0 0
      %1229 = vmatpush1.bf16.msra.mxu0 %v1212
      %1230 = vmatprep.subr.bf16.mxu0 0
      %1231 = vmatpush2.bf16.msra.mxu0 0
      %1232 = vmatprep.subr.bf16.mxu0 0
      %1233 = vmatpush2.bf16.msra.mxu0 0
      %1234 = vmatprep.subr.bf16.mxu0 0
      %1235 = vmatpush2.bf16.msra.mxu0 0
      %1236 = vmatprep.subr.bf16.mxu0 0
      %1237 = vmatpush2.bf16.msra.mxu0 0
      %1238 = vmatprep.subr.bf16.mxu0 0
      %1239 = vmatpush2.bf16.msra.mxu0 0
      %1240 = vmatprep.subr.bf16.mxu0 0
      %1241 = vmatpush2.bf16.msra.mxu0 0
      %1242 = vmatprep.subr.bf16.mxu0 0
      %1243 = vmatpush2.bf16.msra.mxu0 0
      %1244 = vmatprep.subr.bf16.mxu0 0
      %1245 = vmatpush2.bf16.msra.mxu0 0
      %1246 = vmatprep.mubr.bf16.mxu0 0
      %1247 = vmatmul.mubr.bf16.gmra.mxu0 %v1209
      %v1248 = vpop.f32.mrf.mxu0
      %v1249 = vadd.f32 0.0, %v1248
      %v1250 = vpop.f32.mrf.mxu0
      %v1251 = vpop.f32.mrf.mxu0
      %v1252 = vpop.f32.mrf.mxu0
      %1253 = vdwg.mxu0
      %v1255 = vsel %vm784, %v900, 0
      %v1258 = vsel %vm855, %v899, 0
      %1260 = vmatprep.subr.bf16.mxu0 0
      %1261 = vmatpush1.bf16.msra.mxu0 0
      %1262 = vmatprep.subr.bf16.mxu0 0
      %1263 = vmatpush1.bf16.msra.mxu0 0
      %1264 = vmatprep.subr.bf16.mxu0 0
      %1265 = vmatpush1.bf16.msra.mxu0 0
      %1266 = vmatprep.subr.bf16.mxu0 0
      %1267 = vmatpush1.bf16.msra.mxu0 0
      %1268 = vmatprep.subr.bf16.mxu0 0
      %1269 = vmatpush1.bf16.msra.mxu0 0
      %1270 = vmatprep.subr.bf16.mxu0 0
      %1271 = vmatpush1.bf16.msra.mxu0 0
      %1272 = vmatprep.subr.bf16.mxu0 0
      %1273 = vmatpush1.bf16.msra.mxu0 0
      %1274 = vmatprep.subr.bf16.mxu0 0
      %1275 = vmatpush1.bf16.msra.mxu0 %v1258
      %1276 = vmatprep.subr.bf16.mxu0 0
      %1277 = vmatpush2.bf16.msra.mxu0 0
      %1278 = vmatprep.subr.bf16.mxu0 0
      %1279 = vmatpush2.bf16.msra.mxu0 0
      %1280 = vmatprep.subr.bf16.mxu0 0
      %1281 = vmatpush2.bf16.msra.mxu0 0
      %1282 = vmatprep.subr.bf16.mxu0 0
      %1283 = vmatpush2.bf16.msra.mxu0 0
      %1284 = vmatprep.subr.bf16.mxu0 0
      %1285 = vmatpush2.bf16.msra.mxu0 0
      %1286 = vmatprep.subr.bf16.mxu0 0
      %1287 = vmatpush2.bf16.msra.mxu0 0
      %1288 = vmatprep.subr.bf16.mxu0 0
      %1289 = vmatpush2.bf16.msra.mxu0 0
      %1290 = vmatprep.subr.bf16.mxu0 0
      %1291 = vmatpush2.bf16.msra.mxu0 0
      %1292 = vmatprep.mubr.bf16.mxu0 0
      %1293 = vmatmul.mubr.bf16.gmra.mxu0 %v1255
      %v1294 = vpop.f32.mrf.mxu0
      %v1295 = vadd.f32 %v1249, %v1294
      %v1296 = vpop.f32.mrf.mxu0
      %v1297 = vpop.f32.mrf.mxu0
      %v1298 = vpop.f32.mrf.mxu0
      %1299 = vdwg.mxu0
      %s1300 = scalar_lea.vmem %s2, 32
      %v1301 = vld [vmem:[%s1300] sm:$0xf]
      %v1302 = vld [vmem:[%s1300 + $0x4] sm:$0xf]
      %v1303 = vld [vmem:[%s1300 + $0x8] sm:$0xf]
      %v1304 = vld [vmem:[%s1300 + $0xc] sm:$0xf]
      %s1305 = scalar_lea.vmem %s5, 2
      %v1306 = vld [vmem:[%s1305] sm:$0x1]
      %v1308 = vlaneseq
      %v1309 = vshrl.u32 %v1308, 7
      %v1310 = vsub.s32 0, %v1309
      %v1311 = vrot.slane %v1306, %v1310
      %v1317 = vunpack.c.l.b16 %v1301
      %v1318 = vunpack.c.l.b16 %v1302
      %v1319 = vunpack.c.l.b16 %v1303
      %v1320 = vunpack.c.l.b16 %v1304
      %v1321 = vpack.c.b16 %v1318, %v1317
      %v1322 = vpack.c.b16 %v1320, %v1319
      %1325 = vmatprep.subr.bf16.mxu0 0
      %1326 = vmatpush1.bf16.msra.mxu0 0
      %1327 = vmatprep.subr.bf16.mxu0 0
      %1328 = vmatpush1.bf16.msra.mxu0 0
      %1329 = vmatprep.subr.bf16.mxu0 0
      %1330 = vmatpush1.bf16.msra.mxu0 0
      %1331 = vmatprep.subr.bf16.mxu0 0
      %1332 = vmatpush1.bf16.msra.mxu0 0
      %1333 = vmatprep.subr.bf16.mxu0 0
      %1334 = vmatpush1.bf16.msra.mxu0 0
      %1335 = vmatprep.subr.bf16.mxu0 0
      %1336 = vmatpush1.bf16.msra.mxu0 0
      %1337 = vmatprep.subr.bf16.mxu0 0
      %1338 = vmatpush1.bf16.msra.mxu0 %v1322
      %1339 = vmatprep.subr.bf16.mxu0 0
      %1340 = vmatpush1.bf16.msra.mxu0 %v1321
      %1341 = vmatprep.subr.bf16.mxu0 0
      %1342 = vmatpush2.bf16.msra.mxu0 0
      %1343 = vmatprep.subr.bf16.mxu0 0
      %1344 = vmatpush2.bf16.msra.mxu0 0
      %1345 = vmatprep.subr.bf16.mxu0 0
      %1346 = vmatpush2.bf16.msra.mxu0 0
      %1347 = vmatprep.subr.bf16.mxu0 0
      %1348 = vmatpush2.bf16.msra.mxu0 0
      %1349 = vmatprep.subr.bf16.mxu0 0
      %1350 = vmatpush2.bf16.msra.mxu0 0
      %1351 = vmatprep.subr.bf16.mxu0 0
      %1352 = vmatpush2.bf16.msra.mxu0 0
      %1353 = vmatprep.subr.bf16.mxu0 0
      %1354 = vmatpush2.bf16.msra.mxu0 0
      %1355 = vmatprep.subr.bf16.mxu0 0
      %1356 = vmatpush2.bf16.msra.mxu0 0
      %1357 = vmatprep.mubr.bf16.mxu0 0
      %1358 = vmatmul.mubr.bf16.gmra.mxu0 %v614
      %v1359 = vpop.f32.mrf.mxu0
      %v1360 = vadd.f32 %v1311, %v1359
      %v1361 = vpop.f32.mrf.mxu0
      %v1362 = vpop.f32.mrf.mxu0
      %v1363 = vpop.f32.mrf.mxu0
      %1364 = vdwg.mxu0
      %s1365 = scalar_lea.vmem %s3, 32
      %v1366 = vld [vmem:[%s1365] sm:$0xf]
      %v1367 = vld [vmem:[%s1365 + $0x4] sm:$0xf]
      %v1368 = vld [vmem:[%s1365 + $0x8] sm:$0xf]
      %v1369 = vld [vmem:[%s1365 + $0xc] sm:$0xf]
      %s1370 = scalar_lea.vmem %s6, 2
      %v1371 = vld [vmem:[%s1370] sm:$0x1]
      %v1373 = vlaneseq
      %v1374 = vshrl.u32 %v1373, 7
      %v1375 = vsub.s32 0, %v1374
      %v1376 = vrot.slane %v1371, %v1375
      %v1382 = vunpack.c.l.b16 %v1366
      %v1383 = vunpack.c.l.b16 %v1367
      %v1384 = vunpack.c.l.b16 %v1368
      %v1385 = vunpack.c.l.b16 %v1369
      %v1386 = vpack.c.b16 %v1383, %v1382
      %v1387 = vpack.c.b16 %v1385, %v1384
      %1390 = vmatprep.subr.bf16.mxu0 0
      %1391 = vmatpush1.bf16.msra.mxu0 0
      %1392 = vmatprep.subr.bf16.mxu0 0
      %1393 = vmatpush1.bf16.msra.mxu0 0
      %1394 = vmatprep.subr.bf16.mxu0 0
      %1395 = vmatpush1.bf16.msra.mxu0 0
      %1396 = vmatprep.subr.bf16.mxu0 0
      %1397 = vmatpush1.bf16.msra.mxu0 0
      %1398 = vmatprep.subr.bf16.mxu0 0
      %1399 = vmatpush1.bf16.msra.mxu0 0
      %1400 = vmatprep.subr.bf16.mxu0 0
      %1401 = vmatpush1.bf16.msra.mxu0 0
      %1402 = vmatprep.subr.bf16.mxu0 0
      %1403 = vmatpush1.bf16.msra.mxu0 %v1387
      %1404 = vmatprep.subr.bf16.mxu0 0
      %1405 = vmatpush1.bf16.msra.mxu0 %v1386
      %1406 = vmatprep.subr.bf16.mxu0 0
      %1407 = vmatpush2.bf16.msra.mxu0 0
      %1408 = vmatprep.subr.bf16.mxu0 0
      %1409 = vmatpush2.bf16.msra.mxu0 0
      %1410 = vmatprep.subr.bf16.mxu0 0
      %1411 = vmatpush2.bf16.msra.mxu0 0
      %1412 = vmatprep.subr.bf16.mxu0 0
      %1413 = vmatpush2.bf16.msra.mxu0 0
      %1414 = vmatprep.subr.bf16.mxu0 0
      %1415 = vmatpush2.bf16.msra.mxu0 0
      %1416 = vmatprep.subr.bf16.mxu0 0
      %1417 = vmatpush2.bf16.msra.mxu0 0
      %1418 = vmatprep.subr.bf16.mxu0 0
      %1419 = vmatpush2.bf16.msra.mxu0 0
      %1420 = vmatprep.subr.bf16.mxu0 0
      %1421 = vmatpush2.bf16.msra.mxu0 0
      %1422 = vmatprep.mubr.bf16.mxu0 0
      %1423 = vmatmul.mubr.bf16.gmra.mxu0 %v614
      %v1424 = vpop.f32.mrf.mxu0
      %v1425 = vadd.f32 %v1376, %v1424
      %v1426 = vpop.f32.mrf.mxu0
      %v1427 = vpop.f32.mrf.mxu0
      %v1428 = vpop.f32.mrf.mxu0
      %1429 = vdwg.mxu0
      %s1430 = scalar_lea.vmem %s4, 32
      %v1431 = vld [vmem:[%s1430] sm:$0xf]
      %v1432 = vld [vmem:[%s1430 + $0x4] sm:$0xf]
      %v1433 = vld [vmem:[%s1430 + $0x8] sm:$0xf]
      %v1434 = vld [vmem:[%s1430 + $0xc] sm:$0xf]
      %s1435 = scalar_lea.vmem %s7, 2
      %v1436 = vld [vmem:[%s1435] sm:$0x1]
      %v1438 = vlaneseq
      %v1439 = vshrl.u32 %v1438, 7
      %v1440 = vsub.s32 0, %v1439
      %v1441 = vrot.slane %v1436, %v1440
      %v1447 = vunpack.c.l.b16 %v1431
      %v1448 = vunpack.c.l.b16 %v1432
      %v1449 = vunpack.c.l.b16 %v1433
      %v1450 = vunpack.c.l.b16 %v1434
      %v1451 = vpack.c.b16 %v1448, %v1447
      %v1452 = vpack.c.b16 %v1450, %v1449
      %1455 = vmatprep.subr.bf16.mxu0 0
      %1456 = vmatpush1.bf16.msra.mxu0 0
      %1457 = vmatprep.subr.bf16.mxu0 0
      %1458 = vmatpush1.bf16.msra.mxu0 0
      %1459 = vmatprep.subr.bf16.mxu0 0
      %1460 = vmatpush1.bf16.msra.mxu0 0
      %1461 = vmatprep.subr.bf16.mxu0 0
      %1462 = vmatpush1.bf16.msra.mxu0 0
      %1463 = vmatprep.subr.bf16.mxu0 0
      %1464 = vmatpush1.bf16.msra.mxu0 0
      %1465 = vmatprep.subr.bf16.mxu0 0
      %1466 = vmatpush1.bf16.msra.mxu0 0
      %1467 = vmatprep.subr.bf16.mxu0 0
      %1468 = vmatpush1.bf16.msra.mxu0 %v1452
      %1469 = vmatprep.subr.bf16.mxu0 0
      %1470 = vmatpush1.bf16.msra.mxu0 %v1451
      %1471 = vmatprep.subr.bf16.mxu0 0
      %1472 = vmatpush2.bf16.msra.mxu0 0
      %1473 = vmatprep.subr.bf16.mxu0 0
      %1474 = vmatpush2.bf16.msra.mxu0 0
      %1475 = vmatprep.subr.bf16.mxu0 0
      %1476 = vmatpush2.bf16.msra.mxu0 0
      %1477 = vmatprep.subr.bf16.mxu0 0
      %1478 = vmatpush2.bf16.msra.mxu0 0
      %1479 = vmatprep.subr.bf16.mxu0 0
      %1480 = vmatpush2.bf16.msra.mxu0 0
      %1481 = vmatprep.subr.bf16.mxu0 0
      %1482 = vmatpush2.bf16.msra.mxu0 0
      %1483 = vmatprep.subr.bf16.mxu0 0
      %1484 = vmatpush2.bf16.msra.mxu0 0
      %1485 = vmatprep.subr.bf16.mxu0 0
      %1486 = vmatpush2.bf16.msra.mxu0 0
      %1487 = vmatprep.mubr.bf16.mxu0 0
      %1488 = vmatmul.mubr.bf16.gmra.mxu0 %v614
      %v1489 = vpop.f32.mrf.mxu0
      %v1490 = vadd.f32 %v1441, %v1489
      %v1491 = vpop.f32.mrf.mxu0
      %v1492 = vpop.f32.mrf.mxu0
      %v1493 = vpop.f32.mrf.mxu0
      %1494 = vdwg.mxu0
      %v1495 = vpack.c.bf16 %v1360, %v1360
      %v1496 = vpack.c.bf16 %v1425, %v1425
      %v1498 = vsel %vm784, %v1495, 0
      %v1501 = vsel %vm784, %v1496, 0
      %1503 = vmatprep.subr.bf16.mxu0 0
      %1504 = vmatpush1.bf16.xpose.msra.mxu0 0
      %1505 = vmatprep.subr.bf16.mxu0 0
      %1506 = vmatpush1.bf16.xpose.msra.mxu0 0
      %1507 = vmatprep.subr.bf16.mxu0 0
      %1508 = vmatpush1.bf16.xpose.msra.mxu0 0
      %1509 = vmatprep.subr.bf16.mxu0 0
      %1510 = vmatpush1.bf16.xpose.msra.mxu0 0
      %1511 = vmatprep.subr.bf16.mxu0 0
      %1512 = vmatpush1.bf16.xpose.msra.mxu0 0
      %1513 = vmatprep.subr.bf16.mxu0 0
      %1514 = vmatpush1.bf16.xpose.msra.mxu0 0
      %1515 = vmatprep.subr.bf16.mxu0 0
      %1516 = vmatpush1.bf16.xpose.msra.mxu0 0
      %1517 = vmatprep.subr.bf16.mxu0 0
      %1518 = vmatpush1.bf16.xpose.msra.mxu0 %v1501
      %1519 = vmatprep.subr.bf16.mxu0 0
      %1520 = vmatpush2.bf16.xpose.msra.mxu0 0
      %1521 = vmatprep.subr.bf16.mxu0 0
      %1522 = vmatpush2.bf16.xpose.msra.mxu0 0
      %1523 = vmatprep.subr.bf16.mxu0 0
      %1524 = vmatpush2.bf16.xpose.msra.mxu0 0
      %1525 = vmatprep.subr.bf16.mxu0 0
      %1526 = vmatpush2.bf16.xpose.msra.mxu0 0
      %1527 = vmatprep.subr.bf16.mxu0 0
      %1528 = vmatpush2.bf16.xpose.msra.mxu0 0
      %1529 = vmatprep.subr.bf16.mxu0 0
      %1530 = vmatpush2.bf16.xpose.msra.mxu0 0
      %1531 = vmatprep.subr.bf16.mxu0 0
      %1532 = vmatpush2.bf16.xpose.msra.mxu0 0
      %1533 = vmatprep.subr.bf16.mxu0 0
      %1534 = vmatpush2.bf16.xpose.msra.mxu0 0
      %1535 = vmatprep.mubr.bf16.mxu0 0
      %1536 = vmatmul.mubr.bf16.gmra.mxu0 %v1498
      %v1537 = vpop.f32.mrf.mxu0
      %v1538 = vadd.f32 0.0, %v1537
      %v1539 = vpop.f32.mrf.mxu0
      %v1540 = vpop.f32.mrf.mxu0
      %v1541 = vpop.f32.mrf.mxu0
      %1542 = vdwg.mxu0
      %v1543 = vmul.f32 %v1538, 0.35355338
      %v1544 = vadd.f32 %v1543, %v836
      %v1545 = vsel %vm784, %v1544, -inf
      %1546 = vmax.xlane.f32.xlu0 %v1545
      %v1547 = vpop.xlane.xlu0 %1546
      %v1548 = vsub.f32 %v1544, %v1547
      %v1549 = vmul.f32 %v1548, 1.442695
      %v1550 = vpow.pop %v1549
      %v1551 = vsel %vm784, %v1550, 0.0
      %1552 = vadd.xlane.f32.xlu0 %v1551
      %v1553 = vpop.xlane.xlu0 %1552
      %v1554 = vrcp.pop %v1553
      %v1555 = vmul.f32 %v1550, %v1554
      %v1556 = vpack.c.bf16 %v1555, %v1555
      %v1557 = vpack.c.bf16 %v1490, %v1490
      %v1559 = vsel %vm784, %v1556, 0
      %v1562 = vsel %vm855, %v1557, 0
      %1564 = vmatprep.subr.bf16.mxu0 0
      %1565 = vmatpush1.bf16.msra.mxu0 0
      %1566 = vmatprep.subr.bf16.mxu0 0
      %1567 = vmatpush1.bf16.msra.mxu0 0
      %1568 = vmatprep.subr.bf16.mxu0 0
      %1569 = vmatpush1.bf16.msra.mxu0 0
      %1570 = vmatprep.subr.bf16.mxu0 0
      %1571 = vmatpush1.bf16.msra.mxu0 0
      %1572 = vmatprep.subr.bf16.mxu0 0
      %1573 = vmatpush1.bf16.msra.mxu0 0
      %1574 = vmatprep.subr.bf16.mxu0 0
      %1575 = vmatpush1.bf16.msra.mxu0 0
      %1576 = vmatprep.subr.bf16.mxu0 0
      %1577 = vmatpush1.bf16.msra.mxu0 0
      %1578 = vmatprep.subr.bf16.mxu0 0
      %1579 = vmatpush1.bf16.msra.mxu0 %v1562
      %1580 = vmatprep.subr.bf16.mxu0 0
      %1581 = vmatpush2.bf16.msra.mxu0 0
      %1582 = vmatprep.subr.bf16.mxu0 0
      %1583 = vmatpush2.bf16.msra.mxu0 0
      %1584 = vmatprep.subr.bf16.mxu0 0
      %1585 = vmatpush2.bf16.msra.mxu0 0
      %1586 = vmatprep.subr.bf16.mxu0 0
      %1587 = vmatpush2.bf16.msra.mxu0 0
      %1588 = vmatprep.subr.bf16.mxu0 0
      %1589 = vmatpush2.bf16.msra.mxu0 0
      %1590 = vmatprep.subr.bf16.mxu0 0
      %1591 = vmatpush2.bf16.msra.mxu0 0
      %1592 = vmatprep.subr.bf16.mxu0 0
      %1593 = vmatpush2.bf16.msra.mxu0 0
      %1594 = vmatprep.subr.bf16.mxu0 0
      %1595 = vmatpush2.bf16.msra.mxu0 0
      %1596 = vmatprep.mubr.bf16.mxu0 0
      %1597 = vmatmul.mubr.bf16.gmra.mxu0 %v1559
      %v1598 = vpop.f32.mrf.mxu0
      %v1599 = vadd.f32 0.0, %v1598
      %v1600 = vpop.f32.mrf.mxu0
      %v1601 = vpop.f32.mrf.mxu0
      %v1602 = vpop.f32.mrf.mxu0
      %1603 = vdwg.mxu0
      %s1604 = scalar_lea.vmem %s8, 8
      %v1605 = vld [vmem:[%s1604] sm:$0xf]
      %v1606 = vpack.c.bf16 %v1599, %v1599
      %v1608 = vsel %vm784, %v1606, 0
      %v1611 = vsel %vm855, %v1605, 0
      %1613 = vmatprep.subr.bf16.mxu0 0
      %1614 = vmatpush1.bf16.msra.mxu0 0
      %1615 = vmatprep.subr.bf16.mxu0 0
      %1616 = vmatpush1.bf16.msra.mxu0 0
      %1617 = vmatprep.subr.bf16.mxu0 0
      %1618 = vmatpush1.bf16.msra.mxu0 0
      %1619 = vmatprep.subr.bf16.mxu0 0
      %1620 = vmatpush1.bf16.msra.mxu0 0
      %1621 = vmatprep.subr.bf16.mxu0 0
      %1622 = vmatpush1.bf16.msra.mxu0 0
      %1623 = vmatprep.subr.bf16.mxu0 0
      %1624 = vmatpush1.bf16.msra.mxu0 0
      %1625 = vmatprep.subr.bf16.mxu0 0
      %1626 = vmatpush1.bf16.msra.mxu0 0
      %1627 = vmatprep.subr.bf16.mxu0 0
      %1628 = vmatpush1.bf16.msra.mxu0 %v1611
      %1629 = vmatprep.subr.bf16.mxu0 0
      %1630 = vmatpush2.bf16.msra.mxu0 0
      %1631 = vmatprep.subr.bf16.mxu0 0
      %1632 = vmatpush2.bf16.msra.mxu0 0
      %1633 = vmatprep.subr.bf16.mxu0 0
      %1634 = vmatpush2.bf16.msra.mxu0 0
      %1635 = vmatprep.subr.bf16.mxu0 0
      %1636 = vmatpush2.bf16.msra.mxu0 0
      %1637 = vmatprep.subr.bf16.mxu0 0
      %1638 = vmatpush2.bf16.msra.mxu0 0
      %1639 = vmatprep.subr.bf16.mxu0 0
      %1640 = vmatpush2.bf16.msra.mxu0 0
      %1641 = vmatprep.subr.bf16.mxu0 0
      %1642 = vmatpush2.bf16.msra.mxu0 0
      %1643 = vmatprep.subr.bf16.mxu0 0
      %1644 = vmatpush2.bf16.msra.mxu0 0
      %1645 = vmatprep.mubr.bf16.mxu0 0
      %1646 = vmatmul.mubr.bf16.gmra.mxu0 %v1608
      %v1647 = vpop.f32.mrf.mxu0
      %v1648 = vadd.f32 0.0, %v1647
      %v1649 = vpop.f32.mrf.mxu0
      %v1650 = vpop.f32.mrf.mxu0
      %v1651 = vpop.f32.mrf.mxu0
      %1652 = vdwg.mxu0
      %v1653 = vadd.f32 %v1295, %v1648
      %s1654 = scalar_lea.vmem %s2, 48
      %v1655 = vld [vmem:[%s1654] sm:$0xf]
      %v1656 = vld [vmem:[%s1654 + $0x4] sm:$0xf]
      %v1657 = vld [vmem:[%s1654 + $0x8] sm:$0xf]
      %v1658 = vld [vmem:[%s1654 + $0xc] sm:$0xf]
      %s1659 = scalar_lea.vmem %s5, 3
      %v1660 = vld [vmem:[%s1659] sm:$0x1]
      %v1662 = vlaneseq
      %v1663 = vshrl.u32 %v1662, 7
      %v1664 = vsub.s32 0, %v1663
      %v1665 = vrot.slane %v1660, %v1664
      %v1671 = vunpack.c.l.b16 %v1655
      %v1672 = vunpack.c.l.b16 %v1656
      %v1673 = vunpack.c.l.b16 %v1657
      %v1674 = vunpack.c.l.b16 %v1658
      %v1675 = vpack.c.b16 %v1672, %v1671
      %v1676 = vpack.c.b16 %v1674, %v1673
      %1679 = vmatprep.subr.bf16.mxu0 0
      %1680 = vmatpush1.bf16.msra.mxu0 0
      %1681 = vmatprep.subr.bf16.mxu0 0
      %1682 = vmatpush1.bf16.msra.mxu0 0
      %1683 = vmatprep.subr.bf16.mxu0 0
      %1684 = vmatpush1.bf16.msra.mxu0 0
      %1685 = vmatprep.subr.bf16.mxu0 0
      %1686 = vmatpush1.bf16.msra.mxu0 0
      %1687 = vmatprep.subr.bf16.mxu0 0
      %1688 = vmatpush1.bf16.msra.mxu0 0
      %1689 = vmatprep.subr.bf16.mxu0 0
      %1690 = vmatpush1.bf16.msra.mxu0 0
      %1691 = vmatprep.subr.bf16.mxu0 0
      %1692 = vmatpush1.bf16.msra.mxu0 %v1676
      %1693 = vmatprep.subr.bf16.mxu0 0
      %1694 = vmatpush1.bf16.msra.mxu0 %v1675
      %1695 = vmatprep.subr.bf16.mxu0 0
      %1696 = vmatpush2.bf16.msra.mxu0 0
      %1697 = vmatprep.subr.bf16.mxu0 0
      %1698 = vmatpush2.bf16.msra.mxu0 0
      %1699 = vmatprep.subr.bf16.mxu0 0
      %1700 = vmatpush2.bf16.msra.mxu0 0
      %1701 = vmatprep.subr.bf16.mxu0 0
      %1702 = vmatpush2.bf16.msra.mxu0 0
      %1703 = vmatprep.subr.bf16.mxu0 0
      %1704 = vmatpush2.bf16.msra.mxu0 0
      %1705 = vmatprep.subr.bf16.mxu0 0
      %1706 = vmatpush2.bf16.msra.mxu0 0
      %1707 = vmatprep.subr.bf16.mxu0 0
      %1708 = vmatpush2.bf16.msra.mxu0 0
      %1709 = vmatprep.subr.bf16.mxu0 0
      %1710 = vmatpush2.bf16.msra.mxu0 0
      %1711 = vmatprep.mubr.bf16.mxu0 0
      %1712 = vmatmul.mubr.bf16.gmra.mxu0 %v614
      %v1713 = vpop.f32.mrf.mxu0
      %v1714 = vadd.f32 %v1665, %v1713
      %v1715 = vpop.f32.mrf.mxu0
      %v1716 = vpop.f32.mrf.mxu0
      %v1717 = vpop.f32.mrf.mxu0
      %1718 = vdwg.mxu0
      %s1719 = scalar_lea.vmem %s3, 48
      %v1720 = vld [vmem:[%s1719] sm:$0xf]
      %v1721 = vld [vmem:[%s1719 + $0x4] sm:$0xf]
      %v1722 = vld [vmem:[%s1719 + $0x8] sm:$0xf]
      %v1723 = vld [vmem:[%s1719 + $0xc] sm:$0xf]
      %s1724 = scalar_lea.vmem %s6, 3
      %v1725 = vld [vmem:[%s1724] sm:$0x1]
      %v1727 = vlaneseq
      %v1728 = vshrl.u32 %v1727, 7
      %v1729 = vsub.s32 0, %v1728
      %v1730 = vrot.slane %v1725, %v1729
      %v1736 = vunpack.c.l.b16 %v1720
      %v1737 = vunpack.c.l.b16 %v1721
      %v1738 = vunpack.c.l.b16 %v1722
      %v1739 = vunpack.c.l.b16 %v1723
      %v1740 = vpack.c.b16 %v1737, %v1736
      %v1741 = vpack.c.b16 %v1739, %v1738
      %1744 = vmatprep.subr.bf16.mxu0 0
      %1745 = vmatpush1.bf16.msra.mxu0 0
      %1746 = vmatprep.subr.bf16.mxu0 0
      %1747 = vmatpush1.bf16.msra.mxu0 0
      %1748 = vmatprep.subr.bf16.mxu0 0
      %1749 = vmatpush1.bf16.msra.mxu0 0
      %1750 = vmatprep.subr.bf16.mxu0 0
      %1751 = vmatpush1.bf16.msra.mxu0 0
      %1752 = vmatprep.subr.bf16.mxu0 0
      %1753 = vmatpush1.bf16.msra.mxu0 0
      %1754 = vmatprep.subr.bf16.mxu0 0
      %1755 = vmatpush1.bf16.msra.mxu0 0
      %1756 = vmatprep.subr.bf16.mxu0 0
      %1757 = vmatpush1.bf16.msra.mxu0 %v1741
      %1758 = vmatprep.subr.bf16.mxu0 0
      %1759 = vmatpush1.bf16.msra.mxu0 %v1740
      %1760 = vmatprep.subr.bf16.mxu0 0
      %1761 = vmatpush2.bf16.msra.mxu0 0
      %1762 = vmatprep.subr.bf16.mxu0 0
      %1763 = vmatpush2.bf16.msra.mxu0 0
      %1764 = vmatprep.subr.bf16.mxu0 0
      %1765 = vmatpush2.bf16.msra.mxu0 0
      %1766 = vmatprep.subr.bf16.mxu0 0
      %1767 = vmatpush2.bf16.msra.mxu0 0
      %1768 = vmatprep.subr.bf16.mxu0 0
      %1769 = vmatpush2.bf16.msra.mxu0 0
      %1770 = vmatprep.subr.bf16.mxu0 0
      %1771 = vmatpush2.bf16.msra.mxu0 0
      %1772 = vmatprep.subr.bf16.mxu0 0
      %1773 = vmatpush2.bf16.msra.mxu0 0
      %1774 = vmatprep.subr.bf16.mxu0 0
      %1775 = vmatpush2.bf16.msra.mxu0 0
      %1776 = vmatprep.mubr.bf16.mxu0 0
      %1777 = vmatmul.mubr.bf16.gmra.mxu0 %v614
      %v1778 = vpop.f32.mrf.mxu0
      %v1779 = vadd.f32 %v1730, %v1778
      %v1780 = vpop.f32.mrf.mxu0
      %v1781 = vpop.f32.mrf.mxu0
      %v1782 = vpop.f32.mrf.mxu0
      %1783 = vdwg.mxu0
      %s1784 = scalar_lea.vmem %s4, 48
      %v1785 = vld [vmem:[%s1784] sm:$0xf]
      %v1786 = vld [vmem:[%s1784 + $0x4] sm:$0xf]
      %v1787 = vld [vmem:[%s1784 + $0x8] sm:$0xf]
      %v1788 = vld [vmem:[%s1784 + $0xc] sm:$0xf]
      %s1789 = scalar_lea.vmem %s7, 3
      %v1790 = vld [vmem:[%s1789] sm:$0x1]
      %v1792 = vlaneseq
      %v1793 = vshrl.u32 %v1792, 7
      %v1794 = vsub.s32 0, %v1793
      %v1795 = vrot.slane %v1790, %v1794
      %v1801 = vunpack.c.l.b16 %v1785
      %v1802 = vunpack.c.l.b16 %v1786
      %v1803 = vunpack.c.l.b16 %v1787
      %v1804 = vunpack.c.l.b16 %v1788
      %v1805 = vpack.c.b16 %v1802, %v1801
      %v1806 = vpack.c.b16 %v1804, %v1803
      %1809 = vmatprep.subr.bf16.mxu0 0
      %1810 = vmatpush1.bf16.msra.mxu0 0
      %1811 = vmatprep.subr.bf16.mxu0 0
      %1812 = vmatpush1.bf16.msra.mxu0 0
      %1813 = vmatprep.subr.bf16.mxu0 0
      %1814 = vmatpush1.bf16.msra.mxu0 0
      %1815 = vmatprep.subr.bf16.mxu0 0
      %1816 = vmatpush1.bf16.msra.mxu0 0
      %1817 = vmatprep.subr.bf16.mxu0 0
      %1818 = vmatpush1.bf16.msra.mxu0 0
      %1819 = vmatprep.subr.bf16.mxu0 0
      %1820 = vmatpush1.bf16.msra.mxu0 0
      %1821 = vmatprep.subr.bf16.mxu0 0
      %1822 = vmatpush1.bf16.msra.mxu0 %v1806
      %1823 = vmatprep.subr.bf16.mxu0 0
      %1824 = vmatpush1.bf16.msra.mxu0 %v1805
      %1825 = vmatprep.subr.bf16.mxu0 0
      %1826 = vmatpush2.bf16.msra.mxu0 0
      %1827 = vmatprep.subr.bf16.mxu0 0
      %1828 = vmatpush2.bf16.msra.mxu0 0
      %1829 = vmatprep.subr.bf16.mxu0 0
      %1830 = vmatpush2.bf16.msra.mxu0 0
      %1831 = vmatprep.subr.bf16.mxu0 0
      %1832 = vmatpush2.bf16.msra.mxu0 0
      %1833 = vmatprep.subr.bf16.mxu0 0
      %1834 = vmatpush2.bf16.msra.mxu0 0
      %1835 = vmatprep.subr.bf16.mxu0 0
      %1836 = vmatpush2.bf16.msra.mxu0 0
      %1837 = vmatprep.subr.bf16.mxu0 0
      %1838 = vmatpush2.bf16.msra.mxu0 0
      %1839 = vmatprep.subr.bf16.mxu0 0
      %1840 = vmatpush2.bf16.msra.mxu0 0
      %1841 = vmatprep.mubr.bf16.mxu0 0
      %1842 = vmatmul.mubr.bf16.gmra.mxu0 %v614
      %v1843 = vpop.f32.mrf.mxu0
      %v1844 = vadd.f32 %v1795, %v1843
      %v1845 = vpop.f32.mrf.mxu0
      %v1846 = vpop.f32.mrf.mxu0
      %v1847 = vpop.f32.mrf.mxu0
      %1848 = vdwg.mxu0
      %v1849 = vpack.c.bf16 %v1714, %v1714
      %v1850 = vpack.c.bf16 %v1779, %v1779
      %v1852 = vsel %vm784, %v1849, 0
      %v1855 = vsel %vm784, %v1850, 0
      %1857 = vmatprep.subr.bf16.mxu0 0
      %1858 = vmatpush1.bf16.xpose.msra.mxu0 0
      %1859 = vmatprep.subr.bf16.mxu0 0
      %1860 = vmatpush1.bf16.xpose.msra.mxu0 0
      %1861 = vmatprep.subr.bf16.mxu0 0
      %1862 = vmatpush1.bf16.xpose.msra.mxu0 0
      %1863 = vmatprep.subr.bf16.mxu0 0
      %1864 = vmatpush1.bf16.xpose.msra.mxu0 0
      %1865 = vmatprep.subr.bf16.mxu0 0
      %1866 = vmatpush1.bf16.xpose.msra.mxu0 0
      %1867 = vmatprep.subr.bf16.mxu0 0
      %1868 = vmatpush1.bf16.xpose.msra.mxu0 0
      %1869 = vmatprep.subr.bf16.mxu0 0
      %1870 = vmatpush1.bf16.xpose.msra.mxu0 0
      %1871 = vmatprep.subr.bf16.mxu0 0
      %1872 = vmatpush1.bf16.xpose.msra.mxu0 %v1855
      %1873 = vmatprep.subr.bf16.mxu0 0
      %1874 = vmatpush2.bf16.xpose.msra.mxu0 0
      %1875 = vmatprep.subr.bf16.mxu0 0
      %1876 = vmatpush2.bf16.xpose.msra.mxu0 0
      %1877 = vmatprep.subr.bf16.mxu0 0
      %1878 = vmatpush2.bf16.xpose.msra.mxu0 0
      %1879 = vmatprep.subr.bf16.mxu0 0
      %1880 = vmatpush2.bf16.xpose.msra.mxu0 0
      %1881 = vmatprep.subr.bf16.mxu0 0
      %1882 = vmatpush2.bf16.xpose.msra.mxu0 0
      %1883 = vmatprep.subr.bf16.mxu0 0
      %1884 = vmatpush2.bf16.xpose.msra.mxu0 0
      %1885 = vmatprep.subr.bf16.mxu0 0
      %1886 = vmatpush2.bf16.xpose.msra.mxu0 0
      %1887 = vmatprep.subr.bf16.mxu0 0
      %1888 = vmatpush2.bf16.xpose.msra.mxu0 0
      %1889 = vmatprep.mubr.bf16.mxu0 0
      %1890 = vmatmul.mubr.bf16.gmra.mxu0 %v1852
      %v1891 = vpop.f32.mrf.mxu0
      %v1892 = vadd.f32 0.0, %v1891
      %v1893 = vpop.f32.mrf.mxu0
      %v1894 = vpop.f32.mrf.mxu0
      %v1895 = vpop.f32.mrf.mxu0
      %1896 = vdwg.mxu0
      %v1897 = vmul.f32 %v1892, 0.35355338
      %v1898 = vadd.f32 %v1897, %v836
      %v1899 = vsel %vm784, %v1898, -inf
      %1900 = vmax.xlane.f32.xlu0 %v1899
      %v1901 = vpop.xlane.xlu0 %1900
      %v1902 = vsub.f32 %v1898, %v1901
      %v1903 = vmul.f32 %v1902, 1.442695
      %v1904 = vpow.pop %v1903
      %v1905 = vsel %vm784, %v1904, 0.0
      %1906 = vadd.xlane.f32.xlu0 %v1905
      %v1907 = vpop.xlane.xlu0 %1906
      %v1908 = vrcp.pop %v1907
      %v1909 = vmul.f32 %v1904, %v1908
      %v1910 = vpack.c.bf16 %v1909, %v1909
      %v1911 = vpack.c.bf16 %v1844, %v1844
      %v1913 = vsel %vm784, %v1910, 0
      %v1916 = vsel %vm855, %v1911, 0
      %1918 = vmatprep.subr.bf16.mxu0 0
      %1919 = vmatpush1.bf16.msra.mxu0 0
      %1920 = vmatprep.subr.bf16.mxu0 0
      %1921 = vmatpush1.bf16.msra.mxu0 0
      %1922 = vmatprep.subr.bf16.mxu0 0
      %1923 = vmatpush1.bf16.msra.mxu0 0
      %1924 = vmatprep.subr.bf16.mxu0 0
      %1925 = vmatpush1.bf16.msra.mxu0 0
      %1926 = vmatprep.subr.bf16.mxu0 0
      %1927 = vmatpush1.bf16.msra.mxu0 0
      %1928 = vmatprep.subr.bf16.mxu0 0
      %1929 = vmatpush1.bf16.msra.mxu0 0
      %1930 = vmatprep.subr.bf16.mxu0 0
      %1931 = vmatpush1.bf16.msra.mxu0 0
      %1932 = vmatprep.subr.bf16.mxu0 0
      %1933 = vmatpush1.bf16.msra.mxu0 %v1916
      %1934 = vmatprep.subr.bf16.mxu0 0
      %1935 = vmatpush2.bf16.msra.mxu0 0
      %1936 = vmatprep.subr.bf16.mxu0 0
      %1937 = vmatpush2.bf16.msra.mxu0 0
      %1938 = vmatprep.subr.bf16.mxu0 0
      %1939 = vmatpush2.bf16.msra.mxu0 0
      %1940 = vmatprep.subr.bf16.mxu0 0
      %1941 = vmatpush2.bf16.msra.mxu0 0
      %1942 = vmatprep.subr.bf16.mxu0 0
      %1943 = vmatpush2.bf16.msra.mxu0 0
      %1944 = vmatprep.subr.bf16.mxu0 0
      %1945 = vmatpush2.bf16.msra.mxu0 0
      %1946 = vmatprep.subr.bf16.mxu0 0
      %1947 = vmatpush2.bf16.msra.mxu0 0
      %1948 = vmatprep.subr.bf16.mxu0 0
      %1949 = vmatpush2.bf16.msra.mxu0 0
      %1950 = vmatprep.mubr.bf16.mxu0 0
      %1951 = vmatmul.mubr.bf16.gmra.mxu0 %v1913
      %v1952 = vpop.f32.mrf.mxu0
      %v1953 = vadd.f32 0.0, %v1952
      %v1954 = vpop.f32.mrf.mxu0
      %v1955 = vpop.f32.mrf.mxu0
      %v1956 = vpop.f32.mrf.mxu0
      %1957 = vdwg.mxu0
      %s1958 = scalar_lea.vmem %s8, 12
      %v1959 = vld [vmem:[%s1958] sm:$0xf]
      %v1960 = vpack.c.bf16 %v1953, %v1953
      %v1962 = vsel %vm784, %v1960, 0
      %v1965 = vsel %vm855, %v1959, 0
      %1967 = vmatprep.subr.bf16.mxu0 0
      %1968 = vmatpush1.bf16.msra.mxu0 0
      %1969 = vmatprep.subr.bf16.mxu0 0
      %1970 = vmatpush1.bf16.msra.mxu0 0
      %1971 = vmatprep.subr.bf16.mxu0 0
      %1972 = vmatpush1.bf16.msra.mxu0 0
      %1973 = vmatprep.subr.bf16.mxu0 0
      %1974 = vmatpush1.bf16.msra.mxu0 0
      %1975 = vmatprep.subr.bf16.mxu0 0
      %1976 = vmatpush1.bf16.msra.mxu0 0
      %1977 = vmatprep.subr.bf16.mxu0 0
      %1978 = vmatpush1.bf16.msra.mxu0 0
      %1979 = vmatprep.subr.bf16.mxu0 0
      %1980 = vmatpush1.bf16.msra.mxu0 0
      %1981 = vmatprep.subr.bf16.mxu0 0
      %1982 = vmatpush1.bf16.msra.mxu0 %v1965
      %1983 = vmatprep.subr.bf16.mxu0 0
      %1984 = vmatpush2.bf16.msra.mxu0 0
      %1985 = vmatprep.subr.bf16.mxu0 0
      %1986 = vmatpush2.bf16.msra.mxu0 0
      %1987 = vmatprep.subr.bf16.mxu0 0
      %1988 = vmatpush2.bf16.msra.mxu0 0
      %1989 = vmatprep.subr.bf16.mxu0 0
      %1990 = vmatpush2.bf16.msra.mxu0 0
      %1991 = vmatprep.subr.bf16.mxu0 0
      %1992 = vmatpush2.bf16.msra.mxu0 0
      %1993 = vmatprep.subr.bf16.mxu0 0
      %1994 = vmatpush2.bf16.msra.mxu0 0
      %1995 = vmatprep.subr.bf16.mxu0 0
      %1996 = vmatpush2.bf16.msra.mxu0 0
      %1997 = vmatprep.subr.bf16.mxu0 0
      %1998 = vmatpush2.bf16.msra.mxu0 0
      %1999 = vmatprep.mubr.bf16.mxu0 0
      %2000 = vmatmul.mubr.bf16.gmra.mxu0 %v1962
      %v2001 = vpop.f32.mrf.mxu0
      %v2002 = vadd.f32 0.0, %v2001
      %v2003 = vpop.f32.mrf.mxu0
      %v2004 = vpop.f32.mrf.mxu0
      %v2005 = vpop.f32.mrf.mxu0
      %2006 = vdwg.mxu0
      %v2007 = vadd.f32 %v1653, %v2002
      %v2008 = vld [vmem:[%s9] sm:$0x1]
      %v2010 = vlaneseq
      %v2011 = vshrl.u32 %v2010, 7
      %v2012 = vsub.s32 0, %v2011
      %v2013 = vrot.slane %v2008, %v2012
      %v2015 = vadd.f32 %v2007, %v2013
      %v2016 = vadd.f32 %v586, %v2015
      %v2017 = vld [vmem:[%s10] sm:$0x1]
      %v2018 = vld [vmem:[%s11] sm:$0x1]
      %v2019 = vsel %vm612, %v2016, 0.0
      %2020 = vadd.xlane.f32.xlu0 %v2019
      %v2021 = vpop.xlane.xlu0 %2020
      %v2022 = vrcp.pop 32.0
      %v2023 = vmul.f32 %v2021, %v2022
      %v2024 = vsub.f32 %v2016, %v2023
      %v2025 = vmul.f32 %v2024, %v2024
      %v2026 = vsel %vm612, %v2025, 0.0
      %2027 = vadd.xlane.f32.xlu0 %v2026
      %v2028 = vpop.xlane.xlu0 %2027
      %v2029 = vmul.f32 %v2028, %v2022
      %v2030 = vadd.f32 %v2029, 1e-05
      %v2031 = vrsqrt.pop %v2030
      %v2032 = vmul.f32 %v2024, %v2031
      %v2034 = vlaneseq
      %v2035 = vshrl.u32 %v2034, 7
      %v2036 = vsub.s32 0, %v2035
      %v2037 = vrot.slane %v2017, %v2036
      %v2039 = vmul.f32 %v2032, %v2037
      %v2041 = vlaneseq
      %v2042 = vshrl.u32 %v2041, 7
      %v2043 = vsub.s32 0, %v2042
      %v2044 = vrot.slane %v2018, %v2043
      %v2046 = vadd.f32 %v2039, %v2044
      %v2047 = vld [vmem:[%s12] sm:$0xf]
      %v2048 = vld [vmem:[%s12 + $0x4] sm:$0xf]
      %v2049 = vld [vmem:[%s12 + $0x8] sm:$0xf]
      %v2050 = vld [vmem:[%s12 + $0xc] sm:$0xf]
      %v2051 = vpack.c.bf16 %v2046, %v2046
      %v2052 = vld [vmem:[%s13] sm:$0x1]
      %v2054 = vlaneseq
      %v2055 = vshrl.u32 %v2054, 7
      %v2056 = vsub.s32 0, %v2055
      %v2057 = vrot.slane %v2052, %v2056
      %v2063 = vunpack.c.l.b16 %v2047
      %v2064 = vunpack.c.l.b16 %v2048
      %v2065 = vunpack.c.l.b16 %v2049
      %v2066 = vunpack.c.l.b16 %v2050
      %v2067 = vpack.c.b16 %v2064, %v2063
      %v2068 = vpack.c.b16 %v2066, %v2065
      %v2072 = vsel %vm612, %v2051, 0
      %2074 = vmatprep.subr.bf16.mxu0 0
      %2075 = vmatpush1.bf16.msra.mxu0 0
      %2076 = vmatprep.subr.bf16.mxu0 0
      %2077 = vmatpush1.bf16.msra.mxu0 0
      %2078 = vmatprep.subr.bf16.mxu0 0
      %2079 = vmatpush1.bf16.msra.mxu0 0
      %2080 = vmatprep.subr.bf16.mxu0 0
      %2081 = vmatpush1.bf16.msra.mxu0 0
      %2082 = vmatprep.subr.bf16.mxu0 0
      %2083 = vmatpush1.bf16.msra.mxu0 0
      %2084 = vmatprep.subr.bf16.mxu0 0
      %2085 = vmatpush1.bf16.msra.mxu0 0
      %2086 = vmatprep.subr.bf16.mxu0 0
      %2087 = vmatpush1.bf16.msra.mxu0 %v2068
      %2088 = vmatprep.subr.bf16.mxu0 0
      %2089 = vmatpush1.bf16.msra.mxu0 %v2067
      %2090 = vmatprep.subr.bf16.mxu0 0
      %2091 = vmatpush2.bf16.msra.mxu0 0
      %2092 = vmatprep.subr.bf16.mxu0 0
      %2093 = vmatpush2.bf16.msra.mxu0 0
      %2094 = vmatprep.subr.bf16.mxu0 0
      %2095 = vmatpush2.bf16.msra.mxu0 0
      %2096 = vmatprep.subr.bf16.mxu0 0
      %2097 = vmatpush2.bf16.msra.mxu0 0
      %2098 = vmatprep.subr.bf16.mxu0 0
      %2099 = vmatpush2.bf16.msra.mxu0 0
      %2100 = vmatprep.subr.bf16.mxu0 0
      %2101 = vmatpush2.bf16.msra.mxu0 0
      %2102 = vmatprep.subr.bf16.mxu0 0
      %2103 = vmatpush2.bf16.msra.mxu0 0
      %2104 = vmatprep.subr.bf16.mxu0 0
      %2105 = vmatpush2.bf16.msra.mxu0 0
      %2106 = vmatprep.mubr.bf16.mxu0 0
      %2107 = vmatmul.mubr.bf16.gmra.mxu0 %v2072
      %v2108 = vpop.f32.mrf.mxu0
      %v2109 = vadd.f32 %v2057, %v2108
      %v2110 = vpop.f32.mrf.mxu0
      %v2111 = vpop.f32.mrf.mxu0
      %v2112 = vpop.f32.mrf.mxu0
      %2113 = vdwg.mxu0
      %v2114 = vmax.f32 %v2109, 0.0
      %v2115 = vld [vmem:[%s14] sm:$0xf]
      %v2116 = vld [vmem:[%s14 + $0x4] sm:$0xf]
      %v2117 = vld [vmem:[%s14 + $0x8] sm:$0xf]
      %v2118 = vld [vmem:[%s14 + $0xc] sm:$0xf]
      %v2119 = vld [vmem:[%s14 + $0x10] sm:$0xf]
      %v2120 = vld [vmem:[%s14 + $0x14] sm:$0xf]
      %v2121 = vld [vmem:[%s14 + $0x18] sm:$0xf]
      %v2122 = vld [vmem:[%s14 + $0x1c] sm:$0xf]
      %v2123 = vpack.c.bf16 %v2114, %v2114
      %v2124 = vld [vmem:[%s15] sm:$0x1]
      %v2126 = vlaneseq
      %v2127 = vshrl.u32 %v2126, 7
      %v2128 = vsub.s32 0, %v2127
      %v2129 = vrot.slane %v2124, %v2128
      %v2139 = vunpack.c.l.b16 %v2115
      %v2140 = vunpack.c.l.b16 %v2116
      %v2141 = vunpack.c.l.b16 %v2117
      %v2142 = vunpack.c.l.b16 %v2118
      %v2143 = vunpack.c.l.b16 %v2119
      %v2144 = vunpack.c.l.b16 %v2120
      %v2145 = vunpack.c.l.b16 %v2121
      %v2146 = vunpack.c.l.b16 %v2122
      %v2147 = vpack.c.b16 %v2140, %v2139
      %v2148 = vpack.c.b16 %v2142, %v2141
      %v2149 = vpack.c.b16 %v2144, %v2143
      %v2150 = vpack.c.b16 %v2146, %v2145
      %vm2155 = vcmask 523264
      %v2157 = vsel %vm2155, %v2123, 0
      %2159 = vmatprep.subr.bf16.mxu0 0
      %2160 = vmatpush1.bf16.msra.mxu0 0
      %2161 = vmatprep.subr.bf16.mxu0 0
      %2162 = vmatpush1.bf16.msra.mxu0 0
      %2163 = vmatprep.subr.bf16.mxu0 0
      %2164 = vmatpush1.bf16.msra.mxu0 0
      %2165 = vmatprep.subr.bf16.mxu0 0
      %2166 = vmatpush1.bf16.msra.mxu0 0
      %2167 = vmatprep.subr.bf16.mxu0 0
      %2168 = vmatpush1.bf16.msra.mxu0 %v2150
      %2169 = vmatprep.subr.bf16.mxu0 0
      %2170 = vmatpush1.bf16.msra.mxu0 %v2149
      %2171 = vmatprep.subr.bf16.mxu0 0
      %2172 = vmatpush1.bf16.msra.mxu0 %v2148
      %2173 = vmatprep.subr.bf16.mxu0 0
      %2174 = vmatpush1.bf16.msra.mxu0 %v2147
      %2175 = vmatprep.subr.bf16.mxu0 0
      %2176 = vmatpush2.bf16.msra.mxu0 0
      %2177 = vmatprep.subr.bf16.mxu0 0
      %2178 = vmatpush2.bf16.msra.mxu0 0
      %2179 = vmatprep.subr.bf16.mxu0 0
      %2180 = vmatpush2.bf16.msra.mxu0 0
      %2181 = vmatprep.subr.bf16.mxu0 0
      %2182 = vmatpush2.bf16.msra.mxu0 0
      %2183 = vmatprep.subr.bf16.mxu0 0
      %2184 = vmatpush2.bf16.msra.mxu0 0
      %2185 = vmatprep.subr.bf16.mxu0 0
      %2186 = vmatpush2.bf16.msra.mxu0 0
      %2187 = vmatprep.subr.bf16.mxu0 0
      %2188 = vmatpush2.bf16.msra.mxu0 0
      %2189 = vmatprep.subr.bf16.mxu0 0
      %2190 = vmatpush2.bf16.msra.mxu0 0
      %2191 = vmatprep.mubr.bf16.mxu0 0
      %2192 = vmatmul.mubr.bf16.gmra.mxu0 %v2157
      %v2193 = vpop.f32.mrf.mxu0
      %v2194 = vadd.f32 %v2129, %v2193
      %v2195 = vpop.f32.mrf.mxu0
      %v2196 = vpop.f32.mrf.mxu0
      %v2197 = vpop.f32.mrf.mxu0
      %2198 = vdwg.mxu0
      %v2199 = vadd.f32 %v2046, %v2194
      %v2200 = vld [vmem:[%s16] sm:$0x1]
      %v2201 = vld [vmem:[%s17] sm:$0x1]
      %v2202 = vsel %vm612, %v2199, 0.0
      %2203 = vadd.xlane.f32.xlu0 %v2202
      %v2204 = vpop.xlane.xlu0 %2203
      %v2205 = vmul.f32 %v2204, %v2022
      %v2206 = vsub.f32 %v2199, %v2205
      %v2207 = vmul.f32 %v2206, %v2206
      %v2208 = vsel %vm612, %v2207, 0.0
      %2209 = vadd.xlane.f32.xlu0 %v2208
      %v2210 = vpop.xlane.xlu0 %2209
      %v2211 = vmul.f32 %v2210, %v2022
      %v2212 = vadd.f32 %v2211, 1e-05
      %v2213 = vrsqrt.pop %v2212
      %v2214 = vmul.f32 %v2206, %v2213
      %v2216 = vlaneseq
      %v2217 = vshrl.u32 %v2216, 7
      %v2218 = vsub.s32 0, %v2217
      %v2219 = vrot.slane %v2200, %v2218
      %v2221 = vmul.f32 %v2214, %v2219
      %v2223 = vlaneseq
      %v2224 = vshrl.u32 %v2223, 7
      %v2225 = vsub.s32 0, %v2224
      %v2226 = vrot.slane %v2201, %v2225
      %v2228 = vadd.f32 %v2221, %v2226
      %2229 = vst.msk [vmem:[%s584] sm:$0xff] %vm612, %v2228
      %p2230 = scmp.lt.s32.totalorder %s29, 1
      %s2231 = scalar_select %p2230, %s29, 1
      %s2232 = smul.addr %s2231, 8
      %s2233 = scalar_lea.vmem %s18, %s2232
      // Predicated region
      $region93: #{transformer_forward.6} parent=91 // pred_check
        %p2234 = pneg %p435
      $region94: #{transformer_forward.6} parent=91 // pred_check_branch
        %2236 = sbr.rel (%p2234) target = $region96
      $region95: #{transformer_forward.6} parent=91 // pred_region
        _
      $region96: #{transformer_forward.6} parent=91 // pred_fallthru
        _
    $region92: #{transformer_forward.6} parent=5 // pred_fallthru
      _
    %p2237 = scmp.le.s32.totalorder 2, %s24
    // Predicated region
    $region97: #{transformer_forward.6} parent=5 // pred_check
      %p2238 = pneg %p2237
    $region98: #{transformer_forward.6} parent=5 // pred_check_branch
      %2240 = sbr.rel (%p2238) target = $region100
    $region99: #{transformer_forward.6} parent=5 // pred_region
      %s2241 = ssub.s32 %s24, 2
      // Predicated region
      $region101: #{transformer_forward.6} parent=99 // pred_check
        %p2242 = pneg %p441
      $region102: #{transformer_forward.6} parent=99 // pred_check_branch
        %2244 = sbr.rel (%p2242) target = $region104
      $region103: #{transformer_forward.6} parent=99 // pred_region
        %p2245 = scmp.lt.s32.totalorder %s30, 1
        %s2246 = scalar_select %p2245, %s30, 1
        %s2247 = smul.addr %s2246, 8
        %s2248 = scalar_lea.vmem %s18, %s2247
      $region104: #{transformer_forward.6} parent=99 // pred_fallthru
        _
    $region100: #{transformer_forward.6} parent=5 // pred_fallthru
      _
  $region6: #{transformer_forward.6} parent=0 // loop_footer
    %s28 = sadd.s32 1, %s24
  $region7: #{transformer_forward.6} parent=0 // loop_footer_branch
    %23 = sbr.rel target = $region3
  $region8: #{transformer_forward.6} parent=0 // loop_exit
    _

</llo_original>
